<compile_context>
chip_gen: v5e
topology: v5e:2x2
jax: 0.10.0
libtpu: 0.0.40
codegen_flags: <defaults>
</compile_context>

<pallas_src>
import functools

import jax
import jax.numpy as jnp
from jax.experimental import pallas as pl
from jax.experimental.pallas import tpu as pltpu

EPS = 1e-5


# ---------------------------------------------------------------------------
# small helpers
# ---------------------------------------------------------------------------
def _round_up(v, m):
    return (v + m - 1) // m * m


def _pad_last(a, target):
    pad = target - a.shape[-1]
    if pad == 0:
        return a
    cfg = [(0, 0)] * (a.ndim - 1) + [(0, pad)]
    return jnp.pad(a, cfg)


def _pad_w(w, cpo, cpi):
    # PyTorch OIHW weight -> zero-padded OIHW with O->cpo, I->cpi.
    return jnp.pad(w, ((0, cpo - w.shape[0]), (0, cpi - w.shape[1]),
                       (0, 0), (0, 0)))


def _pick_tile(dim, cap, mult):
    """Largest tile <= cap dividing `dim`, preferring multiples of `mult`."""
    cap = min(dim, cap)
    for req in (mult, 8, 1):
        start = cap - cap % req
        for t in range(start, 0, -req):
            if dim % t == 0:
                return t
    return dim


def _cparams(dims, step_bytes):
    # 2x for double-buffered auto-pipelined blocks + slack; clamp to a range
    # that is safe on v5e/v6e (128 MiB VMEM) and v7x (64 MiB VMEM).
    limit = int(min(max(2 * step_bytes + (4 << 20), 32 << 20), 48 << 20))
    return pltpu.CompilerParams(dimension_semantics=dims,
                                vmem_limit_bytes=limit)


# ---------------------------------------------------------------------------
# Pallas kernel 1: streaming BatchNorm statistics (single pass sum / sum(x^2))
# ---------------------------------------------------------------------------
def _bn_stats_kernel(x_ref, o_ref):
    @pl.when(pl.program_id(0) == 0)
    def _init():
        o_ref[...] = jnp.zeros_like(o_ref)

    x = x_ref[...]
    s = jnp.sum(x, axis=0, keepdims=True)
    sq = jnp.sum(x * x, axis=0, keepdims=True)
    o_ref[...] += jnp.concatenate([s, sq], axis=0)


def _bn_stats(x2d):
    m, c = x2d.shape
    tm = _pick_tile(m, 1024, 8)
    step_bytes = tm * c * 4 + 2 * c * 4
    return pl.pallas_call(
        _bn_stats_kernel,
        out_shape=jax.ShapeDtypeStruct((2, c), jnp.float32),
        grid=(m // tm,),
        in_specs=[pl.BlockSpec((tm, c), lambda i: (i, 0))],
        out_specs=pl.BlockSpec((2, c), lambda i: (0, 0)),
        compiler_params=_cparams(("arbitrary",), step_bytes),
    )(x2d)


# ---------------------------------------------------------------------------
# Pallas kernel 2: tiled normalize + affine + ReLU (bf16 out)
# (only used ahead of the strided im2col conv1; stride-1 convs fuse this)
# ---------------------------------------------------------------------------
def _bn_relu_kernel(x_ref, sc_ref, sh_ref, o_ref):
    y = x_ref[...] * sc_ref[...] + sh_ref[...]
    o_ref[...] = jnp.maximum(y, 0.0).astype(o_ref.dtype)


def _bn_relu(x2d, scale, shift):
    m, c = x2d.shape
    tm = _pick_tile(m, 1024, 16)
    step_bytes = tm * c * 4 + 2 * c * 4 + tm * c * 2
    return pl.pallas_call(
        _bn_relu_kernel,
        out_shape=jax.ShapeDtypeStruct((m, c), jnp.bfloat16),
        grid=(m // tm,),
        in_specs=[pl.BlockSpec((tm, c), lambda i: (i, 0)),
                  pl.BlockSpec((1, c), lambda i: (0, 0)),
                  pl.BlockSpec((1, c), lambda i: (0, 0))],
        out_specs=pl.BlockSpec((tm, c), lambda i: (i, 0)),
        compiler_params=_cparams(("parallel",), step_bytes),
    )(x2d, scale, shift)


# ---------------------------------------------------------------------------
# Pallas kernel 3: tiled matmul with K-axis accumulation (bf16 x bf16 -> f32)
# ---------------------------------------------------------------------------
def _matmul_kernel(a_ref, b_ref, o_ref, acc_ref):
    @pl.when(pl.program_id(2) == 0)
    def _init():
        acc_ref[...] = jnp.zeros_like(acc_ref)

    acc_ref[...] += jnp.dot(a_ref[...], b_ref[...],
                            preferred_element_type=jnp.float32)

    @pl.when(pl.program_id(2) == pl.num_programs(2) - 1)
    def _store():
        o_ref[...] = acc_ref[...].astype(o_ref.dtype)


def _matmul(a, b):
    m, k = a.shape
    _, n = b.shape
    tm = _pick_tile(m, 256, 16)
    tn = _pick_tile(n, 256, 128)
    tk = _pick_tile(k, 512, 128)
    step_bytes = (tm * tk + tk * tn) * 2 + 2 * tm * tn * 4
    cost = pl.CostEstimate(flops=2 * m * n * k, transcendentals=0,
                           bytes_accessed=(m * k + k * n) * 2 + m * n * 4)
    return pl.pallas_call(
        _matmul_kernel,
        out_shape=jax.ShapeDtypeStruct((m, n), jnp.float32),
        grid=(m // tm, n // tn, k // tk),
        in_specs=[pl.BlockSpec((tm, tk), lambda i, j, kk: (i, kk)),
                  pl.BlockSpec((tk, tn), lambda i, j, kk: (kk, j))],
        out_specs=pl.BlockSpec((tm, tn), lambda i, j, kk: (i, j)),
        scratch_shapes=[pltpu.VMEM((tm, tn), jnp.float32)],
        compiler_params=_cparams(("parallel", "parallel", "arbitrary"),
                                 step_bytes),
        cost_estimate=cost,
    )(a, b)


# ---------------------------------------------------------------------------
# Pallas kernel 4: direct 3x3 stride-1 conv with fused BN+ReLU on the input,
# and optionally the fused 1x1 projection shortcut + residual add.
# ---------------------------------------------------------------------------
def _conv3x3_kernel(*refs, fuse_proj):
    if fuse_proj:
        x_ref, sc_ref, sh_ref, w_ref, xs_ref, wp_ref, o_ref, xn_ref = refs
    else:
        x_ref, sc_ref, sh_ref, w_ref, o_ref, xn_ref = refs
    _, h, w, ci = x_ref.shape
    co = o_ref.shape[2]

    # BN normalize + affine + ReLU into a zero-padded VMEM scratch.  The conv's
    # zero padding is applied AFTER bn+relu (it is the conv input that is
    # padded), hence the zeroed border around the normalized interior.
    xn_ref[...] = jnp.zeros_like(xn_ref)
    sc = sc_ref[...].reshape(1, 1, ci)
    sh = sh_ref[...].reshape(1, 1, ci)
    xn_ref[1:h + 1, 1:w + 1, :] = jnp.maximum(x_ref[0] * sc + sh, 0.0)

    # Output init: fused 1x1 projection shortcut (residual add) or zeros.
    if fuse_proj:
        xs = xs_ref[0].astype(wp_ref.dtype)
        o_ref[0] = jnp.dot(xs, wp_ref[...], preferred_element_type=jnp.float32)
    else:
        o_ref[0] = jnp.zeros((h * w, co), jnp.float32)

    # Direct 3x3 stride-1 conv: nine shifted (H*W, Ci) @ (Ci, Co) bf16 matmuls.
    for kh in range(3):
        for kw in range(3):
            a = xn_ref[kh:kh + h, kw:kw + w, :].reshape(h * w, ci)
            o_ref[0] += jnp.dot(a.astype(jnp.bfloat16), w_ref[kh, kw],
                                preferred_element_type=jnp.float32)


def _conv3x3_direct(x4d, scale, shift, w4d):
    """conv(relu(bn(x))), 3x3 stride 1 pad 1.  Returns (N, H*W, Co) f32."""
    n, h, w, ci = x4d.shape
    co = w4d.shape[3]
    tn = _pick_tile(co, 128, 128)
    step_bytes = (h * w * ci * 4 + 2 * ci * 4 + 9 * ci * tn * 2 +
                  h * w * tn * 4 + (h + 2) * (w + 2) * ci * 4)
    kernel = functools.partial(_conv3x3_kernel, fuse_proj=False)
    return pl.pallas_call(
        kernel,
        out_shape=jax.ShapeDtypeStruct((n, h * w, co), jnp.float32),
        grid=(n, co // tn),
        in_specs=[pl.BlockSpec((1, h, w, ci), lambda b, j: (b, 0, 0, 0)),
                  pl.BlockSpec((1, ci), lambda b, j: (0, 0)),
                  pl.BlockSpec((1, ci), lambda b, j: (0, 0)),
                  pl.BlockSpec((3, 3, ci, tn), lambda b, j: (0, 0, 0, j))],
        out_specs=pl.BlockSpec((1, h * w, tn), lambda b, j: (b, 0, j)),
        scratch_shapes=[pltpu.VMEM((h + 2, w + 2, ci), jnp.float32)],
        compiler_params=_cparams(("parallel", "parallel"), step_bytes),
    )(x4d, scale, shift, w4d)


def _conv3x3_proj_add(y4d, scale, shift, w4d, xs3d, wproj):
    """conv2(relu(bn2(y))) + x_sub @ w_proj, all in one kernel.

    Returns (N, H*W, Co) f32; x_proj is never materialized in HBM."""
    n, h, w, ci = y4d.shape
    co = w4d.shape[3]
    cpi = xs3d.shape[2]
    tn = _pick_tile(co, 128, 128)
    step_bytes = (h * w * ci * 4 + 2 * ci * 4 + 9 * ci * tn * 2 +
                  h * w * cpi * 4 + cpi * tn * 2 +
                  h * w * tn * 4 + (h + 2) * (w + 2) * ci * 4)
    kernel = functools.partial(_conv3x3_kernel, fuse_proj=True)
    return pl.pallas_call(
        kernel,
        out_shape=jax.ShapeDtypeStruct((n, h * w, co), jnp.float32),
        grid=(n, co // tn),
        in_specs=[pl.BlockSpec((1, h, w, ci), lambda b, j: (b, 0, 0, 0)),
                  pl.BlockSpec((1, ci), lambda b, j: (0, 0)),
                  pl.BlockSpec((1, ci), lambda b, j: (0, 0)),
                  pl.BlockSpec((3, 3, ci, tn), lambda b, j: (0, 0, 0, j)),
                  pl.BlockSpec((1, h * w, cpi), lambda b, j: (b, 0, 0)),
                  pl.BlockSpec((cpi, tn), lambda b, j: (0, j))],
        out_specs=pl.BlockSpec((1, h * w, tn), lambda b, j: (b, 0, j)),
        scratch_shapes=[pltpu.VMEM((h + 2, w + 2, ci), jnp.float32)],
        compiler_params=_cparams(("parallel", "parallel"), step_bytes),
    )(y4d, scale, shift, w4d, xs3d, wproj)


# ---------------------------------------------------------------------------
# XLA glue: im2col for the stride-2 conv1 only (2.25x inflation; the 9x
# stride-1 case is handled by the direct in-kernel conv above).
# ---------------------------------------------------------------------------
def _im2col_3x3(x_nhwc, stride):
    n, h, w, c = x_nhwc.shape
    xp = jnp.pad(x_nhwc, ((0, 0), (1, 1), (1, 1), (0, 0)))
    ho = (h - 1) // stride + 1
    wo = (w - 1) // stride + 1
    cols = []
    for kh in range(3):
        for kw in range(3):
            cols.append(xp[:, kh:kh + stride * (ho - 1) + 1:stride,
                           kw:kw + stride * (wo - 1) + 1:stride, :])
    cols = jnp.concatenate(cols, axis=-1)            # K order = (kh,kw,c)
    return cols.reshape(n * ho * wo, 9 * c), (ho, wo)


# ---------------------------------------------------------------------------
# Full block forward
# ---------------------------------------------------------------------------
@functools.partial(jax.jit, static_argnames=("downsample",))
def residual_block_forward(x_nchw, params, downsample):
    # TODO(synk): in a full network keep activations NHWC end-to-end and drop
    # these two layout transposes; kept here to match the NCHW PyTorch API.
    x = jnp.transpose(x_nchw, (0, 2, 3, 1)).astype(jnp.float32)
    n, h, w, cin = x.shape
    cout = params["w1"].shape[0]
    stride = 2 if downsample else 1
    cpi = _round_up(cin, 128)      # lane-dense / MXU-friendly channel padding
    cpo = _round_up(cout, 128)

    # --- channel padding + weight repacking (cheap, once per call) ---
    xp = _pad_last(x, cpi)                                     # (n,h,w,cpi)
    g1 = _pad_last(params["gamma1"].astype(jnp.float32), cpi)
    b1 = _pad_last(params["beta1"].astype(jnp.float32), cpi)
    g2 = _pad_last(params["gamma2"].astype(jnp.float32), cpo)
    b2 = _pad_last(params["beta2"].astype(jnp.float32), cpo)
    w1p = _pad_w(params["w1"], cpo, cpi)
    w2p = _pad_w(params["w2"], cpo, cpo)
    wpp = _pad_w(params["w_proj"], cpo, cpi)
    w1_4d = jnp.transpose(w1p, (2, 3, 1, 0)).astype(jnp.bfloat16)  # (3,3,cpi,cpo)
    w2_4d = jnp.transpose(w2p, (2, 3, 1, 0)).astype(jnp.bfloat16)  # (3,3,cpo,cpo)
    w1_mat = w1_4d.reshape(9 * cpi, cpo)                           # im2col order
    wproj = jnp.transpose(wpp[:, :, 0, 0], (1, 0)).astype(jnp.bfloat16)

    # --- bn1 statistics: streaming single-pass sum / sum(x^2) (Pallas) ---
    m1 = n * h * w
    x2d = xp.reshape(m1, cpi)
    s1 = _bn_stats(x2d)
    mean1 = s1[0] / m1
    var1 = jnp.maximum(s1[1] / m1 - mean1 * mean1, 0.0)   # biased variance
    inv1 = jax.lax.rsqrt(var1 + EPS)
    scale1 = (g1 * inv1).reshape(1, cpi)
    shift1 = (b1 - mean1 * g1 * inv1).reshape(1, cpi)

    ho = (h - 1) // stride + 1
    wo = (w - 1) // stride + 1

    # --- conv1( relu( bn1(x) ) ) ---
    if stride == 1:
        # direct 3x3 conv with BN+ReLU fused in-kernel (no im2col, no
        # normalized-activation round trip through HBM).
        y1 = _conv3x3_direct(xp, scale1, shift1, w1_4d)     # (n, h*w, cpo)
    else:
        # stride-2 (downsample): BN+ReLU kernel (bf16) + im2col + tiled GEMM.
        # BN cannot be folded onto im2col columns because the conv's zero
        # padding must remain zero AFTER bn+relu.
        a = _bn_relu(x2d, scale1, shift1).reshape(n, h, w, cpi)
        cols, _ = _im2col_3x3(a, stride)                    # (n*ho*wo, 9*cpi)
        y1 = _matmul(cols, w1_mat).reshape(n, ho * wo, cpo)
    y1_4d = y1.reshape(n, ho, wo, cpo)

    # --- bn2 statistics ---
    m2 = n * ho * wo
    s2 = _bn_stats(y1.reshape(m2, cpo))
    mean2 = s2[0] / m2
    var2 = jnp.maximum(s2[1] / m2 - mean2 * mean2, 0.0)
    inv2 = jax.lax.rsqrt(var2 + EPS)
    scale2 = (g2 * inv2).reshape(1, cpo)
    shift2 = (b2 - mean2 * g2 * inv2).reshape(1, cpo)

    # --- conv2( relu( bn2(y1) ) ) + conv_proj(x), one fused kernel ---
    x_sub = xp[:, ::stride, ::stride, :].reshape(n, ho * wo, cpi)
    out = _conv3x3_proj_add(y1_4d, scale2, shift2, w2_4d, x_sub, wproj)

    out = out.reshape(n, ho, wo, cpo)[:, :, :, :cout]
    return jnp.transpose(out, (0, 3, 1, 2))                 # back to NCHW


# ---------------------------------------------------------------------------
# Pure-JAX reference (f32) for a correctness self-check
# ---------------------------------------------------------------------------
def _reference(x_nchw, params, downsample):
    x = x_nchw.astype(jnp.float32)
    stride = 2 if downsample else 1

    def bn(v, g, b):
        mean = jnp.mean(v, axis=(0, 2, 3), keepdims=True)
        var = jnp.mean((v - mean) ** 2, axis=(0, 2, 3), keepdims=True)
        return ((v - mean) * jax.lax.rsqrt(var + EPS) *
                g.reshape(1, -1, 1, 1) + b.reshape(1, -1, 1, 1))

    def conv(v, wgt, s, p):
        return jax.lax.conv_general_dilated(
            v, wgt, (s, s), [(p, p), (p, p)],
            dimension_numbers=("NCHW", "OIHW", "NCHW"))

    y = conv(jax.nn.relu(bn(x, params["gamma1"], params["beta1"])),
             params["w1"], stride, 1)
    y = conv(jax.nn.relu(bn(y, params["gamma2"], params["beta2"])),
             params["w2"], 1, 1)
    x_proj = conv(x, params["w_proj"], stride, 0)
    return x_proj + y


# ---------------------------------------------------------------------------
# Deterministic parameter init (shapes follow the module __init__)
# ---------------------------------------------------------------------------
def init_params(key, in_dim, out_dim):
    ks = jax.random.split(key, 7)
    return {
        "gamma1": 1.0 + 0.1 * jax.random.normal(ks[0], (in_dim,), jnp.float32),
        "beta1": 0.1 * jax.random.normal(ks[1], (in_dim,), jnp.float32),
        "gamma2": 1.0 + 0.1 * jax.random.normal(ks[2], (out_dim,), jnp.float32),
        "beta2": 0.1 * jax.random.normal(ks[3], (out_dim,), jnp.float32),
        "w1": 0.1 * jax.random.normal(ks[4], (out_dim, in_dim, 3, 3), jnp.float32),
        "w2": 0.1 * jax.random.normal(ks[5], (out_dim, out_dim, 3, 3), jnp.float32),
        "w_proj": 0.1 * jax.random.normal(ks[6], (out_dim, in_dim, 1, 1), jnp.float32),
    }


if __name__ == "__main__":
    key = jax.random.PRNGKey(0)
    k_x, k_p = jax.random.split(key)

    N, IN_DIM, OUT_DIM, H, W = 2, 4, 8, 16, 16
    x = jax.random.normal(k_x, (N, IN_DIM, H, W), jnp.float32)   # NCHW input
    params = init_params(k_p, IN_DIM, OUT_DIM)

    for downsample in (True, False):     # exercise both stride paths
        out = jax.block_until_ready(residual_block_forward(x, params, downsample))
        s = H // 2 if downsample else H
        assert out.shape == (N, OUT_DIM, s, s), out.shape
        assert bool(jnp.all(jnp.isfinite(out)))
        ref = _reference(x, params, downsample)
        err = float(jnp.max(jnp.abs(out - ref)))
        # bf16 MXU operands with f32 accumulation -> small numerical drift only
        assert err < 0.25, f"max |out - ref| too large: {err}"

    print("KERNEL_OK")
</pallas_src>

<mosaic_0001>
module attributes {stable_mosaic.version = 11 : i64} {
  func.func @_bn_stats_kernel(%arg0: i32, %arg1: memref<512x128xf32, #tpu.memory_space<vmem>>, %arg2: memref<2x128xf32, #tpu.memory_space<vmem>>) attributes {dimension_semantics = [#tpu.dimension_semantics<arbitrary>], iteration_bounds = array<i64: 1>, scalar_prefetch = 0 : i64, scratch_operands = 0 : i64, tpu.core_type = #tpu.core_type<tc>, window_params = [{transform_indices = @transform_0, window_bounds = array<i64: 512, 128>}, {pipeline_mode = #tpu.pipeline_mode<synchronous>, transform_indices = @transform_1, window_bounds = array<i64: 2, 128>}]} {
    %c0_i32 = arith.constant 0 : i32
    %0 = arith.cmpi eq, %arg0, %c0_i32 : i32
    %1 = arith.extui %0 : i1 to i32
    %c0_i32_0 = arith.constant 0 : i32
    %2 = arith.cmpi ne, %1, %c0_i32_0 : i32
    scf.if %2 {
      %cst_7 = arith.constant 0.000000e+00 : f32
      %13 = vector.broadcast %cst_7 : f32 to vector<2x128xf32>
      %c0_8 = arith.constant 0 : index
      %c0_9 = arith.constant 0 : index
      %14 = vector.load %arg2[%c0_8, %c0_9] : memref<2x128xf32, #tpu.memory_space<vmem>>, vector<2x128xf32>
      tpu.vector_store %arg2[%c0_8, %c0_9], %13 {strides = array<i32>} : memref<2x128xf32, #tpu.memory_space<vmem>>, vector<2x128xf32>,
    } else {
    }
    %c0 = arith.constant 0 : index
    %c0_1 = arith.constant 0 : index
    %3 = vector.load %arg1[%c0, %c0_1] : memref<512x128xf32, #tpu.memory_space<vmem>>, vector<512x128xf32>
    %cst = arith.constant dense<0.000000e+00> : vector<128xf32>
    %4 = vector.multi_reduction <add>, %3, %cst [0] : vector<512x128xf32> to vector<128xf32>
    %5 = vector.shape_cast %4 : vector<128xf32> to vector<1x128xf32>
    %6 = arith.mulf %3, %3 : vector<512x128xf32>
    %cst_2 = arith.constant dense<0.000000e+00> : vector<128xf32>
    %7 = vector.multi_reduction <add>, %6, %cst_2 [0] : vector<512x128xf32> to vector<128xf32>
    %8 = vector.shape_cast %7 : vector<128xf32> to vector<1x128xf32>
    %c0_3 = arith.constant 0 : index
    %c0_4 = arith.constant 0 : index
    %9 = vector.load %arg2[%c0_3, %c0_4] : memref<2x128xf32, #tpu.memory_space<vmem>>, vector<2x128xf32>
    %10 = tpu.concatenate %5, %8 in 0 : vector<1x128xf32>, vector<1x128xf32> -> vector<2x128xf32>
    %11 = arith.addf %9, %10 : vector<2x128xf32>
    %c0_5 = arith.constant 0 : index
    %c0_6 = arith.constant 0 : index
    %12 = vector.load %arg2[%c0_5, %c0_6] : memref<2x128xf32, #tpu.memory_space<vmem>>, vector<2x128xf32>
    tpu.vector_store %arg2[%c0_5, %c0_6], %11 {strides = array<i32>} : memref<2x128xf32, #tpu.memory_space<vmem>>, vector<2x128xf32>,
    return
  }
  func.func @transform_0(%arg0: i32) -> (i32, i32) {
    %c0_i32 = arith.constant 0 : i32
    %c0_i32_0 = arith.constant 0 : i32
    return %arg0, %c0_i32 : i32, i32
  }
  func.func @transform_1(%arg0: i32) -> (i32, i32) {
    %c0_i32 = arith.constant 0 : i32
    %c0_i32_0 = arith.constant 0 : i32
    %c0_i32_1 = arith.constant 0 : i32
    return %c0_i32, %c0_i32_0 : i32, i32
  }
}

module attributes {stable_mosaic.version = 11 : i64} {
  func.func @_bn_relu_kernel(%arg0: i32, %arg1: memref<512x128xf32, #tpu.memory_space<vmem>>, %arg2: memref<1x128xf32, #tpu.memory_space<vmem>>, %arg3: memref<1x128xf32, #tpu.memory_space<vmem>>, %arg4: memref<512x128xbf16, #tpu.memory_space<vmem>>) attributes {dimension_semantics = [#tpu.dimension_semantics<parallel>], iteration_bounds = array<i64: 1>, scalar_prefetch = 0 : i64, scratch_operands = 0 : i64, tpu.core_type = #tpu.core_type<tc>, window_params = [{transform_indices = @transform_0, window_bounds = array<i64: 512, 128>}, {pipeline_mode = #tpu.pipeline_mode<synchronous>, transform_indices = @transform_1, window_bounds = array<i64: 1, 128>}, {pipeline_mode = #tpu.pipeline_mode<synchronous>, transform_indices = @transform_2, window_bounds = array<i64: 1, 128>}, {transform_indices = @transform_3, window_bounds = array<i64: 512, 128>}]} {
    %c0 = arith.constant 0 : index
    %c0_0 = arith.constant 0 : index
    %0 = vector.load %arg1[%c0, %c0_0] : memref<512x128xf32, #tpu.memory_space<vmem>>, vector<512x128xf32>
    %c0_1 = arith.constant 0 : index
    %c0_2 = arith.constant 0 : index
    %1 = vector.load %arg2[%c0_1, %c0_2] : memref<1x128xf32, #tpu.memory_space<vmem>>, vector<1x128xf32>
    %2 = vector.broadcast %1 : vector<1x128xf32> to vector<512x128xf32>
    %3 = arith.mulf %0, %2 : vector<512x128xf32>
    %c0_3 = arith.constant 0 : index
    %c0_4 = arith.constant 0 : index
    %4 = vector.load %arg3[%c0_3, %c0_4] : memref<1x128xf32, #tpu.memory_space<vmem>>, vector<1x128xf32>
    %5 = vector.broadcast %4 : vector<1x128xf32> to vector<512x128xf32>
    %6 = arith.addf %3, %5 : vector<512x128xf32>
    %cst = arith.constant 0.000000e+00 : f32
    %7 = vector.broadcast %cst : f32 to vector<512x128xf32>
    %8 = arith.maximumf %6, %7 : vector<512x128xf32>
    %9 = arith.truncf %8 : vector<512x128xf32> to vector<512x128xbf16>
    %c0_5 = arith.constant 0 : index
    %c0_6 = arith.constant 0 : index
    %10 = vector.load %arg4[%c0_5, %c0_6] : memref<512x128xbf16, #tpu.memory_space<vmem>>, vector<512x128xbf16>
    tpu.vector_store %arg4[%c0_5, %c0_6], %9 {strides = array<i32>} : memref<512x128xbf16, #tpu.memory_space<vmem>>, vector<512x128xbf16>,
    return
  }
  func.func @transform_0(%arg0: i32) -> (i32, i32) {
    %c0_i32 = arith.constant 0 : i32
    %c0_i32_0 = arith.constant 0 : i32
    return %arg0, %c0_i32 : i32, i32
  }
  func.func @transform_1(%arg0: i32) -> (i32, i32) {
    %c0_i32 = arith.constant 0 : i32
    %c0_i32_0 = arith.constant 0 : i32
    %c0_i32_1 = arith.constant 0 : i32
    return %c0_i32, %c0_i32_0 : i32, i32
  }
  func.func @transform_2(%arg0: i32) -> (i32, i32) {
    %c0_i32 = arith.constant 0 : i32
    %c0_i32_0 = arith.constant 0 : i32
    %c0_i32_1 = arith.constant 0 : i32
    return %c0_i32, %c0_i32_0 : i32, i32
  }
  func.func @transform_3(%arg0: i32) -> (i32, i32) {
    %c0_i32 = arith.constant 0 : i32
    %c0_i32_0 = arith.constant 0 : i32
    return %arg0, %c0_i32 : i32, i32
  }
}

module attributes {stable_mosaic.version = 11 : i64} {
  func.func @_bn_stats_kernel(%arg0: i32, %arg1: memref<128x128xf32, #tpu.memory_space<vmem>>, %arg2: memref<2x128xf32, #tpu.memory_space<vmem>>) attributes {dimension_semantics = [#tpu.dimension_semantics<arbitrary>], iteration_bounds = array<i64: 1>, scalar_prefetch = 0 : i64, scratch_operands = 0 : i64, tpu.core_type = #tpu.core_type<tc>, window_params = [{transform_indices = @transform_0, window_bounds = array<i64: 128, 128>}, {pipeline_mode = #tpu.pipeline_mode<synchronous>, transform_indices = @transform_1, window_bounds = array<i64: 2, 128>}]} {
    %c0_i32 = arith.constant 0 : i32
    %0 = arith.cmpi eq, %arg0, %c0_i32 : i32
    %1 = arith.extui %0 : i1 to i32
    %c0_i32_0 = arith.constant 0 : i32
    %2 = arith.cmpi ne, %1, %c0_i32_0 : i32
    scf.if %2 {
      %cst_7 = arith.constant 0.000000e+00 : f32
      %13 = vector.broadcast %cst_7 : f32 to vector<2x128xf32>
      %c0_8 = arith.constant 0 : index
      %c0_9 = arith.constant 0 : index
      %14 = vector.load %arg2[%c0_8, %c0_9] : memref<2x128xf32, #tpu.memory_space<vmem>>, vector<2x128xf32>
      tpu.vector_store %arg2[%c0_8, %c0_9], %13 {strides = array<i32>} : memref<2x128xf32, #tpu.memory_space<vmem>>, vector<2x128xf32>,
    } else {
    }
    %c0 = arith.constant 0 : index
    %c0_1 = arith.constant 0 : index
    %3 = vector.load %arg1[%c0, %c0_1] : memref<128x128xf32, #tpu.memory_space<vmem>>, vector<128x128xf32>
    %cst = arith.constant dense<0.000000e+00> : vector<128xf32>
    %4 = vector.multi_reduction <add>, %3, %cst [0] : vector<128x128xf32> to vector<128xf32>
    %5 = vector.shape_cast %4 : vector<128xf32> to vector<1x128xf32>
    %6 = arith.mulf %3, %3 : vector<128x128xf32>
    %cst_2 = arith.constant dense<0.000000e+00> : vector<128xf32>
    %7 = vector.multi_reduction <add>, %6, %cst_2 [0] : vector<128x128xf32> to vector<128xf32>
    %8 = vector.shape_cast %7 : vector<128xf32> to vector<1x128xf32>
    %c0_3 = arith.constant 0 : index
    %c0_4 = arith.constant 0 : index
    %9 = vector.load %arg2[%c0_3, %c0_4] : memref<2x128xf32, #tpu.memory_space<vmem>>, vector<2x128xf32>
    %10 = tpu.concatenate %5, %8 in 0 : vector<1x128xf32>, vector<1x128xf32> -> vector<2x128xf32>
    %11 = arith.addf %9, %10 : vector<2x128xf32>
    %c0_5 = arith.constant 0 : index
    %c0_6 = arith.constant 0 : index
    %12 = vector.load %arg2[%c0_5, %c0_6] : memref<2x128xf32, #tpu.memory_space<vmem>>, vector<2x128xf32>
    tpu.vector_store %arg2[%c0_5, %c0_6], %11 {strides = array<i32>} : memref<2x128xf32, #tpu.memory_space<vmem>>, vector<2x128xf32>,
    return
  }
  func.func @transform_0(%arg0: i32) -> (i32, i32) {
    %c0_i32 = arith.constant 0 : i32
    %c0_i32_0 = arith.constant 0 : i32
    return %arg0, %c0_i32 : i32, i32
  }
  func.func @transform_1(%arg0: i32) -> (i32, i32) {
    %c0_i32 = arith.constant 0 : i32
    %c0_i32_0 = arith.constant 0 : i32
    %c0_i32_1 = arith.constant 0 : i32
    return %c0_i32, %c0_i32_0 : i32, i32
  }
}

module attributes {stable_mosaic.version = 11 : i64} {
  func.func @_matmul_kernel(%arg0: i32, %arg1: i32, %arg2: i32, %arg3: memref<128x384xbf16, #tpu.memory_space<vmem>>, %arg4: memref<384x128xbf16, #tpu.memory_space<vmem>>, %arg5: memref<128x128xf32, #tpu.memory_space<vmem>>, %arg6: memref<128x128xf32, #tpu.memory_space<vmem>>) attributes {dimension_semantics = [#tpu.dimension_semantics<parallel>, #tpu.dimension_semantics<parallel>, #tpu.dimension_semantics<arbitrary>], iteration_bounds = array<i64: 1, 1, 3>, scalar_prefetch = 0 : i64, scratch_operands = 1 : i64, tpu.core_type = #tpu.core_type<tc>, window_params = [{transform_indices = @transform_0, window_bounds = array<i64: 128, 384>}, {transform_indices = @transform_1, window_bounds = array<i64: 384, 128>}, {transform_indices = @transform_2, window_bounds = array<i64: 128, 128>}]} {
    %c0_i32 = arith.constant 0 : i32
    %0 = arith.cmpi eq, %arg2, %c0_i32 : i32
    %1 = arith.extui %0 : i1 to i32
    %c0_i32_0 = arith.constant 0 : i32
    %2 = arith.cmpi ne, %1, %c0_i32_0 : i32
    scf.if %2 {
      %cst_9 = arith.constant 0.000000e+00 : f32
      %12 = vector.broadcast %cst_9 : f32 to vector<128x128xf32>
      %c0_10 = arith.constant 0 : index
      %c0_11 = arith.constant 0 : index
      %13 = vector.load %arg6[%c0_10, %c0_11] : memref<128x128xf32, #tpu.memory_space<vmem>>, vector<128x128xf32>
      tpu.vector_store %arg6[%c0_10, %c0_11], %12 {strides = array<i32>} : memref<128x128xf32, #tpu.memory_space<vmem>>, vector<128x128xf32>,
    } else {
    }
    %c0 = arith.constant 0 : index
    %c0_1 = arith.constant 0 : index
    %3 = vector.load %arg6[%c0, %c0_1] : memref<128x128xf32, #tpu.memory_space<vmem>>, vector<128x128xf32>
    %c0_2 = arith.constant 0 : index
    %c0_3 = arith.constant 0 : index
    %4 = vector.load %arg3[%c0_2, %c0_3] : memref<128x384xbf16, #tpu.memory_space<vmem>>, vector<128x384xbf16>
    %c0_4 = arith.constant 0 : index
    %c0_5 = arith.constant 0 : index
    %5 = vector.load %arg4[%c0_4, %c0_5] : memref<384x128xbf16, #tpu.memory_space<vmem>>, vector<384x128xbf16>
    %cst = arith.constant dense<0.000000e+00> : vector<128x128xf32>
    %6 = tpu.matmul %4, %5, %cst {dimension_numbers = #tpu.dot_dimension_numbers<[1], [0], [0], [1], [0, 0, 1, 1], [], []>} : vector<128x384xbf16>, vector<384x128xbf16>, vector<128x128xf32> -> vector<128x128xf32>
    %7 = arith.addf %3, %6 : vector<128x128xf32>
    %c0_6 = arith.constant 0 : index
    %c0_7 = arith.constant 0 : index
    %8 = vector.load %arg6[%c0_6, %c0_7] : memref<128x128xf32, #tpu.memory_space<vmem>>, vector<128x128xf32>
    tpu.vector_store %arg6[%c0_6, %c0_7], %7 {strides = array<i32>} : memref<128x128xf32, #tpu.memory_space<vmem>>, vector<128x128xf32>,
    %c2_i32 = arith.constant 2 : i32
    %9 = arith.cmpi eq, %arg2, %c2_i32 : i32
    %10 = arith.extui %9 : i1 to i32
    %c0_i32_8 = arith.constant 0 : i32
    %11 = arith.cmpi ne, %10, %c0_i32_8 : i32
    scf.if %11 {
      %c0_9 = arith.constant 0 : index
      %c0_10 = arith.constant 0 : index
      %12 = vector.load %arg6[%c0_9, %c0_10] : memref<128x128xf32, #tpu.memory_space<vmem>>, vector<128x128xf32>
      %c0_11 = arith.constant 0 : index
      %c0_12 = arith.constant 0 : index
      %13 = vector.load %arg5[%c0_11, %c0_12] : memref<128x128xf32, #tpu.memory_space<vmem>>, vector<128x128xf32>
      tpu.vector_store %arg5[%c0_11, %c0_12], %12 {strides = array<i32>} : memref<128x128xf32, #tpu.memory_space<vmem>>, vector<128x128xf32>,
    } else {
    }
    return
  }
  func.func @transform_0(%arg0: i32, %arg1: i32, %arg2: i32) -> (i32, i32) {
    %c0_i32 = arith.constant 0 : i32
    return %arg0, %arg2 : i32, i32
  }
  func.func @transform_1(%arg0: i32, %arg1: i32, %arg2: i32) -> (i32, i32) {
    %c0_i32 = arith.constant 0 : i32
    return %arg2, %arg1 : i32, i32
  }
  func.func @transform_2(%arg0: i32, %arg1: i32, %arg2: i32) -> (i32, i32) {
    %c0_i32 = arith.constant 0 : i32
    return %arg0, %arg1 : i32, i32
  }
}

module attributes {stable_mosaic.version = 11 : i64} {
  func.func @_conv3x3_kernel(%arg0: i32, %arg1: i32, %arg2: memref<1x8x8x128xf32, #tpu.memory_space<vmem>>, %arg3: memref<1x128xf32, #tpu.memory_space<vmem>>, %arg4: memref<1x128xf32, #tpu.memory_space<vmem>>, %arg5: memref<3x3x128x128xbf16, #tpu.memory_space<vmem>>, %arg6: memref<1x64x128xf32, #tpu.memory_space<vmem>>, %arg7: memref<128x128xbf16, #tpu.memory_space<vmem>>, %arg8: memref<1x64x128xf32, #tpu.memory_space<vmem>>, %arg9: memref<10x10x128xf32, #tpu.memory_space<vmem>>) attributes {dimension_semantics = [#tpu.dimension_semantics<parallel>, #tpu.dimension_semantics<parallel>], iteration_bounds = array<i64: 2, 1>, scalar_prefetch = 0 : i64, scratch_operands = 1 : i64, tpu.core_type = #tpu.core_type<tc>, window_params = [{transform_indices = @transform_0, window_bounds = array<i64: 1, 8, 8, 128>}, {pipeline_mode = #tpu.pipeline_mode<synchronous>, transform_indices = @transform_1, window_bounds = array<i64: 1, 128>}, {pipeline_mode = #tpu.pipeline_mode<synchronous>, transform_indices = @transform_2, window_bounds = array<i64: 1, 128>}, {transform_indices = @transform_3, window_bounds = array<i64: 3, 3, 128, 128>}, {transform_indices = @transform_4, window_bounds = array<i64: 1, 64, 128>}, {transform_indices = @transform_5, window_bounds = array<i64: 128, 128>}, {transform_indices = @transform_6, window_bounds = array<i64: 1, 64, 128>}]} {
    %cst = arith.constant 0.000000e+00 : f32
    %0 = vector.broadcast %cst : f32 to vector<10x10x128xf32>
    %c0 = arith.constant 0 : index
    %c0_0 = arith.constant 0 : index
    %c0_1 = arith.constant 0 : index
    %1 = vector.load %arg9[%c0, %c0_0, %c0_1] : memref<10x10x128xf32, #tpu.memory_space<vmem>>, vector<10x10x128xf32>
    tpu.vector_store %arg9[%c0, %c0_0, %c0_1], %0 {strides = array<i32>} : memref<10x10x128xf32, #tpu.memory_space<vmem>>, vector<10x10x128xf32>,
    %c0_2 = arith.constant 0 : index
    %c0_3 = arith.constant 0 : index
    %2 = vector.load %arg3[%c0_2, %c0_3] : memref<1x128xf32, #tpu.memory_space<vmem>>, vector<1x128xf32>
    %3 = vector.shape_cast %2 : vector<1x128xf32> to vector<1x1x128xf32>
    %c0_4 = arith.constant 0 : index
    %c0_5 = arith.constant 0 : index
    %4 = vector.load %arg4[%c0_4, %c0_5] : memref<1x128xf32, #tpu.memory_space<vmem>>, vector<1x128xf32>
    %5 = vector.shape_cast %4 : vector<1x128xf32> to vector<1x1x128xf32>
    %c0_6 = arith.constant 0 : index
    %c0_7 = arith.constant 0 : index
    %c0_8 = arith.constant 0 : index
    %c0_9 = arith.constant 0 : index
    %6 = vector.load %arg2[%c0_6, %c0_7, %c0_8, %c0_9] : memref<1x8x8x128xf32, #tpu.memory_space<vmem>>, vector<1x8x8x128xf32>
    %7 = vector.shape_cast %6 : vector<1x8x8x128xf32> to vector<8x8x128xf32>
    %8 = vector.broadcast %3 : vector<1x1x128xf32> to vector<8x8x128xf32>
    %9 = arith.mulf %7, %8 : vector<8x8x128xf32>
    %10 = vector.broadcast %5 : vector<1x1x128xf32> to vector<8x8x128xf32>
    %11 = arith.addf %9, %10 : vector<8x8x128xf32>
    %cst_10 = arith.constant 0.000000e+00 : f32
    %12 = vector.broadcast %cst_10 : f32 to vector<8x8x128xf32>
    %13 = arith.maximumf %11, %12 : vector<8x8x128xf32>
    %c1 = arith.constant 1 : index
    %c1_11 = arith.constant 1 : index
    %c0_12 = arith.constant 0 : index
    %14 = vector.load %arg9[%c1, %c1_11, %c0_12] : memref<10x10x128xf32, #tpu.memory_space<vmem>>, vector<8x8x128xf32>
    tpu.vector_store %arg9[%c1, %c1_11, %c0_12], %13 {strides = array<i32>} : memref<10x10x128xf32, #tpu.memory_space<vmem>>, vector<8x8x128xf32>,
    %c0_13 = arith.constant 0 : index
    %c0_14 = arith.constant 0 : index
    %c0_15 = arith.constant 0 : index
    %15 = vector.load %arg6[%c0_13, %c0_14, %c0_15] : memref<1x64x128xf32, #tpu.memory_space<vmem>>, vector<1x64x128xf32>
    %16 = vector.shape_cast %15 : vector<1x64x128xf32> to vector<64x128xf32>
    %17 = arith.truncf %16 : vector<64x128xf32> to vector<64x128xbf16>
    %c0_16 = arith.constant 0 : index
    %c0_17 = arith.constant 0 : index
    %18 = vector.load %arg7[%c0_16, %c0_17] : memref<128x128xbf16, #tpu.memory_space<vmem>>, vector<128x128xbf16>
    %cst_18 = arith.constant dense<0.000000e+00> : vector<64x128xf32>
    %19 = tpu.matmul %17, %18, %cst_18 {dimension_numbers = #tpu.dot_dimension_numbers<[1], [0], [0], [1], [0, 0, 1, 1], [], []>} : vector<64x128xbf16>, vector<128x128xbf16>, vector<64x128xf32> -> vector<64x128xf32>
    %c0_19 = arith.constant 0 : index
    %c0_20 = arith.constant 0 : index
    %c0_21 = arith.constant 0 : index
    %20 = vector.load %arg8[%c0_19, %c0_20, %c0_21] : memref<1x64x128xf32, #tpu.memory_space<vmem>>, vector<1x64x128xf32>
    %21 = vector.shape_cast %20 : vector<1x64x128xf32> to vector<64x128xf32>
    %22 = vector.shape_cast %19 : vector<64x128xf32> to vector<1x64x128xf32>
    tpu.vector_store %arg8[%c0_19, %c0_20, %c0_21], %22 {strides = array<i32>} : memref<1x64x128xf32, #tpu.memory_space<vmem>>, vector<1x64x128xf32>,
    %c0_22 = arith.constant 0 : index
    %c0_23 = arith.constant 0 : index
    %c0_24 = arith.constant 0 : index
    %23 = vector.load %arg9[%c0_22, %c0_23, %c0_24] : memref<10x10x128xf32, #tpu.memory_space<vmem>>, vector<8x8x128xf32>
    %24 = vector.shape_cast %23 : vector<8x8x128xf32> to vector<64x128xf32>
    %c0_25 = arith.constant 0 : index
    %c0_26 = arith.constant 0 : index
    %c0_27 = arith.constant 0 : index
    %25 = vector.load %arg8[%c0_25, %c0_26, %c0_27] : memref<1x64x128xf32, #tpu.memory_space<vmem>>, vector<1x64x128xf32>
    %26 = vector.shape_cast %25 : vector<1x64x128xf32> to vector<64x128xf32>
    %27 = arith.truncf %24 : vector<64x128xf32> to vector<64x128xbf16>
    %c0_28 = arith.constant 0 : index
    %c0_29 = arith.constant 0 : index
    %c0_30 = arith.constant 0 : index
    %c0_31 = arith.constant 0 : index
    %28 = vector.load %arg5[%c0_28, %c0_29, %c0_30, %c0_31] : memref<3x3x128x128xbf16, #tpu.memory_space<vmem>>, vector<1x1x128x128xbf16>
    %29 = vector.shape_cast %28 : vector<1x1x128x128xbf16> to vector<128x128xbf16>
    %cst_32 = arith.constant dense<0.000000e+00> : vector<64x128xf32>
    %30 = tpu.matmul %27, %29, %cst_32 {dimension_numbers = #tpu.dot_dimension_numbers<[1], [0], [0], [1], [0, 0, 1, 1], [], []>} : vector<64x128xbf16>, vector<128x128xbf16>, vector<64x128xf32> -> vector<64x128xf32>
    %31 = arith.addf %26, %30 : vector<64x128xf32>
    %c0_33 = arith.constant 0 : index
    %c0_34 = arith.constant 0 : index
    %c0_35 = arith.constant 0 : index
    %32 = vector.load %arg8[%c0_33, %c0_34, %c0_35] : memref<1x64x128xf32, #tpu.memory_space<vmem>>, vector<1x64x128xf32>
    %33 = vector.shape_cast %32 : vector<1x64x128xf32> to vector<64x128xf32>
    %34 = vector.shape_cast %31 : vector<64x128xf32> to vector<1x64x128xf32>
    tpu.vector_store %arg8[%c0_33, %c0_34, %c0_35], %34 {strides = array<i32>} : memref<1x64x128xf32, #tpu.memory_space<vmem>>, vector<1x64x128xf32>,
    %c0_36 = arith.constant 0 : index
    %c1_37 = arith.constant 1 : index
    %c0_38 = arith.constant 0 : index
    %35 = vector.load %arg9[%c0_36, %c1_37, %c0_38] : memref<10x10x128xf32, #tpu.memory_space<vmem>>, vector<8x8x128xf32>
    %36 = vector.shape_cast %35 : vector<8x8x128xf32> to vector<64x128xf32>
    %c0_39 = arith.constant 0 : index
    %c0_40 = arith.constant 0 : index
    %c0_41 = arith.constant 0 : index
    %37 = vector.load %arg8[%c0_39, %c0_40, %c0_41] : memref<1x64x128xf32, #tpu.memory_space<vmem>>, vector<1x64x128xf32>
    %38 = vector.shape_cast %37 : vector<1x64x128xf32> to vector<64x128xf32>
    %39 = arith.truncf %36 : vector<64x128xf32> to vector<64x128xbf16>
    %c0_42 = arith.constant 0 : index
    %c1_43 = arith.constant 1 : index
    %c0_44 = arith.constant 0 : index
    %c0_45 = arith.constant 0 : index
    %40 = vector.load %arg5[%c0_42, %c1_43, %c0_44, %c0_45] : memref<3x3x128x128xbf16, #tpu.memory_space<vmem>>, vector<1x1x128x128xbf16>
    %41 = vector.shape_cast %40 : vector<1x1x128x128xbf16> to vector<128x128xbf16>
    %cst_46 = arith.constant dense<0.000000e+00> : vector<64x128xf32>
    %42 = tpu.matmul %39, %41, %cst_46 {dimension_numbers = #tpu.dot_dimension_numbers<[1], [0], [0], [1], [0, 0, 1, 1], [], []>} : vector<64x128xbf16>, vector<128x128xbf16>, vector<64x128xf32> -> vector<64x128xf32>
    %43 = arith.addf %38, %42 : vector<64x128xf32>
    %c0_47 = arith.constant 0 : index
    %c0_48 = arith.constant 0 : index
    %c0_49 = arith.constant 0 : index
    %44 = vector.load %arg8[%c0_47, %c0_48, %c0_49] : memref<1x64x128xf32, #tpu.memory_space<vmem>>, vector<1x64x128xf32>
    %45 = vector.shape_cast %44 : vector<1x64x128xf32> to vector<64x128xf32>
    %46 = vector.shape_cast %43 : vector<64x128xf32> to vector<1x64x128xf32>
    tpu.vector_store %arg8[%c0_47, %c0_48, %c0_49], %46 {strides = array<i32>} : memref<1x64x128xf32, #tpu.memory_space<vmem>>, vector<1x64x128xf32>,
    %c0_50 = arith.constant 0 : index
    %c2 = arith.constant 2 : index
    %c0_51 = arith.constant 0 : index
    %47 = vector.load %arg9[%c0_50, %c2, %c0_51] : memref<10x10x128xf32, #tpu.memory_space<vmem>>, vector<8x8x128xf32>
    %48 = vector.shape_cast %47 : vector<8x8x128xf32> to vector<64x128xf32>
    %c0_52 = arith.constant 0 : index
    %c0_53 = arith.constant 0 : index
    %c0_54 = arith.constant 0 : index
    %49 = vector.load %arg8[%c0_52, %c0_53, %c0_54] : memref<1x64x128xf32, #tpu.memory_space<vmem>>, vector<1x64x128xf32>
    %50 = vector.shape_cast %49 : vector<1x64x128xf32> to vector<64x128xf32>
    %51 = arith.truncf %48 : vector<64x128xf32> to vector<64x128xbf16>
    %c0_55 = arith.constant 0 : index
    %c2_56 = arith.constant 2 : index
    %c0_57 = arith.constant 0 : index
    %c0_58 = arith.constant 0 : index
    %52 = vector.load %arg5[%c0_55, %c2_56, %c0_57, %c0_58] : memref<3x3x128x128xbf16, #tpu.memory_space<vmem>>, vector<1x1x128x128xbf16>
    %53 = vector.shape_cast %52 : vector<1x1x128x128xbf16> to vector<128x128xbf16>
    %cst_59 = arith.constant dense<0.000000e+00> : vector<64x128xf32>
    %54 = tpu.matmul %51, %53, %cst_59 {dimension_numbers = #tpu.dot_dimension_numbers<[1], [0], [0], [1], [0, 0, 1, 1], [], []>} : vector<64x128xbf16>, vector<128x128xbf16>, vector<64x128xf32> -> vector<64x128xf32>
    %55 = arith.addf %50, %54 : vector<64x128xf32>
    %c0_60 = arith.constant 0 : index
    %c0_61 = arith.constant 0 : index
    %c0_62 = arith.constant 0 : index
    %56 = vector.load %arg8[%c0_60, %c0_61, %c0_62] : memref<1x64x128xf32, #tpu.memory_space<vmem>>, vector<1x64x128xf32>
    %57 = vector.shape_cast %56 : vector<1x64x128xf32> to vector<64x128xf32>
    %58 = vector.shape_cast %55 : vector<64x128xf32> to vector<1x64x128xf32>
    tpu.vector_store %arg8[%c0_60, %c0_61, %c0_62], %58 {strides = array<i32>} : memref<1x64x128xf32, #tpu.memory_space<vmem>>, vector<1x64x128xf32>,
    %c1_63 = arith.constant 1 : index
    %c0_64 = arith.constant 0 : index
    %c0_65 = arith.constant 0 : index
    %59 = vector.load %arg9[%c1_63, %c0_64, %c0_65] : memref<10x10x128xf32, #tpu.memory_space<vmem>>, vector<8x8x128xf32>
    %60 = vector.shape_cast %59 : vector<8x8x128xf32> to vector<64x128xf32>
    %c0_66 = arith.constant 0 : index
    %c0_67 = arith.constant 0 : index
    %c0_68 = arith.constant 0 : index
    %61 = vector.load %arg8[%c0_66, %c0_67, %c0_68] : memref<1x64x128xf32, #tpu.memory_space<vmem>>, vector<1x64x128xf32>
    %62 = vector.shape_cast %61 : vector<1x64x128xf32> to vector<64x128xf32>
    %63 = arith.truncf %60 : vector<64x128xf32> to vector<64x128xbf16>
    %c1_69 = arith.constant 1 : index
    %c0_70 = arith.constant 0 : index
    %c0_71 = arith.constant 0 : index
    %c0_72 = arith.constant 0 : index
    %64 = vector.load %arg5[%c1_69, %c0_70, %c0_71, %c0_72] : memref<3x3x128x128xbf16, #tpu.memory_space<vmem>>, vector<1x1x128x128xbf16>
    %65 = vector.shape_cast %64 : vector<1x1x128x128xbf16> to vector<128x128xbf16>
    %cst_73 = arith.constant dense<0.000000e+00> : vector<64x128xf32>
    %66 = tpu.matmul %63, %65, %cst_73 {dimension_numbers = #tpu.dot_dimension_numbers<[1], [0], [0], [1], [0, 0, 1, 1], [], []>} : vector<64x128xbf16>, vector<128x128xbf16>, vector<64x128xf32> -> vector<64x128xf32>
    %67 = arith.addf %62, %66 : vector<64x128xf32>
    %c0_74 = arith.constant 0 : index
    %c0_75 = arith.constant 0 : index
    %c0_76 = arith.constant 0 : index
    %68 = vector.load %arg8[%c0_74, %c0_75, %c0_76] : memref<1x64x128xf32, #tpu.memory_space<vmem>>, vector<1x64x128xf32>
    %69 = vector.shape_cast %68 : vector<1x64x128xf32> to vector<64x128xf32>
    %70 = vector.shape_cast %67 : vector<64x128xf32> to vector<1x64x128xf32>
    tpu.vector_store %arg8[%c0_74, %c0_75, %c0_76], %70 {strides = array<i32>} : memref<1x64x128xf32, #tpu.memory_space<vmem>>, vector<1x64x128xf32>,
    %c1_77 = arith.constant 1 : index
    %c1_78 = arith.constant 1 : index
    %c0_79 = arith.constant 0 : index
    %71 = vector.load %arg9[%c1_77, %c1_78, %c0_79] : memref<10x10x128xf32, #tpu.memory_space<vmem>>, vector<8x8x128xf32>
    %72 = vector.shape_cast %71 : vector<8x8x128xf32> to vector<64x128xf32>
    %c0_80 = arith.constant 0 : index
    %c0_81 = arith.constant 0 : index
    %c0_82 = arith.constant 0 : index
    %73 = vector.load %arg8[%c0_80, %c0_81, %c0_82] : memref<1x64x128xf32, #tpu.memory_space<vmem>>, vector<1x64x128xf32>
    %74 = vector.shape_cast %73 : vector<1x64x128xf32> to vector<64x128xf32>
    %75 = arith.truncf %72 : vector<64x128xf32> to vector<64x128xbf16>
    %c1_83 = arith.constant 1 : index
    %c1_84 = arith.constant 1 : index
    %c0_85 = arith.constant 0 : index
    %c0_86 = arith.constant 0 : index
    %76 = vector.load %arg5[%c1_83, %c1_84, %c0_85, %c0_86] : memref<3x3x128x128xbf16, #tpu.memory_space<vmem>>, vector<1x1x128x128xbf16>
    %77 = vector.shape_cast %76 : vector<1x1x128x128xbf16> to vector<128x128xbf16>
    %cst_87 = arith.constant dense<0.000000e+00> : vector<64x128xf32>
    %78 = tpu.matmul %75, %77, %cst_87 {dimension_numbers = #tpu.dot_dimension_numbers<[1], [0], [0], [1], [0, 0, 1, 1], [], []>} : vector<64x128xbf16>, vector<128x128xbf16>, vector<64x128xf32> -> vector<64x128xf32>
    %79 = arith.addf %74, %78 : vector<64x128xf32>
    %c0_88 = arith.constant 0 : index
    %c0_89 = arith.constant 0 : index
    %c0_90 = arith.constant 0 : index
    %80 = vector.load %arg8[%c0_88, %c0_89, %c0_90] : memref<1x64x128xf32, #tpu.memory_space<vmem>>, vector<1x64x128xf32>
    %81 = vector.shape_cast %80 : vector<1x64x128xf32> to vector<64x128xf32>
    %82 = vector.shape_cast %79 : vector<64x128xf32> to vector<1x64x128xf32>
    tpu.vector_store %arg8[%c0_88, %c0_89, %c0_90], %82 {strides = array<i32>} : memref<1x64x128xf32, #tpu.memory_space<vmem>>, vector<1x64x128xf32>,
    %c1_91 = arith.constant 1 : index
    %c2_92 = arith.constant 2 : index
    %c0_93 = arith.constant 0 : index
    %83 = vector.load %arg9[%c1_91, %c2_92, %c0_93] : memref<10x10x128xf32, #tpu.memory_space<vmem>>, vector<8x8x128xf32>
    %84 = vector.shape_cast %83 : vector<8x8x128xf32> to vector<64x128xf32>
    %c0_94 = arith.constant 0 : index
    %c0_95 = arith.constant 0 : index
    %c0_96 = arith.constant 0 : index
    %85 = vector.load %arg8[%c0_94, %c0_95, %c0_96] : memref<1x64x128xf32, #tpu.memory_space<vmem>>, vector<1x64x128xf32>
    %86 = vector.shape_cast %85 : vector<1x64x128xf32> to vector<64x128xf32>
    %87 = arith.truncf %84 : vector<64x128xf32> to vector<64x128xbf16>
    %c1_97 = arith.constant 1 : index
    %c2_98 = arith.constant 2 : index
    %c0_99 = arith.constant 0 : index
    %c0_100 = arith.constant 0 : index
    %88 = vector.load %arg5[%c1_97, %c2_98, %c0_99, %c0_100] : memref<3x3x128x128xbf16, #tpu.memory_space<vmem>>, vector<1x1x128x128xbf16>
    %89 = vector.shape_cast %88 : vector<1x1x128x128xbf16> to vector<128x128xbf16>
    %cst_101 = arith.constant dense<0.000000e+00> : vector<64x128xf32>
    %90 = tpu.matmul %87, %89, %cst_101 {dimension_numbers = #tpu.dot_dimension_numbers<[1], [0], [0], [1], [0, 0, 1, 1], [], []>} : vector<64x128xbf16>, vector<128x128xbf16>, vector<64x128xf32> -> vector<64x128xf32>
    %91 = arith.addf %86, %90 : vector<64x128xf32>
    %c0_102 = arith.constant 0 : index
    %c0_103 = arith.constant 0 : index
    %c0_104 = arith.constant 0 : index
    %92 = vector.load %arg8[%c0_102, %c0_103, %c0_104] : memref<1x64x128xf32, #tpu.memory_space<vmem>>, vector<1x64x128xf32>
    %93 = vector.shape_cast %92 : vector<1x64x128xf32> to vector<64x128xf32>
    %94 = vector.shape_cast %91 : vector<64x128xf32> to vector<1x64x128xf32>
    tpu.vector_store %arg8[%c0_102, %c0_103, %c0_104], %94 {strides = array<i32>} : memref<1x64x128xf32, #tpu.memory_space<vmem>>, vector<1x64x128xf32>,
    %c2_105 = arith.constant 2 : index
    %c0_106 = arith.constant 0 : index
    %c0_107 = arith.constant 0 : index
    %95 = vector.load %arg9[%c2_105, %c0_106, %c0_107] : memref<10x10x128xf32, #tpu.memory_space<vmem>>, vector<8x8x128xf32>
    %96 = vector.shape_cast %95 : vector<8x8x128xf32> to vector<64x128xf32>
    %c0_108 = arith.constant 0 : index
    %c0_109 = arith.constant 0 : index
    %c0_110 = arith.constant 0 : index
    %97 = vector.load %arg8[%c0_108, %c0_109, %c0_110] : memref<1x64x128xf32, #tpu.memory_space<vmem>>, vector<1x64x128xf32>
    %98 = vector.shape_cast %97 : vector<1x64x128xf32> to vector<64x128xf32>
    %99 = arith.truncf %96 : vector<64x128xf32> to vector<64x128xbf16>
    %c2_111 = arith.constant 2 : index
    %c0_112 = arith.constant 0 : index
    %c0_113 = arith.constant 0 : index
    %c0_114 = arith.constant 0 : index
    %100 = vector.load %arg5[%c2_111, %c0_112, %c0_113, %c0_114] : memref<3x3x128x128xbf16, #tpu.memory_space<vmem>>, vector<1x1x128x128xbf16>
    %101 = vector.shape_cast %100 : vector<1x1x128x128xbf16> to vector<128x128xbf16>
    %cst_115 = arith.constant dense<0.000000e+00> : vector<64x128xf32>
    %102 = tpu.matmul %99, %101, %cst_115 {dimension_numbers = #tpu.dot_dimension_numbers<[1], [0], [0], [1], [0, 0, 1, 1], [], []>} : vector<64x128xbf16>, vector<128x128xbf16>, vector<64x128xf32> -> vector<64x128xf32>
    %103 = arith.addf %98, %102 : vector<64x128xf32>
    %c0_116 = arith.constant 0 : index
    %c0_117 = arith.constant 0 : index
    %c0_118 = arith.constant 0 : index
    %104 = vector.load %arg8[%c0_116, %c0_117, %c0_118] : memref<1x64x128xf32, #tpu.memory_space<vmem>>, vector<1x64x128xf32>
    %105 = vector.shape_cast %104 : vector<1x64x128xf32> to vector<64x128xf32>
    %106 = vector.shape_cast %103 : vector<64x128xf32> to vector<1x64x128xf32>
    tpu.vector_store %arg8[%c0_116, %c0_117, %c0_118], %106 {strides = array<i32>} : memref<1x64x128xf32, #tpu.memory_space<vmem>>, vector<1x64x128xf32>,
    %c2_119 = arith.constant 2 : index
    %c1_120 = arith.constant 1 : index
    %c0_121 = arith.constant 0 : index
    %107 = vector.load %arg9[%c2_119, %c1_120, %c0_121] : memref<10x10x128xf32, #tpu.memory_space<vmem>>, vector<8x8x128xf32>
    %108 = vector.shape_cast %107 : vector<8x8x128xf32> to vector<64x128xf32>
    %c0_122 = arith.constant 0 : index
    %c0_123 = arith.constant 0 : index
    %c0_124 = arith.constant 0 : index
    %109 = vector.load %arg8[%c0_122, %c0_123, %c0_124] : memref<1x64x128xf32, #tpu.memory_space<vmem>>, vector<1x64x128xf32>
    %110 = vector.shape_cast %109 : vector<1x64x128xf32> to vector<64x128xf32>
    %111 = arith.truncf %108 : vector<64x128xf32> to vector<64x128xbf16>
    %c2_125 = arith.constant 2 : index
    %c1_126 = arith.constant 1 : index
    %c0_127 = arith.constant 0 : index
    %c0_128 = arith.constant 0 : index
    %112 = vector.load %arg5[%c2_125, %c1_126, %c0_127, %c0_128] : memref<3x3x128x128xbf16, #tpu.memory_space<vmem>>, vector<1x1x128x128xbf16>
    %113 = vector.shape_cast %112 : vector<1x1x128x128xbf16> to vector<128x128xbf16>
    %cst_129 = arith.constant dense<0.000000e+00> : vector<64x128xf32>
    %114 = tpu.matmul %111, %113, %cst_129 {dimension_numbers = #tpu.dot_dimension_numbers<[1], [0], [0], [1], [0, 0, 1, 1], [], []>} : vector<64x128xbf16>, vector<128x128xbf16>, vector<64x128xf32> -> vector<64x128xf32>
    %115 = arith.addf %110, %114 : vector<64x128xf32>
    %c0_130 = arith.constant 0 : index
    %c0_131 = arith.constant 0 : index
    %c0_132 = arith.constant 0 : index
    %116 = vector.load %arg8[%c0_130, %c0_131, %c0_132] : memref<1x64x128xf32, #tpu.memory_space<vmem>>, vector<1x64x128xf32>
    %117 = vector.shape_cast %116 : vector<1x64x128xf32> to vector<64x128xf32>
    %118 = vector.shape_cast %115 : vector<64x128xf32> to vector<1x64x128xf32>
    tpu.vector_store %arg8[%c0_130, %c0_131, %c0_132], %118 {strides = array<i32>} : memref<1x64x128xf32, #tpu.memory_space<vmem>>, vector<1x64x128xf32>,
    %c2_133 = arith.constant 2 : index
    %c2_134 = arith.constant 2 : index
    %c0_135 = arith.constant 0 : index
    %119 = vector.load %arg9[%c2_133, %c2_134, %c0_135] : memref<10x10x128xf32, #tpu.memory_space<vmem>>, vector<8x8x128xf32>
    %120 = vector.shape_cast %119 : vector<8x8x128xf32> to vector<64x128xf32>
    %c0_136 = arith.constant 0 : index
    %c0_137 = arith.constant 0 : index
    %c0_138 = arith.constant 0 : index
    %121 = vector.load %arg8[%c0_136, %c0_137, %c0_138] : memref<1x64x128xf32, #tpu.memory_space<vmem>>, vector<1x64x128xf32>
    %122 = vector.shape_cast %121 : vector<1x64x128xf32> to vector<64x128xf32>
    %123 = arith.truncf %120 : vector<64x128xf32> to vector<64x128xbf16>
    %c2_139 = arith.constant 2 : index
    %c2_140 = arith.constant 2 : index
    %c0_141 = arith.constant 0 : index
    %c0_142 = arith.constant 0 : index
    %124 = vector.load %arg5[%c2_139, %c2_140, %c0_141, %c0_142] : memref<3x3x128x128xbf16, #tpu.memory_space<vmem>>, vector<1x1x128x128xbf16>
    %125 = vector.shape_cast %124 : vector<1x1x128x128xbf16> to vector<128x128xbf16>
    %cst_143 = arith.constant dense<0.000000e+00> : vector<64x128xf32>
    %126 = tpu.matmul %123, %125, %cst_143 {dimension_numbers = #tpu.dot_dimension_numbers<[1], [0], [0], [1], [0, 0, 1, 1], [], []>} : vector<64x128xbf16>, vector<128x128xbf16>, vector<64x128xf32> -> vector<64x128xf32>
    %127 = arith.addf %122, %126 : vector<64x128xf32>
    %c0_144 = arith.constant 0 : index
    %c0_145 = arith.constant 0 : index
    %c0_146 = arith.constant 0 : index
    %128 = vector.load %arg8[%c0_144, %c0_145, %c0_146] : memref<1x64x128xf32, #tpu.memory_space<vmem>>, vector<1x64x128xf32>
    %129 = vector.shape_cast %128 : vector<1x64x128xf32> to vector<64x128xf32>
    %130 = vector.shape_cast %127 : vector<64x128xf32> to vector<1x64x128xf32>
    tpu.vector_store %arg8[%c0_144, %c0_145, %c0_146], %130 {strides = array<i32>} : memref<1x64x128xf32, #tpu.memory_space<vmem>>, vector<1x64x128xf32>,
    return
  }
  func.func @transform_0(%arg0: i32, %arg1: i32) -> (i32, i32, i32, i32) {
    %c0_i32 = arith.constant 0 : i32
    %c0_i32_0 = arith.constant 0 : i32
    %c0_i32_1 = arith.constant 0 : i32
    %c0_i32_2 = arith.constant 0 : i32
    return %arg0, %c0_i32, %c0_i32_0, %c0_i32_1 : i32, i32, i32, i32
  }
  func.func @transform_1(%arg0: i32, %arg1: i32) -> (i32, i32) {
    %c0_i32 = arith.constant 0 : i32
    %c0_i32_0 = arith.constant 0 : i32
    %c0_i32_1 = arith.constant 0 : i32
    return %c0_i32, %c0_i32_0 : i32, i32
  }
  func.func @transform_2(%arg0: i32, %arg1: i32) -> (i32, i32) {
    %c0_i32 = arith.constant 0 : i32
    %c0_i32_0 = arith.constant 0 : i32
    %c0_i32_1 = arith.constant 0 : i32
    return %c0_i32, %c0_i32_0 : i32, i32
  }
  func.func @transform_3(%arg0: i32, %arg1: i32) -> (i32, i32, i32, i32) {
    %c0_i32 = arith.constant 0 : i32
    %c0_i32_0 = arith.constant 0 : i32
    %c0_i32_1 = arith.constant 0 : i32
    %c0_i32_2 = arith.constant 0 : i32
    return %c0_i32, %c0_i32_0, %c0_i32_1, %arg1 : i32, i32, i32, i32
  }
  func.func @transform_4(%arg0: i32, %arg1: i32) -> (i32, i32, i32) {
    %c0_i32 = arith.constant 0 : i32
    %c0_i32_0 = arith.constant 0 : i32
    %c0_i32_1 = arith.constant 0 : i32
    return %arg0, %c0_i32, %c0_i32_0 : i32, i32, i32
  }
  func.func @transform_5(%arg0: i32, %arg1: i32) -> (i32, i32) {
    %c0_i32 = arith.constant 0 : i32
    %c0_i32_0 = arith.constant 0 : i32
    return %c0_i32, %arg1 : i32, i32
  }
  func.func @transform_6(%arg0: i32, %arg1: i32) -> (i32, i32, i32) {
    %c0_i32 = arith.constant 0 : i32
    %c0_i32_0 = arith.constant 0 : i32
    return %arg0, %c0_i32, %arg1 : i32, i32, i32
  }
}

</mosaic_0001>

<llo_original>
// kernel: residual_block_forward.5
$region0: #{residual_block_forward.5}
  #allocation0 [shape = 'u32[]', space=smem, size = 0x4, offset = 0x4, fixed_abs, tag = 'smem constant byte address 0x4 - core index']
  #allocation1 [shape = 'u32[72,128]{1,0:T(1,128)}', space=vmem, size = 0x9000, scoped, tag = 'internal scratch']
  %s0 = inlined_call_operand.vmem [shape: f32[512,128], index: 0, kind: input, shape index: {}]
  %s1 = inlined_call_operand.vmem [shape: f32[2,128], index: 1, kind: output, shape index: {}]
  %s2 = sld [smem:[#allocation0]]
  $region18: #{residual_block_forward.5} parent=0
    _
  %s4 = ssub.s32 1, %s2
  %s5 = scalar_select 0, %s4, %s2
  // Predicated region
  $region2: #{residual_block_forward.5} parent=0 // pred_check
    _
  $region3: #{residual_block_forward.5} parent=0 // pred_check_branch
    %7 = sbr.rel (0) target = $region5
  $region4: #{residual_block_forward.5} parent=0 // pred_region
    _
  $region5: #{residual_block_forward.5} parent=0 // pred_fallthru
    _
  %p8 = scmp.eq.s32.totalorder 0, 0
  // Predicated region
  $region6: #{residual_block_forward.5} parent=0 // pred_check
    %p9 = pneg %p8
  $region7: #{residual_block_forward.5} parent=0 // pred_check_branch
    %11 = sbr.rel (%p9) target = $region9
  $region8: #{residual_block_forward.5} parent=0 // pred_region
    %12 = vst [vmem:[%s1] sm:$0x3] 0.0
  $region9: #{residual_block_forward.5} parent=0 // pred_fallthru
    _
  %v13 = vld [vmem:[%s0] sm:$0xff]
  %v14 = vld [vmem:[%s0 + $0x8] sm:$0xff]
  %v15 = vld [vmem:[%s0 + $0x10] sm:$0xff]
  %v16 = vld [vmem:[%s0 + $0x18] sm:$0xff]
  %v17 = vld [vmem:[%s0 + $0x20] sm:$0xff]
  %v18 = vld [vmem:[%s0 + $0x28] sm:$0xff]
  %v19 = vld [vmem:[%s0 + $0x30] sm:$0xff]
  %v20 = vld [vmem:[%s0 + $0x38] sm:$0xff]
  %v21 = vld [vmem:[%s0 + $0x40] sm:$0xff]
  %v22 = vld [vmem:[%s0 + $0x48] sm:$0xff]
  %v23 = vld [vmem:[%s0 + $0x50] sm:$0xff]
  %v24 = vld [vmem:[%s0 + $0x58] sm:$0xff]
  %v25 = vld [vmem:[%s0 + $0x60] sm:$0xff]
  %v26 = vld [vmem:[%s0 + $0x68] sm:$0xff]
  %v27 = vld [vmem:[%s0 + $0x70] sm:$0xff]
  %v28 = vld [vmem:[%s0 + $0x78] sm:$0xff]
  %v29 = vld [vmem:[%s0 + $0x80] sm:$0xff]
  %v30 = vld [vmem:[%s0 + $0x88] sm:$0xff]
  %v31 = vld [vmem:[%s0 + $0x90] sm:$0xff]
  %v32 = vld [vmem:[%s0 + $0x98] sm:$0xff]
  %v33 = vld [vmem:[%s0 + $0xa0] sm:$0xff]
  %v34 = vld [vmem:[%s0 + $0xa8] sm:$0xff]
  %v35 = vld [vmem:[%s0 + $0xb0] sm:$0xff]
  %v36 = vld [vmem:[%s0 + $0xb8] sm:$0xff]
  %v37 = vld [vmem:[%s0 + $0xc0] sm:$0xff]
  %v38 = vld [vmem:[%s0 + $0xc8] sm:$0xff]
  %v39 = vld [vmem:[%s0 + $0xd0] sm:$0xff]
  %v40 = vld [vmem:[%s0 + $0xd8] sm:$0xff]
  %v41 = vld [vmem:[%s0 + $0xe0] sm:$0xff]
  %v42 = vld [vmem:[%s0 + $0xe8] sm:$0xff]
  %v43 = vld [vmem:[%s0 + $0xf0] sm:$0xff]
  %v44 = vld [vmem:[%s0 + $0xf8] sm:$0xff]
  %v45 = vld [vmem:[%s0 + $0x100] sm:$0xff]
  %v46 = vld [vmem:[%s0 + $0x108] sm:$0xff]
  %v47 = vld [vmem:[%s0 + $0x110] sm:$0xff]
  %v48 = vld [vmem:[%s0 + $0x118] sm:$0xff]
  %v49 = vld [vmem:[%s0 + $0x120] sm:$0xff]
  %v50 = vld [vmem:[%s0 + $0x128] sm:$0xff]
  %v51 = vld [vmem:[%s0 + $0x130] sm:$0xff]
  %v52 = vld [vmem:[%s0 + $0x138] sm:$0xff]
  %v53 = vld [vmem:[%s0 + $0x140] sm:$0xff]
  %v54 = vld [vmem:[%s0 + $0x148] sm:$0xff]
  %v55 = vld [vmem:[%s0 + $0x150] sm:$0xff]
  %v56 = vld [vmem:[%s0 + $0x158] sm:$0xff]
  %v57 = vld [vmem:[%s0 + $0x160] sm:$0xff]
  %v58 = vld [vmem:[%s0 + $0x168] sm:$0xff]
  %v59 = vld [vmem:[%s0 + $0x170] sm:$0xff]
  %v60 = vld [vmem:[%s0 + $0x178] sm:$0xff]
  %v61 = vld [vmem:[%s0 + $0x180] sm:$0xff]
  %v62 = vld [vmem:[%s0 + $0x188] sm:$0xff]
  %v63 = vld [vmem:[%s0 + $0x190] sm:$0xff]
  %v64 = vld [vmem:[%s0 + $0x198] sm:$0xff]
  %v65 = vld [vmem:[%s0 + $0x1a0] sm:$0xff]
  %v66 = vld [vmem:[%s0 + $0x1a8] sm:$0xff]
  %v67 = vld [vmem:[%s0 + $0x1b0] sm:$0xff]
  %v68 = vld [vmem:[%s0 + $0x1b8] sm:$0xff]
  %v69 = vld [vmem:[%s0 + $0x1c0] sm:$0xff]
  %v70 = vld [vmem:[%s0 + $0x1c8] sm:$0xff]
  %v71 = vld [vmem:[%s0 + $0x1d0] sm:$0xff]
  %v72 = vld [vmem:[%s0 + $0x1d8] sm:$0xff]
  %v73 = vld [vmem:[%s0 + $0x1e0] sm:$0xff]
  %v74 = vld [vmem:[%s0 + $0x1e8] sm:$0xff]
  %v75 = vld [vmem:[%s0 + $0x1f0] sm:$0xff]
  %v76 = vld [vmem:[%s0 + $0x1f8] sm:$0xff]
  %v77 = vadd.f32 %v13, %v14
  %v78 = vadd.f32 %v77, %v15
  %v79 = vadd.f32 %v78, %v16
  %v80 = vadd.f32 %v79, %v17
  %v81 = vadd.f32 %v80, %v18
  %v82 = vadd.f32 %v81, %v19
  %v83 = vadd.f32 %v82, %v20
  %v84 = vadd.f32 %v83, %v21
  %v85 = vadd.f32 %v84, %v22
  %v86 = vadd.f32 %v85, %v23
  %v87 = vadd.f32 %v86, %v24
  %v88 = vadd.f32 %v87, %v25
  %v89 = vadd.f32 %v88, %v26
  %v90 = vadd.f32 %v89, %v27
  %v91 = vadd.f32 %v90, %v28
  %v92 = vadd.f32 %v91, %v29
  %v93 = vadd.f32 %v92, %v30
  %v94 = vadd.f32 %v93, %v31
  %v95 = vadd.f32 %v94, %v32
  %v96 = vadd.f32 %v95, %v33
  %v97 = vadd.f32 %v96, %v34
  %v98 = vadd.f32 %v97, %v35
  %v99 = vadd.f32 %v98, %v36
  %v100 = vadd.f32 %v99, %v37
  %v101 = vadd.f32 %v100, %v38
  %v102 = vadd.f32 %v101, %v39
  %v103 = vadd.f32 %v102, %v40
  %v104 = vadd.f32 %v103, %v41
  %v105 = vadd.f32 %v104, %v42
  %v106 = vadd.f32 %v105, %v43
  %v107 = vadd.f32 %v106, %v44
  %v108 = vadd.f32 %v107, %v45
  %v109 = vadd.f32 %v108, %v46
  %v110 = vadd.f32 %v109, %v47
  %v111 = vadd.f32 %v110, %v48
  %v112 = vadd.f32 %v111, %v49
  %v113 = vadd.f32 %v112, %v50
  %v114 = vadd.f32 %v113, %v51
  %v115 = vadd.f32 %v114, %v52
  %v116 = vadd.f32 %v115, %v53
  %v117 = vadd.f32 %v116, %v54
  %v118 = vadd.f32 %v117, %v55
  %v119 = vadd.f32 %v118, %v56
  %v120 = vadd.f32 %v119, %v57
  %v121 = vadd.f32 %v120, %v58
  %v122 = vadd.f32 %v121, %v59
  %v123 = vadd.f32 %v122, %v60
  %v124 = vadd.f32 %v123, %v61
  %v125 = vadd.f32 %v124, %v62
  %v126 = vadd.f32 %v125, %v63
  %v127 = vadd.f32 %v126, %v64
  %v128 = vadd.f32 %v127, %v65
  %v129 = vadd.f32 %v128, %v66
  %v130 = vadd.f32 %v129, %v67
  %v131 = vadd.f32 %v130, %v68
  %v132 = vadd.f32 %v131, %v69
  %v133 = vadd.f32 %v132, %v70
  %v134 = vadd.f32 %v133, %v71
  %v135 = vadd.f32 %v134, %v72
  %v136 = vadd.f32 %v135, %v73
  %v137 = vadd.f32 %v136, %v74
  %v138 = vadd.f32 %v137, %v75
  %v139 = vadd.f32 %v138, %v76
  %v140 = vrot.slane %v139, 4
  %v141 = vadd.f32 %v139, %v140
  %v142 = vrot.slane %v141, 2
  %v143 = vadd.f32 %v141, %v142
  %v144 = vrot.slane %v143, 1
  %v145 = vadd.f32 %v143, %v144
  %v146 = vmul.f32 %v13, %v13
  %v147 = vmul.f32 %v14, %v14
  %v148 = vmul.f32 %v15, %v15
  %v149 = vmul.f32 %v16, %v16
  %v150 = vmul.f32 %v17, %v17
  %v151 = vmul.f32 %v18, %v18
  %v152 = vmul.f32 %v19, %v19
  %v153 = vmul.f32 %v20, %v20
  %v154 = vmul.f32 %v21, %v21
  %v155 = vmul.f32 %v22, %v22
  %v156 = vmul.f32 %v23, %v23
  %v157 = vmul.f32 %v24, %v24
  %v158 = vmul.f32 %v25, %v25
  %v159 = vmul.f32 %v26, %v26
  %v160 = vmul.f32 %v27, %v27
  %v161 = vmul.f32 %v28, %v28
  %v162 = vmul.f32 %v29, %v29
  %v163 = vmul.f32 %v30, %v30
  %v164 = vmul.f32 %v31, %v31
  %v165 = vmul.f32 %v32, %v32
  %v166 = vmul.f32 %v33, %v33
  %v167 = vmul.f32 %v34, %v34
  %v168 = vmul.f32 %v35, %v35
  %v169 = vmul.f32 %v36, %v36
  %v170 = vmul.f32 %v37, %v37
  %v171 = vmul.f32 %v38, %v38
  %v172 = vmul.f32 %v39, %v39
  %v173 = vmul.f32 %v40, %v40
  %v174 = vmul.f32 %v41, %v41
  %v175 = vmul.f32 %v42, %v42
  %v176 = vmul.f32 %v43, %v43
  %v177 = vmul.f32 %v44, %v44
  %v178 = vmul.f32 %v45, %v45
  %v179 = vmul.f32 %v46, %v46
  %v180 = vmul.f32 %v47, %v47
  %v181 = vmul.f32 %v48, %v48
  %v182 = vmul.f32 %v49, %v49
  %v183 = vmul.f32 %v50, %v50
  %v184 = vmul.f32 %v51, %v51
  %v185 = vmul.f32 %v52, %v52
  %v186 = vmul.f32 %v53, %v53
  %v187 = vmul.f32 %v54, %v54
  %v188 = vmul.f32 %v55, %v55
  %v189 = vmul.f32 %v56, %v56
  %v190 = vmul.f32 %v57, %v57
  %v191 = vmul.f32 %v58, %v58
  %v192 = vmul.f32 %v59, %v59
  %v193 = vmul.f32 %v60, %v60
  %v194 = vmul.f32 %v61, %v61
  %v195 = vmul.f32 %v62, %v62
  %v196 = vmul.f32 %v63, %v63
  %v197 = vmul.f32 %v64, %v64
  %v198 = vmul.f32 %v65, %v65
  %v199 = vmul.f32 %v66, %v66
  %v200 = vmul.f32 %v67, %v67
  %v201 = vmul.f32 %v68, %v68
  %v202 = vmul.f32 %v69, %v69
  %v203 = vmul.f32 %v70, %v70
  %v204 = vmul.f32 %v71, %v71
  %v205 = vmul.f32 %v72, %v72
  %v206 = vmul.f32 %v73, %v73
  %v207 = vmul.f32 %v74, %v74
  %v208 = vmul.f32 %v75, %v75
  %v209 = vmul.f32 %v76, %v76
  %v210 = vadd.f32 %v146, %v147
  %v211 = vadd.f32 %v210, %v148
  %v212 = vadd.f32 %v211, %v149
  %v213 = vadd.f32 %v212, %v150
  %v214 = vadd.f32 %v213, %v151
  %v215 = vadd.f32 %v214, %v152
  %v216 = vadd.f32 %v215, %v153
  %v217 = vadd.f32 %v216, %v154
  %v218 = vadd.f32 %v217, %v155
  %v219 = vadd.f32 %v218, %v156
  %v220 = vadd.f32 %v219, %v157
  %v221 = vadd.f32 %v220, %v158
  %v222 = vadd.f32 %v221, %v159
  %v223 = vadd.f32 %v222, %v160
  %v224 = vadd.f32 %v223, %v161
  %v225 = vadd.f32 %v224, %v162
  %v226 = vadd.f32 %v225, %v163
  %v227 = vadd.f32 %v226, %v164
  %v228 = vadd.f32 %v227, %v165
  %v229 = vadd.f32 %v228, %v166
  %v230 = vadd.f32 %v229, %v167
  %v231 = vadd.f32 %v230, %v168
  %v232 = vadd.f32 %v231, %v169
  %v233 = vadd.f32 %v232, %v170
  %v234 = vadd.f32 %v233, %v171
  %v235 = vadd.f32 %v234, %v172
  %v236 = vadd.f32 %v235, %v173
  %v237 = vadd.f32 %v236, %v174
  %v238 = vadd.f32 %v237, %v175
  %v239 = vadd.f32 %v238, %v176
  %v240 = vadd.f32 %v239, %v177
  %v241 = vadd.f32 %v240, %v178
  %v242 = vadd.f32 %v241, %v179
  %v243 = vadd.f32 %v242, %v180
  %v244 = vadd.f32 %v243, %v181
  %v245 = vadd.f32 %v244, %v182
  %v246 = vadd.f32 %v245, %v183
  %v247 = vadd.f32 %v246, %v184
  %v248 = vadd.f32 %v247, %v185
  %v249 = vadd.f32 %v248, %v186
  %v250 = vadd.f32 %v249, %v187
  %v251 = vadd.f32 %v250, %v188
  %v252 = vadd.f32 %v251, %v189
  %v253 = vadd.f32 %v252, %v190
  %v254 = vadd.f32 %v253, %v191
  %v255 = vadd.f32 %v254, %v192
  %v256 = vadd.f32 %v255, %v193
  %v257 = vadd.f32 %v256, %v194
  %v258 = vadd.f32 %v257, %v195
  %v259 = vadd.f32 %v258, %v196
  %v260 = vadd.f32 %v259, %v197
  %v261 = vadd.f32 %v260, %v198
  %v262 = vadd.f32 %v261, %v199
  %v263 = vadd.f32 %v262, %v200
  %v264 = vadd.f32 %v263, %v201
  %v265 = vadd.f32 %v264, %v202
  %v266 = vadd.f32 %v265, %v203
  %v267 = vadd.f32 %v266, %v204
  %v268 = vadd.f32 %v267, %v205
  %v269 = vadd.f32 %v268, %v206
  %v270 = vadd.f32 %v269, %v207
  %v271 = vadd.f32 %v270, %v208
  %v272 = vadd.f32 %v271, %v209
  %v273 = vrot.slane %v272, 4
  %v274 = vadd.f32 %v272, %v273
  %v275 = vrot.slane %v274, 2
  %v276 = vadd.f32 %v274, %v275
  %v277 = vrot.slane %v276, 1
  %v278 = vadd.f32 %v276, %v277
  %v279 = vld [vmem:[%s1] sm:$0x3]
  %vm280 = vcmask 1040384
  %v281 = vsel %vm280, %v145, %v278
  %v282 = vadd.f32 %v279, %v281
  %283 = vst [vmem:[%s1] sm:$0x3] %v282
  // Predicated region
  $region10: #{residual_block_forward.5} parent=0 // pred_check
    _
  $region11: #{residual_block_forward.5} parent=0 // pred_check_branch
    %285 = sbr.rel (0) target = $region13
  $region12: #{residual_block_forward.5} parent=0 // pred_region
    _
  $region13: #{residual_block_forward.5} parent=0 // pred_fallthru
    _
  // Predicated region
  $region14: #{residual_block_forward.5} parent=0 // pred_check
    _
  $region15: #{residual_block_forward.5} parent=0 // pred_check_branch
    %287 = sbr.rel (0) target = $region17
  $region16: #{residual_block_forward.5} parent=0 // pred_region
    _
  $region17: #{residual_block_forward.5} parent=0 // pred_fallthru
    _

// kernel: residual_block_forward.6
$region0: #{residual_block_forward.6}
  #allocation0 [shape = 'u32[]', space=smem, size = 0x4, offset = 0x4, fixed_abs, tag = 'smem constant byte address 0x4 - core index']
  #allocation1 [shape = 'u32[72,128]{1,0:T(1,128)}', space=vmem, size = 0x9000, scoped, tag = 'internal scratch']
  %s0 = inlined_call_operand.vmem [shape: f32[512,128], index: 0, kind: input, shape index: {}]
  %s1 = inlined_call_operand.vmem [shape: f32[1,128], index: 1, kind: input, shape index: {}]
  %s2 = inlined_call_operand.vmem [shape: f32[1,128], index: 2, kind: input, shape index: {}]
  %s3 = inlined_call_operand.vmem [shape: bf16[512,128], index: 3, kind: output, shape index: {}]
  %s4 = sld [smem:[#allocation0]]
  $region22: #{residual_block_forward.6} parent=0
    _
  %s6 = ssub.s32 1, %s4
  %s7 = scalar_select 0, %s6, %s4
  // Predicated region
  $region2: #{residual_block_forward.6} parent=0 // pred_check
    _
  $region3: #{residual_block_forward.6} parent=0 // pred_check_branch
    %9 = sbr.rel (0) target = $region5
  $region4: #{residual_block_forward.6} parent=0 // pred_region
    _
  $region5: #{residual_block_forward.6} parent=0 // pred_fallthru
    _
  // Predicated region
  $region6: #{residual_block_forward.6} parent=0 // pred_check
    _
  $region7: #{residual_block_forward.6} parent=0 // pred_check_branch
    %11 = sbr.rel (0) target = $region9
  $region8: #{residual_block_forward.6} parent=0 // pred_region
    _
  $region9: #{residual_block_forward.6} parent=0 // pred_fallthru
    _
  // Predicated region
  $region10: #{residual_block_forward.6} parent=0 // pred_check
    _
  $region11: #{residual_block_forward.6} parent=0 // pred_check_branch
    %13 = sbr.rel (0) target = $region13
  $region12: #{residual_block_forward.6} parent=0 // pred_region
    _
  $region13: #{residual_block_forward.6} parent=0 // pred_fallthru
    _
  %v14 = vld [vmem:[%s0] sm:$0xff]
  %v15 = vld [vmem:[%s0 + $0x8] sm:$0xff]
  %v16 = vld [vmem:[%s0 + $0x10] sm:$0xff]
  %v17 = vld [vmem:[%s0 + $0x18] sm:$0xff]
  %v18 = vld [vmem:[%s0 + $0x20] sm:$0xff]
  %v19 = vld [vmem:[%s0 + $0x28] sm:$0xff]
  %v20 = vld [vmem:[%s0 + $0x30] sm:$0xff]
  %v21 = vld [vmem:[%s0 + $0x38] sm:$0xff]
  %v22 = vld [vmem:[%s0 + $0x40] sm:$0xff]
  %v23 = vld [vmem:[%s0 + $0x48] sm:$0xff]
  %v24 = vld [vmem:[%s0 + $0x50] sm:$0xff]
  %v25 = vld [vmem:[%s0 + $0x58] sm:$0xff]
  %v26 = vld [vmem:[%s0 + $0x60] sm:$0xff]
  %v27 = vld [vmem:[%s0 + $0x68] sm:$0xff]
  %v28 = vld [vmem:[%s0 + $0x70] sm:$0xff]
  %v29 = vld [vmem:[%s0 + $0x78] sm:$0xff]
  %v30 = vld [vmem:[%s0 + $0x80] sm:$0xff]
  %v31 = vld [vmem:[%s0 + $0x88] sm:$0xff]
  %v32 = vld [vmem:[%s0 + $0x90] sm:$0xff]
  %v33 = vld [vmem:[%s0 + $0x98] sm:$0xff]
  %v34 = vld [vmem:[%s0 + $0xa0] sm:$0xff]
  %v35 = vld [vmem:[%s0 + $0xa8] sm:$0xff]
  %v36 = vld [vmem:[%s0 + $0xb0] sm:$0xff]
  %v37 = vld [vmem:[%s0 + $0xb8] sm:$0xff]
  %v38 = vld [vmem:[%s0 + $0xc0] sm:$0xff]
  %v39 = vld [vmem:[%s0 + $0xc8] sm:$0xff]
  %v40 = vld [vmem:[%s0 + $0xd0] sm:$0xff]
  %v41 = vld [vmem:[%s0 + $0xd8] sm:$0xff]
  %v42 = vld [vmem:[%s0 + $0xe0] sm:$0xff]
  %v43 = vld [vmem:[%s0 + $0xe8] sm:$0xff]
  %v44 = vld [vmem:[%s0 + $0xf0] sm:$0xff]
  %v45 = vld [vmem:[%s0 + $0xf8] sm:$0xff]
  %v46 = vld [vmem:[%s0 + $0x100] sm:$0xff]
  %v47 = vld [vmem:[%s0 + $0x108] sm:$0xff]
  %v48 = vld [vmem:[%s0 + $0x110] sm:$0xff]
  %v49 = vld [vmem:[%s0 + $0x118] sm:$0xff]
  %v50 = vld [vmem:[%s0 + $0x120] sm:$0xff]
  %v51 = vld [vmem:[%s0 + $0x128] sm:$0xff]
  %v52 = vld [vmem:[%s0 + $0x130] sm:$0xff]
  %v53 = vld [vmem:[%s0 + $0x138] sm:$0xff]
  %v54 = vld [vmem:[%s0 + $0x140] sm:$0xff]
  %v55 = vld [vmem:[%s0 + $0x148] sm:$0xff]
  %v56 = vld [vmem:[%s0 + $0x150] sm:$0xff]
  %v57 = vld [vmem:[%s0 + $0x158] sm:$0xff]
  %v58 = vld [vmem:[%s0 + $0x160] sm:$0xff]
  %v59 = vld [vmem:[%s0 + $0x168] sm:$0xff]
  %v60 = vld [vmem:[%s0 + $0x170] sm:$0xff]
  %v61 = vld [vmem:[%s0 + $0x178] sm:$0xff]
  %v62 = vld [vmem:[%s0 + $0x180] sm:$0xff]
  %v63 = vld [vmem:[%s0 + $0x188] sm:$0xff]
  %v64 = vld [vmem:[%s0 + $0x190] sm:$0xff]
  %v65 = vld [vmem:[%s0 + $0x198] sm:$0xff]
  %v66 = vld [vmem:[%s0 + $0x1a0] sm:$0xff]
  %v67 = vld [vmem:[%s0 + $0x1a8] sm:$0xff]
  %v68 = vld [vmem:[%s0 + $0x1b0] sm:$0xff]
  %v69 = vld [vmem:[%s0 + $0x1b8] sm:$0xff]
  %v70 = vld [vmem:[%s0 + $0x1c0] sm:$0xff]
  %v71 = vld [vmem:[%s0 + $0x1c8] sm:$0xff]
  %v72 = vld [vmem:[%s0 + $0x1d0] sm:$0xff]
  %v73 = vld [vmem:[%s0 + $0x1d8] sm:$0xff]
  %v74 = vld [vmem:[%s0 + $0x1e0] sm:$0xff]
  %v75 = vld [vmem:[%s0 + $0x1e8] sm:$0xff]
  %v76 = vld [vmem:[%s0 + $0x1f0] sm:$0xff]
  %v77 = vld [vmem:[%s0 + $0x1f8] sm:$0xff]
  %v78 = vld [vmem:[%s1] sm:$0x1]
  %v80 = vperm.slane %v78, 0
  %v82 = vmul.f32 %v14, %v80
  %v83 = vmul.f32 %v15, %v80
  %v84 = vmul.f32 %v16, %v80
  %v85 = vmul.f32 %v17, %v80
  %v86 = vmul.f32 %v18, %v80
  %v87 = vmul.f32 %v19, %v80
  %v88 = vmul.f32 %v20, %v80
  %v89 = vmul.f32 %v21, %v80
  %v90 = vmul.f32 %v22, %v80
  %v91 = vmul.f32 %v23, %v80
  %v92 = vmul.f32 %v24, %v80
  %v93 = vmul.f32 %v25, %v80
  %v94 = vmul.f32 %v26, %v80
  %v95 = vmul.f32 %v27, %v80
  %v96 = vmul.f32 %v28, %v80
  %v97 = vmul.f32 %v29, %v80
  %v98 = vmul.f32 %v30, %v80
  %v99 = vmul.f32 %v31, %v80
  %v100 = vmul.f32 %v32, %v80
  %v101 = vmul.f32 %v33, %v80
  %v102 = vmul.f32 %v34, %v80
  %v103 = vmul.f32 %v35, %v80
  %v104 = vmul.f32 %v36, %v80
  %v105 = vmul.f32 %v37, %v80
  %v106 = vmul.f32 %v38, %v80
  %v107 = vmul.f32 %v39, %v80
  %v108 = vmul.f32 %v40, %v80
  %v109 = vmul.f32 %v41, %v80
  %v110 = vmul.f32 %v42, %v80
  %v111 = vmul.f32 %v43, %v80
  %v112 = vmul.f32 %v44, %v80
  %v113 = vmul.f32 %v45, %v80
  %v114 = vmul.f32 %v46, %v80
  %v115 = vmul.f32 %v47, %v80
  %v116 = vmul.f32 %v48, %v80
  %v117 = vmul.f32 %v49, %v80
  %v118 = vmul.f32 %v50, %v80
  %v119 = vmul.f32 %v51, %v80
  %v120 = vmul.f32 %v52, %v80
  %v121 = vmul.f32 %v53, %v80
  %v122 = vmul.f32 %v54, %v80
  %v123 = vmul.f32 %v55, %v80
  %v124 = vmul.f32 %v56, %v80
  %v125 = vmul.f32 %v57, %v80
  %v126 = vmul.f32 %v58, %v80
  %v127 = vmul.f32 %v59, %v80
  %v128 = vmul.f32 %v60, %v80
  %v129 = vmul.f32 %v61, %v80
  %v130 = vmul.f32 %v62, %v80
  %v131 = vmul.f32 %v63, %v80
  %v132 = vmul.f32 %v64, %v80
  %v133 = vmul.f32 %v65, %v80
  %v134 = vmul.f32 %v66, %v80
  %v135 = vmul.f32 %v67, %v80
  %v136 = vmul.f32 %v68, %v80
  %v137 = vmul.f32 %v69, %v80
  %v138 = vmul.f32 %v70, %v80
  %v139 = vmul.f32 %v71, %v80
  %v140 = vmul.f32 %v72, %v80
  %v141 = vmul.f32 %v73, %v80
  %v142 = vmul.f32 %v74, %v80
  %v143 = vmul.f32 %v75, %v80
  %v144 = vmul.f32 %v76, %v80
  %v145 = vmul.f32 %v77, %v80
  %v146 = vld [vmem:[%s2] sm:$0x1]
  %v148 = vperm.slane %v146, 0
  %v150 = vadd.f32 %v82, %v148
  %v151 = vadd.f32 %v83, %v148
  %v152 = vadd.f32 %v84, %v148
  %v153 = vadd.f32 %v85, %v148
  %v154 = vadd.f32 %v86, %v148
  %v155 = vadd.f32 %v87, %v148
  %v156 = vadd.f32 %v88, %v148
  %v157 = vadd.f32 %v89, %v148
  %v158 = vadd.f32 %v90, %v148
  %v159 = vadd.f32 %v91, %v148
  %v160 = vadd.f32 %v92, %v148
  %v161 = vadd.f32 %v93, %v148
  %v162 = vadd.f32 %v94, %v148
  %v163 = vadd.f32 %v95, %v148
  %v164 = vadd.f32 %v96, %v148
  %v165 = vadd.f32 %v97, %v148
  %v166 = vadd.f32 %v98, %v148
  %v167 = vadd.f32 %v99, %v148
  %v168 = vadd.f32 %v100, %v148
  %v169 = vadd.f32 %v101, %v148
  %v170 = vadd.f32 %v102, %v148
  %v171 = vadd.f32 %v103, %v148
  %v172 = vadd.f32 %v104, %v148
  %v173 = vadd.f32 %v105, %v148
  %v174 = vadd.f32 %v106, %v148
  %v175 = vadd.f32 %v107, %v148
  %v176 = vadd.f32 %v108, %v148
  %v177 = vadd.f32 %v109, %v148
  %v178 = vadd.f32 %v110, %v148
  %v179 = vadd.f32 %v111, %v148
  %v180 = vadd.f32 %v112, %v148
  %v181 = vadd.f32 %v113, %v148
  %v182 = vadd.f32 %v114, %v148
  %v183 = vadd.f32 %v115, %v148
  %v184 = vadd.f32 %v116, %v148
  %v185 = vadd.f32 %v117, %v148
  %v186 = vadd.f32 %v118, %v148
  %v187 = vadd.f32 %v119, %v148
  %v188 = vadd.f32 %v120, %v148
  %v189 = vadd.f32 %v121, %v148
  %v190 = vadd.f32 %v122, %v148
  %v191 = vadd.f32 %v123, %v148
  %v192 = vadd.f32 %v124, %v148
  %v193 = vadd.f32 %v125, %v148
  %v194 = vadd.f32 %v126, %v148
  %v195 = vadd.f32 %v127, %v148
  %v196 = vadd.f32 %v128, %v148
  %v197 = vadd.f32 %v129, %v148
  %v198 = vadd.f32 %v130, %v148
  %v199 = vadd.f32 %v131, %v148
  %v200 = vadd.f32 %v132, %v148
  %v201 = vadd.f32 %v133, %v148
  %v202 = vadd.f32 %v134, %v148
  %v203 = vadd.f32 %v135, %v148
  %v204 = vadd.f32 %v136, %v148
  %v205 = vadd.f32 %v137, %v148
  %v206 = vadd.f32 %v138, %v148
  %v207 = vadd.f32 %v139, %v148
  %v208 = vadd.f32 %v140, %v148
  %v209 = vadd.f32 %v141, %v148
  %v210 = vadd.f32 %v142, %v148
  %v211 = vadd.f32 %v143, %v148
  %v212 = vadd.f32 %v144, %v148
  %v213 = vadd.f32 %v145, %v148
  %v214 = vmax.f32 %v150, 0.0
  %v215 = vmax.f32 %v151, 0.0
  %v216 = vmax.f32 %v152, 0.0
  %v217 = vmax.f32 %v153, 0.0
  %v218 = vmax.f32 %v154, 0.0
  %v219 = vmax.f32 %v155, 0.0
  %v220 = vmax.f32 %v156, 0.0
  %v221 = vmax.f32 %v157, 0.0
  %v222 = vmax.f32 %v158, 0.0
  %v223 = vmax.f32 %v159, 0.0
  %v224 = vmax.f32 %v160, 0.0
  %v225 = vmax.f32 %v161, 0.0
  %v226 = vmax.f32 %v162, 0.0
  %v227 = vmax.f32 %v163, 0.0
  %v228 = vmax.f32 %v164, 0.0
  %v229 = vmax.f32 %v165, 0.0
  %v230 = vmax.f32 %v166, 0.0
  %v231 = vmax.f32 %v167, 0.0
  %v232 = vmax.f32 %v168, 0.0
  %v233 = vmax.f32 %v169, 0.0
  %v234 = vmax.f32 %v170, 0.0
  %v235 = vmax.f32 %v171, 0.0
  %v236 = vmax.f32 %v172, 0.0
  %v237 = vmax.f32 %v173, 0.0
  %v238 = vmax.f32 %v174, 0.0
  %v239 = vmax.f32 %v175, 0.0
  %v240 = vmax.f32 %v176, 0.0
  %v241 = vmax.f32 %v177, 0.0
  %v242 = vmax.f32 %v178, 0.0
  %v243 = vmax.f32 %v179, 0.0
  %v244 = vmax.f32 %v180, 0.0
  %v245 = vmax.f32 %v181, 0.0
  %v246 = vmax.f32 %v182, 0.0
  %v247 = vmax.f32 %v183, 0.0
  %v248 = vmax.f32 %v184, 0.0
  %v249 = vmax.f32 %v185, 0.0
  %v250 = vmax.f32 %v186, 0.0
  %v251 = vmax.f32 %v187, 0.0
  %v252 = vmax.f32 %v188, 0.0
  %v253 = vmax.f32 %v189, 0.0
  %v254 = vmax.f32 %v190, 0.0
  %v255 = vmax.f32 %v191, 0.0
  %v256 = vmax.f32 %v192, 0.0
  %v257 = vmax.f32 %v193, 0.0
  %v258 = vmax.f32 %v194, 0.0
  %v259 = vmax.f32 %v195, 0.0
  %v260 = vmax.f32 %v196, 0.0
  %v261 = vmax.f32 %v197, 0.0
  %v262 = vmax.f32 %v198, 0.0
  %v263 = vmax.f32 %v199, 0.0
  %v264 = vmax.f32 %v200, 0.0
  %v265 = vmax.f32 %v201, 0.0
  %v266 = vmax.f32 %v202, 0.0
  %v267 = vmax.f32 %v203, 0.0
  %v268 = vmax.f32 %v204, 0.0
  %v269 = vmax.f32 %v205, 0.0
  %v270 = vmax.f32 %v206, 0.0
  %v271 = vmax.f32 %v207, 0.0
  %v272 = vmax.f32 %v208, 0.0
  %v273 = vmax.f32 %v209, 0.0
  %v274 = vmax.f32 %v210, 0.0
  %v275 = vmax.f32 %v211, 0.0
  %v276 = vmax.f32 %v212, 0.0
  %v277 = vmax.f32 %v213, 0.0
  %v278 = vpack.c.bf16 %v214, %v214
  %v279 = vpack.c.bf16 %v215, %v215
  %v280 = vpack.c.bf16 %v216, %v216
  %v281 = vpack.c.bf16 %v217, %v217
  %v282 = vpack.c.bf16 %v218, %v218
  %v283 = vpack.c.bf16 %v219, %v219
  %v284 = vpack.c.bf16 %v220, %v220
  %v285 = vpack.c.bf16 %v221, %v221
  %v286 = vpack.c.bf16 %v222, %v222
  %v287 = vpack.c.bf16 %v223, %v223
  %v288 = vpack.c.bf16 %v224, %v224
  %v289 = vpack.c.bf16 %v225, %v225
  %v290 = vpack.c.bf16 %v226, %v226
  %v291 = vpack.c.bf16 %v227, %v227
  %v292 = vpack.c.bf16 %v228, %v228
  %v293 = vpack.c.bf16 %v229, %v229
  %v294 = vpack.c.bf16 %v230, %v230
  %v295 = vpack.c.bf16 %v231, %v231
  %v296 = vpack.c.bf16 %v232, %v232
  %v297 = vpack.c.bf16 %v233, %v233
  %v298 = vpack.c.bf16 %v234, %v234
  %v299 = vpack.c.bf16 %v235, %v235
  %v300 = vpack.c.bf16 %v236, %v236
  %v301 = vpack.c.bf16 %v237, %v237
  %v302 = vpack.c.bf16 %v238, %v238
  %v303 = vpack.c.bf16 %v239, %v239
  %v304 = vpack.c.bf16 %v240, %v240
  %v305 = vpack.c.bf16 %v241, %v241
  %v306 = vpack.c.bf16 %v242, %v242
  %v307 = vpack.c.bf16 %v243, %v243
  %v308 = vpack.c.bf16 %v244, %v244
  %v309 = vpack.c.bf16 %v245, %v245
  %v310 = vpack.c.bf16 %v246, %v246
  %v311 = vpack.c.bf16 %v247, %v247
  %v312 = vpack.c.bf16 %v248, %v248
  %v313 = vpack.c.bf16 %v249, %v249
  %v314 = vpack.c.bf16 %v250, %v250
  %v315 = vpack.c.bf16 %v251, %v251
  %v316 = vpack.c.bf16 %v252, %v252
  %v317 = vpack.c.bf16 %v253, %v253
  %v318 = vpack.c.bf16 %v254, %v254
  %v319 = vpack.c.bf16 %v255, %v255
  %v320 = vpack.c.bf16 %v256, %v256
  %v321 = vpack.c.bf16 %v257, %v257
  %v322 = vpack.c.bf16 %v258, %v258
  %v323 = vpack.c.bf16 %v259, %v259
  %v324 = vpack.c.bf16 %v260, %v260
  %v325 = vpack.c.bf16 %v261, %v261
  %v326 = vpack.c.bf16 %v262, %v262
  %v327 = vpack.c.bf16 %v263, %v263
  %v328 = vpack.c.bf16 %v264, %v264
  %v329 = vpack.c.bf16 %v265, %v265
  %v330 = vpack.c.bf16 %v266, %v266
  %v331 = vpack.c.bf16 %v267, %v267
  %v332 = vpack.c.bf16 %v268, %v268
  %v333 = vpack.c.bf16 %v269, %v269
  %v334 = vpack.c.bf16 %v270, %v270
  %v335 = vpack.c.bf16 %v271, %v271
  %v336 = vpack.c.bf16 %v272, %v272
  %v337 = vpack.c.bf16 %v273, %v273
  %v338 = vpack.c.bf16 %v274, %v274
  %v339 = vpack.c.bf16 %v275, %v275
  %v340 = vpack.c.bf16 %v276, %v276
  %v341 = vpack.c.bf16 %v277, %v277
  %342 = vst [vmem:[%s3] sm:$0xf] %v278
  %343 = vst [vmem:[%s3 + $0x4] sm:$0xf] %v279
  %344 = vst [vmem:[%s3 + $0x8] sm:$0xf] %v280
  %345 = vst [vmem:[%s3 + $0xc] sm:$0xf] %v281
  %346 = vst [vmem:[%s3 + $0x10] sm:$0xf] %v282
  %347 = vst [vmem:[%s3 + $0x14] sm:$0xf] %v283
  %348 = vst [vmem:[%s3 + $0x18] sm:$0xf] %v284
  %349 = vst [vmem:[%s3 + $0x1c] sm:$0xf] %v285
  %350 = vst [vmem:[%s3 + $0x20] sm:$0xf] %v286
  %351 = vst [vmem:[%s3 + $0x24] sm:$0xf] %v287
  %352 = vst [vmem:[%s3 + $0x28] sm:$0xf] %v288
  %353 = vst [vmem:[%s3 + $0x2c] sm:$0xf] %v289
  %354 = vst [vmem:[%s3 + $0x30] sm:$0xf] %v290
  %355 = vst [vmem:[%s3 + $0x34] sm:$0xf] %v291
  %356 = vst [vmem:[%s3 + $0x38] sm:$0xf] %v292
  %357 = vst [vmem:[%s3 + $0x3c] sm:$0xf] %v293
  %358 = vst [vmem:[%s3 + $0x40] sm:$0xf] %v294
  %359 = vst [vmem:[%s3 + $0x44] sm:$0xf] %v295
  %360 = vst [vmem:[%s3 + $0x48] sm:$0xf] %v296
  %361 = vst [vmem:[%s3 + $0x4c] sm:$0xf] %v297
  %362 = vst [vmem:[%s3 + $0x50] sm:$0xf] %v298
  %363 = vst [vmem:[%s3 + $0x54] sm:$0xf] %v299
  %364 = vst [vmem:[%s3 + $0x58] sm:$0xf] %v300
  %365 = vst [vmem:[%s3 + $0x5c] sm:$0xf] %v301
  %366 = vst [vmem:[%s3 + $0x60] sm:$0xf] %v302
  %367 = vst [vmem:[%s3 + $0x64] sm:$0xf] %v303
  %368 = vst [vmem:[%s3 + $0x68] sm:$0xf] %v304
  %369 = vst [vmem:[%s3 + $0x6c] sm:$0xf] %v305
  %370 = vst [vmem:[%s3 + $0x70] sm:$0xf] %v306
  %371 = vst [vmem:[%s3 + $0x74] sm:$0xf] %v307
  %372 = vst [vmem:[%s3 + $0x78] sm:$0xf] %v308
  %373 = vst [vmem:[%s3 + $0x7c] sm:$0xf] %v309
  %374 = vst [vmem:[%s3 + $0x80] sm:$0xf] %v310
  %375 = vst [vmem:[%s3 + $0x84] sm:$0xf] %v311
  %376 = vst [vmem:[%s3 + $0x88] sm:$0xf] %v312
  %377 = vst [vmem:[%s3 + $0x8c] sm:$0xf] %v313
  %378 = vst [vmem:[%s3 + $0x90] sm:$0xf] %v314
  %379 = vst [vmem:[%s3 + $0x94] sm:$0xf] %v315
  %380 = vst [vmem:[%s3 + $0x98] sm:$0xf] %v316
  %381 = vst [vmem:[%s3 + $0x9c] sm:$0xf] %v317
  %382 = vst [vmem:[%s3 + $0xa0] sm:$0xf] %v318
  %383 = vst [vmem:[%s3 + $0xa4] sm:$0xf] %v319
  %384 = vst [vmem:[%s3 + $0xa8] sm:$0xf] %v320
  %385 = vst [vmem:[%s3 + $0xac] sm:$0xf] %v321
  %386 = vst [vmem:[%s3 + $0xb0] sm:$0xf] %v322
  %387 = vst [vmem:[%s3 + $0xb4] sm:$0xf] %v323
  %388 = vst [vmem:[%s3 + $0xb8] sm:$0xf] %v324
  %389 = vst [vmem:[%s3 + $0xbc] sm:$0xf] %v325
  %390 = vst [vmem:[%s3 + $0xc0] sm:$0xf] %v326
  %391 = vst [vmem:[%s3 + $0xc4] sm:$0xf] %v327
  %392 = vst [vmem:[%s3 + $0xc8] sm:$0xf] %v328
  %393 = vst [vmem:[%s3 + $0xcc] sm:$0xf] %v329
  %394 = vst [vmem:[%s3 + $0xd0] sm:$0xf] %v330
  %395 = vst [vmem:[%s3 + $0xd4] sm:$0xf] %v331
  %396 = vst [vmem:[%s3 + $0xd8] sm:$0xf] %v332
  %397 = vst [vmem:[%s3 + $0xdc] sm:$0xf] %v333
  %398 = vst [vmem:[%s3 + $0xe0] sm:$0xf] %v334
  %399 = vst [vmem:[%s3 + $0xe4] sm:$0xf] %v335
  %400 = vst [vmem:[%s3 + $0xe8] sm:$0xf] %v336
  %401 = vst [vmem:[%s3 + $0xec] sm:$0xf] %v337
  %402 = vst [vmem:[%s3 + $0xf0] sm:$0xf] %v338
  %403 = vst [vmem:[%s3 + $0xf4] sm:$0xf] %v339
  %404 = vst [vmem:[%s3 + $0xf8] sm:$0xf] %v340
  %405 = vst [vmem:[%s3 + $0xfc] sm:$0xf] %v341
  // Predicated region
  $region14: #{residual_block_forward.6} parent=0 // pred_check
    _
  $region15: #{residual_block_forward.6} parent=0 // pred_check_branch
    %407 = sbr.rel (0) target = $region17
  $region16: #{residual_block_forward.6} parent=0 // pred_region
    _
  $region17: #{residual_block_forward.6} parent=0 // pred_fallthru
    _
  // Predicated region
  $region18: #{residual_block_forward.6} parent=0 // pred_check
    _
  $region19: #{residual_block_forward.6} parent=0 // pred_check_branch
    %409 = sbr.rel (0) target = $region21
  $region20: #{residual_block_forward.6} parent=0 // pred_region
    _
  $region21: #{residual_block_forward.6} parent=0 // pred_fallthru
    _

// kernel: residual_block_forward.8
$region0: #{residual_block_forward.8}
  #allocation0 [shape = 'u32[]', space=smem, size = 0x4, offset = 0x4, fixed_abs, tag = 'smem constant byte address 0x4 - core index']
  #allocation1 [shape = 'u32[72,128]{1,0:T(1,128)}', space=vmem, size = 0x9000, scoped, tag = 'internal scratch']
  %s0 = inlined_call_operand.vmem [shape: f32[128,128], index: 0, kind: input, shape index: {}]
  %s1 = inlined_call_operand.vmem [shape: f32[2,128], index: 1, kind: output, shape index: {}]
  %s2 = sld [smem:[#allocation0]]
  $region18: #{residual_block_forward.8} parent=0
    _
  %s4 = ssub.s32 1, %s2
  %s5 = scalar_select 0, %s4, %s2
  // Predicated region
  $region2: #{residual_block_forward.8} parent=0 // pred_check
    _
  $region3: #{residual_block_forward.8} parent=0 // pred_check_branch
    %7 = sbr.rel (0) target = $region5
  $region4: #{residual_block_forward.8} parent=0 // pred_region
    _
  $region5: #{residual_block_forward.8} parent=0 // pred_fallthru
    _
  %p8 = scmp.eq.s32.totalorder 0, 0
  // Predicated region
  $region6: #{residual_block_forward.8} parent=0 // pred_check
    %p9 = pneg %p8
  $region7: #{residual_block_forward.8} parent=0 // pred_check_branch
    %11 = sbr.rel (%p9) target = $region9
  $region8: #{residual_block_forward.8} parent=0 // pred_region
    %12 = vst [vmem:[%s1] sm:$0x3] 0.0
  $region9: #{residual_block_forward.8} parent=0 // pred_fallthru
    _
  %v13 = vld [vmem:[%s0] sm:$0xff]
  %v14 = vld [vmem:[%s0 + $0x8] sm:$0xff]
  %v15 = vld [vmem:[%s0 + $0x10] sm:$0xff]
  %v16 = vld [vmem:[%s0 + $0x18] sm:$0xff]
  %v17 = vld [vmem:[%s0 + $0x20] sm:$0xff]
  %v18 = vld [vmem:[%s0 + $0x28] sm:$0xff]
  %v19 = vld [vmem:[%s0 + $0x30] sm:$0xff]
  %v20 = vld [vmem:[%s0 + $0x38] sm:$0xff]
  %v21 = vld [vmem:[%s0 + $0x40] sm:$0xff]
  %v22 = vld [vmem:[%s0 + $0x48] sm:$0xff]
  %v23 = vld [vmem:[%s0 + $0x50] sm:$0xff]
  %v24 = vld [vmem:[%s0 + $0x58] sm:$0xff]
  %v25 = vld [vmem:[%s0 + $0x60] sm:$0xff]
  %v26 = vld [vmem:[%s0 + $0x68] sm:$0xff]
  %v27 = vld [vmem:[%s0 + $0x70] sm:$0xff]
  %v28 = vld [vmem:[%s0 + $0x78] sm:$0xff]
  %v29 = vadd.f32 %v13, %v14
  %v30 = vadd.f32 %v29, %v15
  %v31 = vadd.f32 %v30, %v16
  %v32 = vadd.f32 %v31, %v17
  %v33 = vadd.f32 %v32, %v18
  %v34 = vadd.f32 %v33, %v19
  %v35 = vadd.f32 %v34, %v20
  %v36 = vadd.f32 %v35, %v21
  %v37 = vadd.f32 %v36, %v22
  %v38 = vadd.f32 %v37, %v23
  %v39 = vadd.f32 %v38, %v24
  %v40 = vadd.f32 %v39, %v25
  %v41 = vadd.f32 %v40, %v26
  %v42 = vadd.f32 %v41, %v27
  %v43 = vadd.f32 %v42, %v28
  %v44 = vrot.slane %v43, 4
  %v45 = vadd.f32 %v43, %v44
  %v46 = vrot.slane %v45, 2
  %v47 = vadd.f32 %v45, %v46
  %v48 = vrot.slane %v47, 1
  %v49 = vadd.f32 %v47, %v48
  %v50 = vmul.f32 %v13, %v13
  %v51 = vmul.f32 %v14, %v14
  %v52 = vmul.f32 %v15, %v15
  %v53 = vmul.f32 %v16, %v16
  %v54 = vmul.f32 %v17, %v17
  %v55 = vmul.f32 %v18, %v18
  %v56 = vmul.f32 %v19, %v19
  %v57 = vmul.f32 %v20, %v20
  %v58 = vmul.f32 %v21, %v21
  %v59 = vmul.f32 %v22, %v22
  %v60 = vmul.f32 %v23, %v23
  %v61 = vmul.f32 %v24, %v24
  %v62 = vmul.f32 %v25, %v25
  %v63 = vmul.f32 %v26, %v26
  %v64 = vmul.f32 %v27, %v27
  %v65 = vmul.f32 %v28, %v28
  %v66 = vadd.f32 %v50, %v51
  %v67 = vadd.f32 %v66, %v52
  %v68 = vadd.f32 %v67, %v53
  %v69 = vadd.f32 %v68, %v54
  %v70 = vadd.f32 %v69, %v55
  %v71 = vadd.f32 %v70, %v56
  %v72 = vadd.f32 %v71, %v57
  %v73 = vadd.f32 %v72, %v58
  %v74 = vadd.f32 %v73, %v59
  %v75 = vadd.f32 %v74, %v60
  %v76 = vadd.f32 %v75, %v61
  %v77 = vadd.f32 %v76, %v62
  %v78 = vadd.f32 %v77, %v63
  %v79 = vadd.f32 %v78, %v64
  %v80 = vadd.f32 %v79, %v65
  %v81 = vrot.slane %v80, 4
  %v82 = vadd.f32 %v80, %v81
  %v83 = vrot.slane %v82, 2
  %v84 = vadd.f32 %v82, %v83
  %v85 = vrot.slane %v84, 1
  %v86 = vadd.f32 %v84, %v85
  %v87 = vld [vmem:[%s1] sm:$0x3]
  %vm88 = vcmask 1040384
  %v89 = vsel %vm88, %v49, %v86
  %v90 = vadd.f32 %v87, %v89
  %91 = vst [vmem:[%s1] sm:$0x3] %v90
  // Predicated region
  $region10: #{residual_block_forward.8} parent=0 // pred_check
    _
  $region11: #{residual_block_forward.8} parent=0 // pred_check_branch
    %93 = sbr.rel (0) target = $region13
  $region12: #{residual_block_forward.8} parent=0 // pred_region
    _
  $region13: #{residual_block_forward.8} parent=0 // pred_fallthru
    _
  // Predicated region
  $region14: #{residual_block_forward.8} parent=0 // pred_check
    _
  $region15: #{residual_block_forward.8} parent=0 // pred_check_branch
    %95 = sbr.rel (0) target = $region17
  $region16: #{residual_block_forward.8} parent=0 // pred_region
    _
  $region17: #{residual_block_forward.8} parent=0 // pred_fallthru
    _

// kernel: residual_block_forward.7
$region0: #{residual_block_forward.7}
  #allocation0 [shape = 'u32[]', space=smem, size = 0x4, offset = 0x4, fixed_abs, tag = 'smem constant byte address 0x4 - core index']
  #allocation1 [shape = 'u32[72,128]{1,0:T(1,128)}', space=vmem, size = 0x9000, scoped, tag = 'internal scratch']
  #allocation2 [shape = 'f32[128,128]{1,0:T(8,128)}', space=vmem, size = 0x10000, scoped, tag = 'scratch operand']
  %s0 = inlined_call_operand.vmem [shape: bf16[128,1152], index: 0, kind: input, shape index: {}]
  %s1 = inlined_call_operand.vmem [shape: bf16[1152,128], index: 1, kind: input, shape index: {}]
  %s2 = inlined_call_operand.vmem [shape: f32[128,128], index: 2, kind: output, shape index: {}]
  %s3 = sld [smem:[#allocation0]]
  $region75: #{residual_block_forward.7} parent=0
    _
  %s5 = ssub.s32 1, %s3
  %s6 = scalar_select 0, %s5, %s3
  $region1: #{residual_block_forward.7} parent=0
    #allocation3 [shape = 'u8[196608]{0}', space=vmem, size = 0x30000, scoped, tag = 'input window, operand 0']
    loop: start=0, step=1, limit=5
    $region2: #{residual_block_forward.7} parent=1 // loop_pre_header
      _
    $region3: #{residual_block_forward.7} parent=1 // loop_header
      %s8 = sphi 0, %s12
      %p9 = scmp.ge.s32.totalorder %s8, 5
      %s15 = sphi 0, %s34
      %s16 = sphi 0, %s30
      %s17 = sphi 0, %s26
      %s18 = sphi 0, %s15
      %s19 = sphi 0, %s16
      %s20 = sphi 0, %s17
      %s21 = sphi 0, %s18
      %s22 = sphi 0, %s19
      %s23 = sphi 0, %s20
      %s39 = sphi 0, %s41
      %s42 = sphi 0, %s39
      %s43 = sphi 0, %s42
      %s59 = sphi 0, %s43
      %s67 = sphi 0, %s69
      %s70 = sphi 0, %s67
      %s71 = sphi 0, %s70
      %s87 = sphi 0, %s71
      %s95 = sphi 0, %s97
      %s98 = sphi 0, %s95
      %s99 = sphi 0, %s98
      %s115 = sphi 0, %s99
    $region4: #{residual_block_forward.7} parent=1 // loop_header_branch
      %11 = sbr.rel (%p9) target = $region8
    $region5: #{residual_block_forward.7} parent=1 // loop_body
      %s13 = ssub.s32 %s8, 1
      %s14 = ssub.s32 %s8, 2
      %s24 = sadd.s32 1, %s17
      %p25 = scmp.ge.s32.totalorder %s24, 3
      %s26 = scalar_select %p25, 0, %s24
      %s27 = sadd.s32 1, %s16
      %s28 = scalar_select %p25, %s27, %s16
      %p29 = scmp.ge.s32.totalorder %s28, 1
      %s30 = scalar_select %p29, 0, %s28
      %s31 = sadd.s32 1, %s15
      %s32 = scalar_select %p29, %s31, %s15
      %p33 = scmp.ge.s32.totalorder %s32, 1
      %s34 = scalar_select %p33, 0, %s32
      %s35 = ssub.s32 %s15, %s34
      %s36 = ssub.s32 %s17, %s26
      %s37 = sor.u32 %s35, %s36
      %p38 = scmp.eq.s32.totalorder %s37, 0
      %s40 = sadd.s32 %s39, 1
      %s41 = scalar_select %p38, %s39, %s40
      %p44 = pneg %p38
      %p45 = scmp.eq.s32.totalorder %s8, 2
      %p46 = por %p44, %p45
      %p47 = scmp.ne.s32.totalorder %s39, %s42
      %p48 = scmp.eq.s32.totalorder %s8, 0
      %p49 = por %p47, %p48
      %p50 = scmp.ne.s32.totalorder %s39, %s42
      %p51 = scmp.eq.s32.totalorder %s13, 2
      %p52 = por %p50, %p51
      %p53 = scmp.ne.s32.totalorder %s42, %s43
      %p54 = scmp.eq.s32.totalorder %s13, 0
      %p55 = por %p53, %p54
      %p56 = scmp.ne.s32.totalorder %s42, %s43
      %p57 = scmp.eq.s32.totalorder %s14, 2
      %p58 = por %p56, %p57
      %p60 = scmp.ne.s32.totalorder %s43, %s59
      %p61 = scmp.eq.s32.totalorder %s14, 0
      %p62 = por %p60, %p61
      %s63 = ssub.s32 %s17, %s26
      %s64 = ssub.s32 %s16, %s30
      %s65 = sor.u32 %s63, %s64
      %p66 = scmp.eq.s32.totalorder %s65, 0
      %s68 = sadd.s32 %s67, 1
      %s69 = scalar_select %p66, %s67, %s68
      %p72 = pneg %p66
      %p73 = scmp.eq.s32.totalorder %s8, 2
      %p74 = por %p72, %p73
      %p75 = scmp.ne.s32.totalorder %s67, %s70
      %p76 = scmp.eq.s32.totalorder %s8, 0
      %p77 = por %p75, %p76
      %p78 = scmp.ne.s32.totalorder %s67, %s70
      %p79 = scmp.eq.s32.totalorder %s13, 2
      %p80 = por %p78, %p79
      %p81 = scmp.ne.s32.totalorder %s70, %s71
      %p82 = scmp.eq.s32.totalorder %s13, 0
      %p83 = por %p81, %p82
      %p84 = scmp.ne.s32.totalorder %s70, %s71
      %p85 = scmp.eq.s32.totalorder %s14, 2
      %p86 = por %p84, %p85
      %p88 = scmp.ne.s32.totalorder %s71, %s87
      %p89 = scmp.eq.s32.totalorder %s14, 0
      %p90 = por %p88, %p89
      %s91 = ssub.s32 %s15, %s34
      %s92 = ssub.s32 %s16, %s30
      %s93 = sor.u32 %s91, %s92
      %p94 = scmp.eq.s32.totalorder %s93, 0
      %s96 = sadd.s32 %s95, 1
      %s97 = scalar_select %p94, %s95, %s96
      %p100 = pneg %p94
      %p101 = scmp.eq.s32.totalorder %s8, 2
      %p102 = por %p100, %p101
      %p103 = scmp.ne.s32.totalorder %s95, %s98
      %p104 = scmp.eq.s32.totalorder %s8, 0
      %p105 = por %p103, %p104
      %p106 = scmp.ne.s32.totalorder %s95, %s98
      %p107 = scmp.eq.s32.totalorder %s13, 2
      %p108 = por %p106, %p107
      %p109 = scmp.ne.s32.totalorder %s98, %s99
      %p110 = scmp.eq.s32.totalorder %s13, 0
      %p111 = por %p109, %p110
      %p112 = scmp.ne.s32.totalorder %s98, %s99
      %p113 = scmp.eq.s32.totalorder %s14, 2
      %p114 = por %p112, %p113
      %p116 = scmp.ne.s32.totalorder %s99, %s115
      %p117 = scmp.eq.s32.totalorder %s14, 0
      %p118 = por %p116, %p117
      %p119 = scmp.le.s32.totalorder 1, %s8
      %p120 = scmp.lt.s32.totalorder %s8, 4
      %p121 = pnand %p119, %p120
      %p122 = pneg %p121
      // Predicated region
      $region9: #{residual_block_forward.7} parent=5 // pred_check
        _
      $region10: #{residual_block_forward.7} parent=5 // pred_check_branch
        %124 = sbr.rel (%p121) target = $region12
      $region11: #{residual_block_forward.7} parent=5 // pred_region
        %s125 = ssub.s32 %s8, 1
      $region12: #{residual_block_forward.7} parent=5 // pred_fallthru
        _
      %p126 = scmp.lt.s32.totalorder %s8, 3
      // Predicated region
      $region13: #{residual_block_forward.7} parent=5 // pred_check
        %p127 = pneg %p126
      $region14: #{residual_block_forward.7} parent=5 // pred_check_branch
        %129 = sbr.rel (%p127) target = $region16
      $region15: #{residual_block_forward.7} parent=5 // pred_region
        // Predicated region
        $region17: #{residual_block_forward.7} parent=15 // pred_check
          %p130 = pneg %p49
        $region18: #{residual_block_forward.7} parent=15 // pred_check_branch
          %132 = sbr.rel (%p130) target = $region20
        $region19: #{residual_block_forward.7} parent=15 // pred_region
          %s133 = sand.u32 %s39, 1
          %s134 = sand.u32 %s39, 1
          %s135 = smul.addr %s134, 192
          %s136 = scalar_lea.vmem [#allocation3], %s135
          %s137 = smul.u32 16, %s15
          %s138 = smul.u32 3, %s17
          %s139 = smul.addr %s137, 9
          %s140 = sadd.s32 %s138, %s139
          %s141 = smul.addr %s140, 4
          %s142 = scalar_lea.vmem %s0, %s141
          // Predicated region
          $region21: #{residual_block_forward.7} parent=19 // pred_check
            _
          $region22: #{residual_block_forward.7} parent=19 // pred_check_branch
            %144 = sbr.rel (0) target = $region24
          $region23: #{residual_block_forward.7} parent=19 // pred_region
            // Predicated region
            $region25: #{residual_block_forward.7} parent=23 // pred_check
              _
            $region26: #{residual_block_forward.7} parent=23 // pred_check_branch
              %146 = sbr.rel (0) target = $region28
            $region27: #{residual_block_forward.7} parent=23 // pred_region
              %s147 = scalar_lea.vmem %s142, 8
              %s148 = scalar_lea.vmem %s136, 8 [#allocation3]
              loop: start=0, step=1, limit=1
              $region29: #{residual_block_forward.7} parent=27 // loop_pre_header
                _
              $region30: #{residual_block_forward.7} parent=27 // loop_header
                %s150 = sphi 0, %s154
                %p151 = scmp.ge.s32.totalorder %s150, 1
                %s155 = sphi %s142, %s142
                %s156 = sphi %s136, %s136
              $region31: #{residual_block_forward.7} parent=27 // loop_header_branch
                %153 = sbr.rel (%p151) target = $region35
              $region32: #{residual_block_forward.7} parent=27 // loop_body
                %v157 = vld [vmem:[%s155] sm:$0xff]
                %158 = vst [vmem:[%s156] sm:$0xff] %v157
                %v159 = vld [vmem:[%s155 + $0x24] sm:$0xff]
                %160 = vst [vmem:[%s156 + $0xc] sm:$0xff] %v159
                %v161 = vld [vmem:[%s155 + $0x48] sm:$0xff]
                %162 = vst [vmem:[%s156 + $0x18] sm:$0xff] %v161
                %v163 = vld [vmem:[%s155 + $0x6c] sm:$0xff]
                %164 = vst [vmem:[%s156 + $0x24] sm:$0xff] %v163
                %v165 = vld [vmem:[%s155 + $0x90] sm:$0xff]
                %166 = vst [vmem:[%s156 + $0x30] sm:$0xff] %v165
                %v167 = vld [vmem:[%s155 + $0xb4] sm:$0xff]
                %168 = vst [vmem:[%s156 + $0x3c] sm:$0xff] %v167
                %v169 = vld [vmem:[%s155 + $0xd8] sm:$0xff]
                %170 = vst [vmem:[%s156 + $0x48] sm:$0xff] %v169
                %v171 = vld [vmem:[%s155 + $0xfc] sm:$0xff]
                %172 = vst [vmem:[%s156 + $0x54] sm:$0xff] %v171
                %v173 = vld [vmem:[%s155 + $0x120] sm:$0xff]
                %174 = vst [vmem:[%s156 + $0x60] sm:$0xff] %v173
                %v175 = vld [vmem:[%s155 + $0x144] sm:$0xff]
                %176 = vst [vmem:[%s156 + $0x6c] sm:$0xff] %v175
                %v177 = vld [vmem:[%s155 + $0x168] sm:$0xff]
                %178 = vst [vmem:[%s156 + $0x78] sm:$0xff] %v177
                %v179 = vld [vmem:[%s155 + $0x18c] sm:$0xff]
                %180 = vst [vmem:[%s156 + $0x84] sm:$0xff] %v179
                %v181 = vld [vmem:[%s155 + $0x1b0] sm:$0xff]
                %182 = vst [vmem:[%s156 + $0x90] sm:$0xff] %v181
                %v183 = vld [vmem:[%s155 + $0x1d4] sm:$0xff]
                %184 = vst [vmem:[%s156 + $0x9c] sm:$0xff] %v183
                %v185 = vld [vmem:[%s155 + $0x1f8] sm:$0xff]
                %186 = vst [vmem:[%s156 + $0xa8] sm:$0xff] %v185
                %v187 = vld [vmem:[%s155 + $0x21c] sm:$0xff]
                %188 = vst [vmem:[%s156 + $0xb4] sm:$0xff] %v187
              $region33: #{residual_block_forward.7} parent=27 // loop_footer
                %s154 = sadd.s32 1, %s150
              $region34: #{residual_block_forward.7} parent=27 // loop_footer_branch
                %149 = sbr.rel target = $region30
              $region35: #{residual_block_forward.7} parent=27 // loop_exit
                _
              %s190 = ssub.s32 16, 1
              loop: start=0, step=1, limit=1
              $region36: #{residual_block_forward.7} parent=27 // loop_pre_header
                _
              $region37: #{residual_block_forward.7} parent=27 // loop_header
                %s192 = sphi 0, %s196
                %p193 = scmp.ge.s32.totalorder %s192, 1
                %s197 = sphi %s147, %s147
                %s198 = sphi %s148, %s148
              $region38: #{residual_block_forward.7} parent=27 // loop_header_branch
                %195 = sbr.rel (%p193) target = $region42
              $region39: #{residual_block_forward.7} parent=27 // loop_body
                %v199 = vld [vmem:[%s197] sm:%s190]
                %200 = vst [vmem:[%s198] sm:%s190] %v199
                %v201 = vld [vmem:[%s197 + $0x24] sm:%s190]
                %202 = vst [vmem:[%s198 + $0xc] sm:%s190] %v201
                %v203 = vld [vmem:[%s197 + $0x48] sm:%s190]
                %204 = vst [vmem:[%s198 + $0x18] sm:%s190] %v203
                %v205 = vld [vmem:[%s197 + $0x6c] sm:%s190]
                %206 = vst [vmem:[%s198 + $0x24] sm:%s190] %v205
                %v207 = vld [vmem:[%s197 + $0x90] sm:%s190]
                %208 = vst [vmem:[%s198 + $0x30] sm:%s190] %v207
                %v209 = vld [vmem:[%s197 + $0xb4] sm:%s190]
                %210 = vst [vmem:[%s198 + $0x3c] sm:%s190] %v209
                %v211 = vld [vmem:[%s197 + $0xd8] sm:%s190]
                %212 = vst [vmem:[%s198 + $0x48] sm:%s190] %v211
                %v213 = vld [vmem:[%s197 + $0xfc] sm:%s190]
                %214 = vst [vmem:[%s198 + $0x54] sm:%s190] %v213
                %v215 = vld [vmem:[%s197 + $0x120] sm:%s190]
                %216 = vst [vmem:[%s198 + $0x60] sm:%s190] %v215
                %v217 = vld [vmem:[%s197 + $0x144] sm:%s190]
                %218 = vst [vmem:[%s198 + $0x6c] sm:%s190] %v217
                %v219 = vld [vmem:[%s197 + $0x168] sm:%s190]
                %220 = vst [vmem:[%s198 + $0x78] sm:%s190] %v219
                %v221 = vld [vmem:[%s197 + $0x18c] sm:%s190]
                %222 = vst [vmem:[%s198 + $0x84] sm:%s190] %v221
                %v223 = vld [vmem:[%s197 + $0x1b0] sm:%s190]
                %224 = vst [vmem:[%s198 + $0x90] sm:%s190] %v223
                %v225 = vld [vmem:[%s197 + $0x1d4] sm:%s190]
                %226 = vst [vmem:[%s198 + $0x9c] sm:%s190] %v225
                %v227 = vld [vmem:[%s197 + $0x1f8] sm:%s190]
                %228 = vst [vmem:[%s198 + $0xa8] sm:%s190] %v227
                %v229 = vld [vmem:[%s197 + $0x21c] sm:%s190]
                %230 = vst [vmem:[%s198 + $0xb4] sm:%s190] %v229
              $region40: #{residual_block_forward.7} parent=27 // loop_footer
                %s196 = sadd.s32 1, %s192
              $region41: #{residual_block_forward.7} parent=27 // loop_footer_branch
                %191 = sbr.rel target = $region37
              $region42: #{residual_block_forward.7} parent=27 // loop_exit
                _
            $region28: #{residual_block_forward.7} parent=23 // pred_fallthru
              _
          $region24: #{residual_block_forward.7} parent=19 // pred_fallthru
            _
          %231 = vnop
        $region20: #{residual_block_forward.7} parent=15 // pred_fallthru
          _
        // Predicated region
        $region43: #{residual_block_forward.7} parent=15 // pred_check
          %p232 = pneg %p77
        $region44: #{residual_block_forward.7} parent=15 // pred_check_branch
          %234 = sbr.rel (%p232) target = $region46
        $region45: #{residual_block_forward.7} parent=15 // pred_region
          %s235 = smul.u32 48, %s17
          %p236 = scmp.lt.s32.totalorder %s235, 143
          %s237 = scalar_select %p236, %s235, 143
          %p238 = scmp.lt.s32.totalorder %s16, 0
          %s239 = scalar_select %p238, %s16, 0
          %s240 = sadd.s32 %s239, %s237
          %s241 = smul.addr %s240, 4
          %s242 = scalar_lea.vmem %s1, %s241
          %s243 = smul.u32 48, %s17
        $region46: #{residual_block_forward.7} parent=15 // pred_fallthru
          _
      $region16: #{residual_block_forward.7} parent=5 // pred_fallthru
        _
      %p244 = scmp.le.s32.totalorder 1, %s8
      %p245 = scmp.lt.s32.totalorder %s8, 4
      %p246 = pnand %p244, %p245
      %p247 = pneg %p246
      // Predicated region
      $region47: #{residual_block_forward.7} parent=5 // pred_check
        _
      $region48: #{residual_block_forward.7} parent=5 // pred_check_branch
        %249 = sbr.rel (%p246) target = $region50
      $region49: #{residual_block_forward.7} parent=5 // pred_region
        %s250 = ssub.s32 %s8, 1
        %s251 = sand.u32 %s42, 1
        %s252 = sand.u32 %s42, 1
        %s253 = smul.addr %s252, 192
        %s254 = scalar_lea.vmem [#allocation3], %s253
        // Predicated region
        $region51: #{residual_block_forward.7} parent=49 // pred_check
          %p255 = pneg %p55
        $region52: #{residual_block_forward.7} parent=49 // pred_check_branch
          %257 = sbr.rel (%p255) target = $region54
        $region53: #{residual_block_forward.7} parent=49 // pred_region
          _
        $region54: #{residual_block_forward.7} parent=49 // pred_fallthru
          _
        %s258 = sand.u32 %s42, 1
        %s259 = sand.u32 %s42, 1
        %s260 = smul.addr %s259, 192
        %s261 = scalar_lea.vmem [#allocation3], %s260
        %p262 = pneg %p55
        %p263 = pneg %p52
        %s264 = smul.u32 48, %s20
        %p265 = scmp.lt.s32.totalorder %s264, 143
        %s266 = scalar_select %p265, %s264, 143
        %p267 = scmp.lt.s32.totalorder %s19, 0
        %s268 = scalar_select %p267, %s19, 0
        %s269 = sadd.s32 %s268, %s266
        %s270 = smul.addr %s269, 4
        %s271 = scalar_lea.vmem %s1, %s270
        %p272 = pneg %p83
        %p273 = pneg %p80
        %p274 = pneg %p111
        %p275 = pneg %p108
        %s276 = smul.u32 16, %s18
        %p277 = scmp.lt.s32.totalorder %s276, 15
        %s278 = scalar_select %p277, %s276, 15
        %p279 = scmp.lt.s32.totalorder %s19, 0
        %s280 = scalar_select %p279, %s19, 0
        %s281 = sadd.s32 %s280, %s278
        %s282 = smul.addr %s281, 8
        %s283 = scalar_lea.vmem %s2, %s282
        %s284 = smul.u32 16, %s18
        %s285 = smul.u32 3, %s20
        %s286 = smul.u32 48, %s20
        %p287 = scmp.lt.s32.totalorder %s286, 143
        %s288 = scalar_select %p287, %s286, 143
        %p289 = scmp.lt.s32.totalorder %s19, 0
        %s290 = scalar_select %p289, %s19, 0
        %s291 = sadd.s32 %s290, %s288
        %s292 = smul.addr %s291, 4
        %s293 = scalar_lea.vmem %s1, %s292
        %s294 = smul.u32 48, %s20
        %s295 = smul.u32 16, %s18
        %p296 = scmp.lt.s32.totalorder %s295, 15
        %s297 = scalar_select %p296, %s295, 15
        %p298 = scmp.lt.s32.totalorder %s19, 0
        %s299 = scalar_select %p298, %s19, 0
        %s300 = sadd.s32 %s299, %s297
        %s301 = smul.addr %s300, 8
        %s302 = scalar_lea.vmem %s2, %s301
        %s303 = smul.u32 16, %s18
        %p304 = scmp.eq.s32.totalorder %s20, 0
        // Predicated region
        $region55: #{residual_block_forward.7} parent=49 // pred_check
          %p305 = pneg %p304
        $region56: #{residual_block_forward.7} parent=49 // pred_check_branch
          %307 = sbr.rel (%p305) target = $region58
        $region57: #{residual_block_forward.7} parent=49 // pred_region
          %308 = vst [vmem:[#allocation2] sm:$0xff] 0.0
          %309 = vst [vmem:[#allocation2 + $0x8] sm:$0xff] 0.0
          %310 = vst [vmem:[#allocation2 + $0x10] sm:$0xff] 0.0
          %311 = vst [vmem:[#allocation2 + $0x18] sm:$0xff] 0.0
          %312 = vst [vmem:[#allocation2 + $0x20] sm:$0xff] 0.0
          %313 = vst [vmem:[#allocation2 + $0x28] sm:$0xff] 0.0
          %314 = vst [vmem:[#allocation2 + $0x30] sm:$0xff] 0.0
          %315 = vst [vmem:[#allocation2 + $0x38] sm:$0xff] 0.0
          %316 = vst [vmem:[#allocation2 + $0x40] sm:$0xff] 0.0
          %317 = vst [vmem:[#allocation2 + $0x48] sm:$0xff] 0.0
          %318 = vst [vmem:[#allocation2 + $0x50] sm:$0xff] 0.0
          %319 = vst [vmem:[#allocation2 + $0x58] sm:$0xff] 0.0
          %320 = vst [vmem:[#allocation2 + $0x60] sm:$0xff] 0.0
          %321 = vst [vmem:[#allocation2 + $0x68] sm:$0xff] 0.0
          %322 = vst [vmem:[#allocation2 + $0x70] sm:$0xff] 0.0
          %323 = vst [vmem:[#allocation2 + $0x78] sm:$0xff] 0.0
        $region58: #{residual_block_forward.7} parent=49 // pred_fallthru
          _
        %v324 = vld [vmem:[#allocation2] sm:$0xff]
        %v325 = vld [vmem:[#allocation2 + $0x8] sm:$0xff]
        %v326 = vld [vmem:[#allocation2 + $0x10] sm:$0xff]
        %v327 = vld [vmem:[#allocation2 + $0x18] sm:$0xff]
        %v328 = vld [vmem:[#allocation2 + $0x20] sm:$0xff]
        %v329 = vld [vmem:[#allocation2 + $0x28] sm:$0xff]
        %v330 = vld [vmem:[#allocation2 + $0x30] sm:$0xff]
        %v331 = vld [vmem:[#allocation2 + $0x38] sm:$0xff]
        %v332 = vld [vmem:[#allocation2 + $0x40] sm:$0xff]
        %v333 = vld [vmem:[#allocation2 + $0x48] sm:$0xff]
        %v334 = vld [vmem:[#allocation2 + $0x50] sm:$0xff]
        %v335 = vld [vmem:[#allocation2 + $0x58] sm:$0xff]
        %v336 = vld [vmem:[#allocation2 + $0x60] sm:$0xff]
        %v337 = vld [vmem:[#allocation2 + $0x68] sm:$0xff]
        %v338 = vld [vmem:[#allocation2 + $0x70] sm:$0xff]
        %v339 = vld [vmem:[#allocation2 + $0x78] sm:$0xff]
        %v340 = vld [vmem:[%s254] sm:$0xff]
        %v341 = vld [vmem:[%s254 + $0x8] sm:$0xf]
        %v342 = vld [vmem:[%s254 + $0xc] sm:$0xff]
        %v343 = vld [vmem:[%s254 + $0x14] sm:$0xf]
        %v344 = vld [vmem:[%s254 + $0x18] sm:$0xff]
        %v345 = vld [vmem:[%s254 + $0x20] sm:$0xf]
        %v346 = vld [vmem:[%s254 + $0x24] sm:$0xff]
        %v347 = vld [vmem:[%s254 + $0x2c] sm:$0xf]
        %v348 = vld [vmem:[%s254 + $0x30] sm:$0xff]
        %v349 = vld [vmem:[%s254 + $0x38] sm:$0xf]
        %v350 = vld [vmem:[%s254 + $0x3c] sm:$0xff]
        %v351 = vld [vmem:[%s254 + $0x44] sm:$0xf]
        %v352 = vld [vmem:[%s254 + $0x48] sm:$0xff]
        %v353 = vld [vmem:[%s254 + $0x50] sm:$0xf]
        %v354 = vld [vmem:[%s254 + $0x54] sm:$0xff]
        %v355 = vld [vmem:[%s254 + $0x5c] sm:$0xf]
        %v356 = vld [vmem:[%s254 + $0x60] sm:$0xff]
        %v357 = vld [vmem:[%s254 + $0x68] sm:$0xf]
        %v358 = vld [vmem:[%s254 + $0x6c] sm:$0xff]
        %v359 = vld [vmem:[%s254 + $0x74] sm:$0xf]
        %v360 = vld [vmem:[%s254 + $0x78] sm:$0xff]
        %v361 = vld [vmem:[%s254 + $0x80] sm:$0xf]
        %v362 = vld [vmem:[%s254 + $0x84] sm:$0xff]
        %v363 = vld [vmem:[%s254 + $0x8c] sm:$0xf]
        %v364 = vld [vmem:[%s254 + $0x90] sm:$0xff]
        %v365 = vld [vmem:[%s254 + $0x98] sm:$0xf]
        %v366 = vld [vmem:[%s254 + $0x9c] sm:$0xff]
        %v367 = vld [vmem:[%s254 + $0xa4] sm:$0xf]
        %v368 = vld [vmem:[%s254 + $0xa8] sm:$0xff]
        %v369 = vld [vmem:[%s254 + $0xb0] sm:$0xf]
        %v370 = vld [vmem:[%s254 + $0xb4] sm:$0xff]
        %v371 = vld [vmem:[%s254 + $0xbc] sm:$0xf]
        %v372 = vld [vmem:[%s293] sm:$0xf]
        %v373 = vld [vmem:[%s293 + $0x4] sm:$0xf]
        %v374 = vld [vmem:[%s293 + $0x8] sm:$0xf]
        %v375 = vld [vmem:[%s293 + $0xc] sm:$0xf]
        %v376 = vld [vmem:[%s293 + $0x10] sm:$0xf]
        %v377 = vld [vmem:[%s293 + $0x14] sm:$0xf]
        %v378 = vld [vmem:[%s293 + $0x18] sm:$0xf]
        %v379 = vld [vmem:[%s293 + $0x1c] sm:$0xf]
        %v380 = vld [vmem:[%s293 + $0x20] sm:$0xf]
        %v381 = vld [vmem:[%s293 + $0x24] sm:$0xf]
        %v382 = vld [vmem:[%s293 + $0x28] sm:$0xf]
        %v383 = vld [vmem:[%s293 + $0x2c] sm:$0xf]
        %v384 = vld [vmem:[%s293 + $0x30] sm:$0xf]
        %v385 = vld [vmem:[%s293 + $0x34] sm:$0xf]
        %v386 = vld [vmem:[%s293 + $0x38] sm:$0xf]
        %v387 = vld [vmem:[%s293 + $0x3c] sm:$0xf]
        %v388 = vld [vmem:[%s293 + $0x40] sm:$0xf]
        %v389 = vld [vmem:[%s293 + $0x44] sm:$0xf]
        %v390 = vld [vmem:[%s293 + $0x48] sm:$0xf]
        %v391 = vld [vmem:[%s293 + $0x4c] sm:$0xf]
        %v392 = vld [vmem:[%s293 + $0x50] sm:$0xf]
        %v393 = vld [vmem:[%s293 + $0x54] sm:$0xf]
        %v394 = vld [vmem:[%s293 + $0x58] sm:$0xf]
        %v395 = vld [vmem:[%s293 + $0x5c] sm:$0xf]
        %v396 = vld [vmem:[%s293 + $0x60] sm:$0xf]
        %v397 = vld [vmem:[%s293 + $0x64] sm:$0xf]
        %v398 = vld [vmem:[%s293 + $0x68] sm:$0xf]
        %v399 = vld [vmem:[%s293 + $0x6c] sm:$0xf]
        %v400 = vld [vmem:[%s293 + $0x70] sm:$0xf]
        %v401 = vld [vmem:[%s293 + $0x74] sm:$0xf]
        %v402 = vld [vmem:[%s293 + $0x78] sm:$0xf]
        %v403 = vld [vmem:[%s293 + $0x7c] sm:$0xf]
        %v404 = vld [vmem:[%s293 + $0x80] sm:$0xf]
        %v405 = vld [vmem:[%s293 + $0x84] sm:$0xf]
        %v406 = vld [vmem:[%s293 + $0x88] sm:$0xf]
        %v407 = vld [vmem:[%s293 + $0x8c] sm:$0xf]
        %v408 = vld [vmem:[%s293 + $0x90] sm:$0xf]
        %v409 = vld [vmem:[%s293 + $0x94] sm:$0xf]
        %v410 = vld [vmem:[%s293 + $0x98] sm:$0xf]
        %v411 = vld [vmem:[%s293 + $0x9c] sm:$0xf]
        %v412 = vld [vmem:[%s293 + $0xa0] sm:$0xf]
        %v413 = vld [vmem:[%s293 + $0xa4] sm:$0xf]
        %v414 = vld [vmem:[%s293 + $0xa8] sm:$0xf]
        %v415 = vld [vmem:[%s293 + $0xac] sm:$0xf]
        %v416 = vld [vmem:[%s293 + $0xb0] sm:$0xf]
        %v417 = vld [vmem:[%s293 + $0xb4] sm:$0xf]
        %v418 = vld [vmem:[%s293 + $0xb8] sm:$0xf]
        %v419 = vld [vmem:[%s293 + $0xbc] sm:$0xf]
        %v452 = vunpack.c.l.b16 %v340
        %v453 = vunpack.c.h.b16 %v340
        %v454 = vunpack.c.l.b16 %v341
        %v455 = vunpack.c.l.b16 %v342
        %v456 = vunpack.c.h.b16 %v342
        %v457 = vunpack.c.l.b16 %v343
        %v458 = vunpack.c.l.b16 %v344
        %v459 = vunpack.c.h.b16 %v344
        %v460 = vunpack.c.l.b16 %v345
        %v461 = vunpack.c.l.b16 %v346
        %v462 = vunpack.c.h.b16 %v346
        %v463 = vunpack.c.l.b16 %v347
        %v464 = vunpack.c.l.b16 %v348
        %v465 = vunpack.c.h.b16 %v348
        %v466 = vunpack.c.l.b16 %v349
        %v467 = vunpack.c.l.b16 %v350
        %v468 = vunpack.c.h.b16 %v350
        %v469 = vunpack.c.l.b16 %v351
        %v470 = vunpack.c.l.b16 %v352
        %v471 = vunpack.c.h.b16 %v352
        %v472 = vunpack.c.l.b16 %v353
        %v473 = vunpack.c.l.b16 %v354
        %v474 = vunpack.c.h.b16 %v354
        %v475 = vunpack.c.l.b16 %v355
        %v476 = vunpack.c.l.b16 %v356
        %v477 = vunpack.c.h.b16 %v356
        %v478 = vunpack.c.l.b16 %v357
        %v479 = vunpack.c.l.b16 %v358
        %v480 = vunpack.c.h.b16 %v358
        %v481 = vunpack.c.l.b16 %v359
        %v482 = vunpack.c.l.b16 %v360
        %v483 = vunpack.c.h.b16 %v360
        %v484 = vunpack.c.l.b16 %v361
        %v485 = vunpack.c.l.b16 %v362
        %v486 = vunpack.c.h.b16 %v362
        %v487 = vunpack.c.l.b16 %v363
        %v488 = vunpack.c.l.b16 %v364
        %v489 = vunpack.c.h.b16 %v364
        %v490 = vunpack.c.l.b16 %v365
        %v491 = vunpack.c.l.b16 %v366
        %v492 = vunpack.c.h.b16 %v366
        %v493 = vunpack.c.l.b16 %v367
        %v494 = vunpack.c.l.b16 %v368
        %v495 = vunpack.c.h.b16 %v368
        %v496 = vunpack.c.l.b16 %v369
        %v497 = vunpack.c.l.b16 %v370
        %v498 = vunpack.c.h.b16 %v370
        %v499 = vunpack.c.l.b16 %v371
        %v500 = vpack.c.b16 %v455, %v452
        %v501 = vpack.c.b16 %v456, %v453
        %v502 = vpack.c.b16 %v457, %v454
        %v503 = vpack.c.b16 %v461, %v458
        %v504 = vpack.c.b16 %v462, %v459
        %v505 = vpack.c.b16 %v463, %v460
        %v506 = vpack.c.b16 %v467, %v464
        %v507 = vpack.c.b16 %v468, %v465
        %v508 = vpack.c.b16 %v469, %v466
        %v509 = vpack.c.b16 %v473, %v470
        %v510 = vpack.c.b16 %v474, %v471
        %v511 = vpack.c.b16 %v475, %v472
        %v512 = vpack.c.b16 %v479, %v476
        %v513 = vpack.c.b16 %v480, %v477
        %v514 = vpack.c.b16 %v481, %v478
        %v515 = vpack.c.b16 %v485, %v482
        %v516 = vpack.c.b16 %v486, %v483
        %v517 = vpack.c.b16 %v487, %v484
        %v518 = vpack.c.b16 %v491, %v488
        %v519 = vpack.c.b16 %v492, %v489
        %v520 = vpack.c.b16 %v493, %v490
        %v521 = vpack.c.b16 %v497, %v494
        %v522 = vpack.c.b16 %v498, %v495
        %v523 = vpack.c.b16 %v499, %v496
        %v596 = vunpack.c.l.b16 %v372
        %v597 = vunpack.c.l.b16 %v373
        %v598 = vunpack.c.l.b16 %v374
        %v599 = vunpack.c.l.b16 %v375
        %v600 = vunpack.c.l.b16 %v376
        %v601 = vunpack.c.l.b16 %v377
        %v602 = vunpack.c.l.b16 %v378
        %v603 = vunpack.c.l.b16 %v379
        %v604 = vunpack.c.l.b16 %v380
        %v605 = vunpack.c.l.b16 %v381
        %v606 = vunpack.c.l.b16 %v382
        %v607 = vunpack.c.l.b16 %v383
        %v608 = vunpack.c.l.b16 %v384
        %v609 = vunpack.c.l.b16 %v385
        %v610 = vunpack.c.l.b16 %v386
        %v611 = vunpack.c.l.b16 %v387
        %v612 = vunpack.c.l.b16 %v388
        %v613 = vunpack.c.l.b16 %v389
        %v614 = vunpack.c.l.b16 %v390
        %v615 = vunpack.c.l.b16 %v391
        %v616 = vunpack.c.l.b16 %v392
        %v617 = vunpack.c.l.b16 %v393
        %v618 = vunpack.c.l.b16 %v394
        %v619 = vunpack.c.l.b16 %v395
        %v620 = vunpack.c.l.b16 %v396
        %v621 = vunpack.c.l.b16 %v397
        %v622 = vunpack.c.l.b16 %v398
        %v623 = vunpack.c.l.b16 %v399
        %v624 = vunpack.c.l.b16 %v400
        %v625 = vunpack.c.l.b16 %v401
        %v626 = vunpack.c.l.b16 %v402
        %v627 = vunpack.c.l.b16 %v403
        %v628 = vunpack.c.l.b16 %v404
        %v629 = vunpack.c.l.b16 %v405
        %v630 = vunpack.c.l.b16 %v406
        %v631 = vunpack.c.l.b16 %v407
        %v632 = vunpack.c.l.b16 %v408
        %v633 = vunpack.c.l.b16 %v409
        %v634 = vunpack.c.l.b16 %v410
        %v635 = vunpack.c.l.b16 %v411
        %v636 = vunpack.c.l.b16 %v412
        %v637 = vunpack.c.l.b16 %v413
        %v638 = vunpack.c.l.b16 %v414
        %v639 = vunpack.c.l.b16 %v415
        %v640 = vunpack.c.l.b16 %v416
        %v641 = vunpack.c.l.b16 %v417
        %v642 = vunpack.c.l.b16 %v418
        %v643 = vunpack.c.l.b16 %v419
        %v644 = vpack.c.b16 %v597, %v596
        %v645 = vpack.c.b16 %v599, %v598
        %v646 = vpack.c.b16 %v601, %v600
        %v647 = vpack.c.b16 %v603, %v602
        %v648 = vpack.c.b16 %v605, %v604
        %v649 = vpack.c.b16 %v607, %v606
        %v650 = vpack.c.b16 %v609, %v608
        %v651 = vpack.c.b16 %v611, %v610
        %v652 = vpack.c.b16 %v613, %v612
        %v653 = vpack.c.b16 %v615, %v614
        %v654 = vpack.c.b16 %v617, %v616
        %v655 = vpack.c.b16 %v619, %v618
        %v656 = vpack.c.b16 %v621, %v620
        %v657 = vpack.c.b16 %v623, %v622
        %v658 = vpack.c.b16 %v625, %v624
        %v659 = vpack.c.b16 %v627, %v626
        %v660 = vpack.c.b16 %v629, %v628
        %v661 = vpack.c.b16 %v631, %v630
        %v662 = vpack.c.b16 %v633, %v632
        %v663 = vpack.c.b16 %v635, %v634
        %v664 = vpack.c.b16 %v637, %v636
        %v665 = vpack.c.b16 %v639, %v638
        %v666 = vpack.c.b16 %v641, %v640
        %v667 = vpack.c.b16 %v643, %v642
        %692 = vmatpush.bf16.msra.mxu0 %v651
        %693 = vmatpush.bf16.msra.mxu0 %v650
        %694 = vmatpush.bf16.msra.mxu0 %v649
        %695 = vmatpush.bf16.msra.mxu0 %v648
        %696 = vmatpush.bf16.msra.mxu0 %v647
        %697 = vmatpush.bf16.msra.mxu0 %v646
        %698 = vmatpush.bf16.msra.mxu0 %v645
        %699 = vmatpush.bf16.msra.mxu0 %v644
        %700 = vmatmul.bf16.gmra.mxu0 %v500
        %v701 = vpop.f32.mrf.mxu0
        %v702 = vadd.f32 0.0, %v701
        %v703 = vpop.f32.mrf.mxu0
        %v704 = vadd.f32 0.0, %v703
        %705 = vmatmul.bf16.gmra.mxu0 %v503
        %v706 = vpop.f32.mrf.mxu0
        %v707 = vadd.f32 0.0, %v706
        %v708 = vpop.f32.mrf.mxu0
        %v709 = vadd.f32 0.0, %v708
        %710 = vmatmul.bf16.gmra.mxu0 %v506
        %v711 = vpop.f32.mrf.mxu0
        %v712 = vadd.f32 0.0, %v711
        %v713 = vpop.f32.mrf.mxu0
        %v714 = vadd.f32 0.0, %v713
        %715 = vmatmul.bf16.gmra.mxu0 %v509
        %v716 = vpop.f32.mrf.mxu0
        %v717 = vadd.f32 0.0, %v716
        %v718 = vpop.f32.mrf.mxu0
        %v719 = vadd.f32 0.0, %v718
        %720 = vmatmul.bf16.gmra.mxu0 %v512
        %v721 = vpop.f32.mrf.mxu0
        %v722 = vadd.f32 0.0, %v721
        %v723 = vpop.f32.mrf.mxu0
        %v724 = vadd.f32 0.0, %v723
        %725 = vmatmul.bf16.gmra.mxu0 %v515
        %v726 = vpop.f32.mrf.mxu0
        %v727 = vadd.f32 0.0, %v726
        %v728 = vpop.f32.mrf.mxu0
        %v729 = vadd.f32 0.0, %v728
        %730 = vmatmul.bf16.gmra.mxu0 %v518
        %v731 = vpop.f32.mrf.mxu0
        %v732 = vadd.f32 0.0, %v731
        %v733 = vpop.f32.mrf.mxu0
        %v734 = vadd.f32 0.0, %v733
        %735 = vmatmul.bf16.gmra.mxu0 %v521
        %v736 = vpop.f32.mrf.mxu0
        %v737 = vadd.f32 0.0, %v736
        %v738 = vpop.f32.mrf.mxu0
        %v739 = vadd.f32 0.0, %v738
        %740 = vdwg.mxu0
        %741 = vmatpush.bf16.msra.mxu0 %v659
        %742 = vmatpush.bf16.msra.mxu0 %v658
        %743 = vmatpush.bf16.msra.mxu0 %v657
        %744 = vmatpush.bf16.msra.mxu0 %v656
        %745 = vmatpush.bf16.msra.mxu0 %v655
        %746 = vmatpush.bf16.msra.mxu0 %v654
        %747 = vmatpush.bf16.msra.mxu0 %v653
        %748 = vmatpush.bf16.msra.mxu0 %v652
        %749 = vmatmul.bf16.gmra.mxu0 %v501
        %v750 = vpop.f32.mrf.mxu0
        %v751 = vadd.f32 %v702, %v750
        %v752 = vpop.f32.mrf.mxu0
        %v753 = vadd.f32 %v704, %v752
        %754 = vmatmul.bf16.gmra.mxu0 %v504
        %v755 = vpop.f32.mrf.mxu0
        %v756 = vadd.f32 %v707, %v755
        %v757 = vpop.f32.mrf.mxu0
        %v758 = vadd.f32 %v709, %v757
        %759 = vmatmul.bf16.gmra.mxu0 %v507
        %v760 = vpop.f32.mrf.mxu0
        %v761 = vadd.f32 %v712, %v760
        %v762 = vpop.f32.mrf.mxu0
        %v763 = vadd.f32 %v714, %v762
        %764 = vmatmul.bf16.gmra.mxu0 %v510
        %v765 = vpop.f32.mrf.mxu0
        %v766 = vadd.f32 %v717, %v765
        %v767 = vpop.f32.mrf.mxu0
        %v768 = vadd.f32 %v719, %v767
        %769 = vmatmul.bf16.gmra.mxu0 %v513
        %v770 = vpop.f32.mrf.mxu0
        %v771 = vadd.f32 %v722, %v770
        %v772 = vpop.f32.mrf.mxu0
        %v773 = vadd.f32 %v724, %v772
        %774 = vmatmul.bf16.gmra.mxu0 %v516
        %v775 = vpop.f32.mrf.mxu0
        %v776 = vadd.f32 %v727, %v775
        %v777 = vpop.f32.mrf.mxu0
        %v778 = vadd.f32 %v729, %v777
        %779 = vmatmul.bf16.gmra.mxu0 %v519
        %v780 = vpop.f32.mrf.mxu0
        %v781 = vadd.f32 %v732, %v780
        %v782 = vpop.f32.mrf.mxu0
        %v783 = vadd.f32 %v734, %v782
        %784 = vmatmul.bf16.gmra.mxu0 %v522
        %v785 = vpop.f32.mrf.mxu0
        %v786 = vadd.f32 %v737, %v785
        %v787 = vpop.f32.mrf.mxu0
        %v788 = vadd.f32 %v739, %v787
        %789 = vdwg.mxu0
        %790 = vmatpush.bf16.msra.mxu0 %v667
        %791 = vmatpush.bf16.msra.mxu0 %v666
        %792 = vmatpush.bf16.msra.mxu0 %v665
        %793 = vmatpush.bf16.msra.mxu0 %v664
        %794 = vmatpush.bf16.msra.mxu0 %v663
        %795 = vmatpush.bf16.msra.mxu0 %v662
        %796 = vmatpush.bf16.msra.mxu0 %v661
        %797 = vmatpush.bf16.msra.mxu0 %v660
        %798 = vmatmul.bf16.gmra.mxu0 %v502
        %v799 = vpop.f32.mrf.mxu0
        %v800 = vadd.f32 %v751, %v799
        %v801 = vpop.f32.mrf.mxu0
        %v802 = vadd.f32 %v753, %v801
        %803 = vmatmul.bf16.gmra.mxu0 %v505
        %v804 = vpop.f32.mrf.mxu0
        %v805 = vadd.f32 %v756, %v804
        %v806 = vpop.f32.mrf.mxu0
        %v807 = vadd.f32 %v758, %v806
        %808 = vmatmul.bf16.gmra.mxu0 %v508
        %v809 = vpop.f32.mrf.mxu0
        %v810 = vadd.f32 %v761, %v809
        %v811 = vpop.f32.mrf.mxu0
        %v812 = vadd.f32 %v763, %v811
        %813 = vmatmul.bf16.gmra.mxu0 %v511
        %v814 = vpop.f32.mrf.mxu0
        %v815 = vadd.f32 %v766, %v814
        %v816 = vpop.f32.mrf.mxu0
        %v817 = vadd.f32 %v768, %v816
        %818 = vmatmul.bf16.gmra.mxu0 %v514
        %v819 = vpop.f32.mrf.mxu0
        %v820 = vadd.f32 %v771, %v819
        %v821 = vpop.f32.mrf.mxu0
        %v822 = vadd.f32 %v773, %v821
        %823 = vmatmul.bf16.gmra.mxu0 %v517
        %v824 = vpop.f32.mrf.mxu0
        %v825 = vadd.f32 %v776, %v824
        %v826 = vpop.f32.mrf.mxu0
        %v827 = vadd.f32 %v778, %v826
        %828 = vmatmul.bf16.gmra.mxu0 %v520
        %v829 = vpop.f32.mrf.mxu0
        %v830 = vadd.f32 %v781, %v829
        %v831 = vpop.f32.mrf.mxu0
        %v832 = vadd.f32 %v783, %v831
        %833 = vmatmul.bf16.gmra.mxu0 %v523
        %v834 = vpop.f32.mrf.mxu0
        %v835 = vadd.f32 %v786, %v834
        %v836 = vpop.f32.mrf.mxu0
        %v837 = vadd.f32 %v788, %v836
        %838 = vdwg.mxu0
        %v839 = vadd.f32 %v324, %v800
        %v840 = vadd.f32 %v325, %v802
        %v841 = vadd.f32 %v326, %v805
        %v842 = vadd.f32 %v327, %v807
        %v843 = vadd.f32 %v328, %v810
        %v844 = vadd.f32 %v329, %v812
        %v845 = vadd.f32 %v330, %v815
        %v846 = vadd.f32 %v331, %v817
        %v847 = vadd.f32 %v332, %v820
        %v848 = vadd.f32 %v333, %v822
        %v849 = vadd.f32 %v334, %v825
        %v850 = vadd.f32 %v335, %v827
        %v851 = vadd.f32 %v336, %v830
        %v852 = vadd.f32 %v337, %v832
        %v853 = vadd.f32 %v338, %v835
        %v854 = vadd.f32 %v339, %v837
        %855 = vst [vmem:[#allocation2] sm:$0xff] %v839
        %856 = vst [vmem:[#allocation2 + $0x8] sm:$0xff] %v840
        %857 = vst [vmem:[#allocation2 + $0x10] sm:$0xff] %v841
        %858 = vst [vmem:[#allocation2 + $0x18] sm:$0xff] %v842
        %859 = vst [vmem:[#allocation2 + $0x20] sm:$0xff] %v843
        %860 = vst [vmem:[#allocation2 + $0x28] sm:$0xff] %v844
        %861 = vst [vmem:[#allocation2 + $0x30] sm:$0xff] %v845
        %862 = vst [vmem:[#allocation2 + $0x38] sm:$0xff] %v846
        %863 = vst [vmem:[#allocation2 + $0x40] sm:$0xff] %v847
        %864 = vst [vmem:[#allocation2 + $0x48] sm:$0xff] %v848
        %865 = vst [vmem:[#allocation2 + $0x50] sm:$0xff] %v849
        %866 = vst [vmem:[#allocation2 + $0x58] sm:$0xff] %v850
        %867 = vst [vmem:[#allocation2 + $0x60] sm:$0xff] %v851
        %868 = vst [vmem:[#allocation2 + $0x68] sm:$0xff] %v852
        %869 = vst [vmem:[#allocation2 + $0x70] sm:$0xff] %v853
        %870 = vst [vmem:[#allocation2 + $0x78] sm:$0xff] %v854
        %p871 = scmp.eq.s32.totalorder %s20, 2
        // Predicated region
        $region59: #{residual_block_forward.7} parent=49 // pred_check
          %p872 = pneg %p871
        $region60: #{residual_block_forward.7} parent=49 // pred_check_branch
          %874 = sbr.rel (%p872) target = $region62
        $region61: #{residual_block_forward.7} parent=49 // pred_region
          %v875 = vld [vmem:[#allocation2] sm:$0xff]
          %v876 = vld [vmem:[#allocation2 + $0x8] sm:$0xff]
          %v877 = vld [vmem:[#allocation2 + $0x10] sm:$0xff]
          %v878 = vld [vmem:[#allocation2 + $0x18] sm:$0xff]
          %v879 = vld [vmem:[#allocation2 + $0x20] sm:$0xff]
          %v880 = vld [vmem:[#allocation2 + $0x28] sm:$0xff]
          %v881 = vld [vmem:[#allocation2 + $0x30] sm:$0xff]
          %v882 = vld [vmem:[#allocation2 + $0x38] sm:$0xff]
          %v883 = vld [vmem:[#allocation2 + $0x40] sm:$0xff]
          %v884 = vld [vmem:[#allocation2 + $0x48] sm:$0xff]
          %v885 = vld [vmem:[#allocation2 + $0x50] sm:$0xff]
          %v886 = vld [vmem:[#allocation2 + $0x58] sm:$0xff]
          %v887 = vld [vmem:[#allocation2 + $0x60] sm:$0xff]
          %v888 = vld [vmem:[#allocation2 + $0x68] sm:$0xff]
          %v889 = vld [vmem:[#allocation2 + $0x70] sm:$0xff]
          %v890 = vld [vmem:[#allocation2 + $0x78] sm:$0xff]
          %891 = vst [vmem:[%s302] sm:$0xff] %v875
          %892 = vst [vmem:[%s302 + $0x8] sm:$0xff] %v876
          %893 = vst [vmem:[%s302 + $0x10] sm:$0xff] %v877
          %894 = vst [vmem:[%s302 + $0x18] sm:$0xff] %v878
          %895 = vst [vmem:[%s302 + $0x20] sm:$0xff] %v879
          %896 = vst [vmem:[%s302 + $0x28] sm:$0xff] %v880
          %897 = vst [vmem:[%s302 + $0x30] sm:$0xff] %v881
          %898 = vst [vmem:[%s302 + $0x38] sm:$0xff] %v882
          %899 = vst [vmem:[%s302 + $0x40] sm:$0xff] %v883
          %900 = vst [vmem:[%s302 + $0x48] sm:$0xff] %v884
          %901 = vst [vmem:[%s302 + $0x50] sm:$0xff] %v885
          %902 = vst [vmem:[%s302 + $0x58] sm:$0xff] %v886
          %903 = vst [vmem:[%s302 + $0x60] sm:$0xff] %v887
          %904 = vst [vmem:[%s302 + $0x68] sm:$0xff] %v888
          %905 = vst [vmem:[%s302 + $0x70] sm:$0xff] %v889
          %906 = vst [vmem:[%s302 + $0x78] sm:$0xff] %v890
        $region62: #{residual_block_forward.7} parent=49 // pred_fallthru
          _
        %s907 = smul.u32 16, %s18
        %p908 = scmp.lt.s32.totalorder %s907, 15
        %s909 = scalar_select %p908, %s907, 15
        %p910 = scmp.lt.s32.totalorder %s19, 0
        %s911 = scalar_select %p910, %s19, 0
        %s912 = sadd.s32 %s911, %s909
        %s913 = smul.addr %s912, 8
        %s914 = scalar_lea.vmem %s2, %s913
        // Predicated region
        $region63: #{residual_block_forward.7} parent=49 // pred_check
          %p915 = pneg %p108
        $region64: #{residual_block_forward.7} parent=49 // pred_check_branch
          %917 = sbr.rel (%p915) target = $region66
        $region65: #{residual_block_forward.7} parent=49 // pred_region
          %s918 = smul.u32 16, %s18
        $region66: #{residual_block_forward.7} parent=49 // pred_fallthru
          _
        // Predicated region
        $region67: #{residual_block_forward.7} parent=49 // pred_check
          %p919 = pneg %p108
        $region68: #{residual_block_forward.7} parent=49 // pred_check_branch
          %921 = sbr.rel (%p919) target = $region70
        $region69: #{residual_block_forward.7} parent=49 // pred_region
          %s922 = smul.u32 16, %s18
          %p923 = scmp.lt.s32.totalorder %s922, 15
          %s924 = scalar_select %p923, %s922, 15
          %p925 = scmp.lt.s32.totalorder %s19, 0
          %s926 = scalar_select %p925, %s19, 0
          %s927 = sadd.s32 %s926, %s924
          %s928 = smul.addr %s927, 8
          %s929 = scalar_lea.vmem %s2, %s928
        $region70: #{residual_block_forward.7} parent=49 // pred_fallthru
          _
      $region50: #{residual_block_forward.7} parent=5 // pred_fallthru
        _
      %p930 = scmp.le.s32.totalorder 2, %s8
      // Predicated region
      $region71: #{residual_block_forward.7} parent=5 // pred_check
        %p931 = pneg %p930
      $region72: #{residual_block_forward.7} parent=5 // pred_check_branch
        %933 = sbr.rel (%p931) target = $region74
      $region73: #{residual_block_forward.7} parent=5 // pred_region
        %s934 = ssub.s32 %s8, 2
      $region74: #{residual_block_forward.7} parent=5 // pred_fallthru
        _
    $region6: #{residual_block_forward.7} parent=1 // loop_footer
      %s12 = sadd.s32 1, %s8
    $region7: #{residual_block_forward.7} parent=1 // loop_footer_branch
      %7 = sbr.rel target = $region3
    $region8: #{residual_block_forward.7} parent=1 // loop_exit
      _

// kernel: residual_block_forward.9
$region0: #{residual_block_forward.9}
  #allocation0 [shape = 'u32[]', space=smem, size = 0x4, offset = 0x4, fixed_abs, tag = 'smem constant byte address 0x4 - core index']
  #allocation1 [shape = 'u32[72,128]{1,0:T(1,128)}', space=vmem, size = 0x9000, scoped, tag = 'internal scratch']
  #allocation2 [shape = 'f32[10,10,128]{2,1,0:T(8,128)}', space=vmem, size = 0x14000, scoped, tag = 'scratch operand']
  %s0 = inlined_call_operand.vmem [shape: f32[2,8,8,128], index: 0, kind: input, shape index: {}]
  %s1 = inlined_call_operand.vmem [shape: f32[1,128], index: 1, kind: input, shape index: {}]
  %s2 = inlined_call_operand.vmem [shape: f32[1,128], index: 2, kind: input, shape index: {}]
  %s3 = inlined_call_operand.vmem [shape: bf16[3,3,128,128], index: 3, kind: input, shape index: {}]
  %s4 = inlined_call_operand.vmem [shape: f32[2,64,128], index: 4, kind: input, shape index: {}]
  %s5 = inlined_call_operand.vmem [shape: bf16[128,128], index: 5, kind: input, shape index: {}]
  %s6 = inlined_call_operand.vmem [shape: f32[2,64,128], index: 6, kind: output, shape index: {}]
  %s7 = sld [smem:[#allocation0]]
  $region57: #{residual_block_forward.9} parent=0
    _
  %s9 = ssub.s32 1, %s7
  %s10 = scalar_select 0, %s9, %s7
  loop: start=0, step=1, limit=4
  $region2: #{residual_block_forward.9} parent=0 // loop_pre_header
    _
  $region3: #{residual_block_forward.9} parent=0 // loop_header
    %s12 = sphi 0, %s16
    %p13 = scmp.ge.s32.totalorder %s12, 4
    %s19 = sphi 0, %s31
    %s20 = sphi 0, %s27
    %s21 = sphi 0, %s19
    %s22 = sphi 0, %s20
    %s23 = sphi 0, %s21
    %s24 = sphi 0, %s22
    %s34 = sphi 0, %s36
    %s37 = sphi 0, %s34
    %s38 = sphi 0, %s37
    %s54 = sphi 0, %s38
    %s58 = sphi 0, %s58
    %s60 = sphi 0, %s58
    %s61 = sphi 0, %s60
    %s75 = sphi 0, %s61
    %s79 = sphi 0, %s79
    %s81 = sphi 0, %s79
    %s82 = sphi 0, %s81
    %s96 = sphi 0, %s82
    %s102 = sphi 0, %s104
    %s105 = sphi 0, %s102
    %s106 = sphi 0, %s105
    %s122 = sphi 0, %s106
    %s128 = sphi 0, %s130
    %s131 = sphi 0, %s128
    %s132 = sphi 0, %s131
    %s148 = sphi 0, %s132
    %s154 = sphi 0, %s156
    %s157 = sphi 0, %s154
    %s158 = sphi 0, %s157
    %s174 = sphi 0, %s158
    %s182 = sphi 0, %s184
    %s185 = sphi 0, %s182
    %s186 = sphi 0, %s185
    %s202 = sphi 0, %s186
  $region4: #{residual_block_forward.9} parent=0 // loop_header_branch
    %15 = sbr.rel (%p13) target = $region8
  $region5: #{residual_block_forward.9} parent=0 // loop_body
    %s17 = ssub.s32 %s12, 1
    %s18 = ssub.s32 %s12, 2
    %s25 = sadd.s32 1, %s20
    %p26 = scmp.ge.s32.totalorder %s25, 1
    %s27 = scalar_select %p26, 0, %s25
    %s28 = sadd.s32 1, %s19
    %s29 = scalar_select %p26, %s28, %s19
    %p30 = scmp.ge.s32.totalorder %s29, 2
    %s31 = scalar_select %p30, 0, %s29
    %s32 = ssub.s32 %s19, %s31
    %p33 = scmp.eq.s32.totalorder %s32, 0
    %s35 = sadd.s32 %s34, 1
    %s36 = scalar_select %p33, %s34, %s35
    %p39 = pneg %p33
    %p40 = scmp.eq.s32.totalorder %s12, 1
    %p41 = por %p39, %p40
    %p42 = scmp.ne.s32.totalorder %s34, %s37
    %p43 = scmp.eq.s32.totalorder %s12, 0
    %p44 = por %p42, %p43
    %p45 = scmp.ne.s32.totalorder %s34, %s37
    %p46 = scmp.eq.s32.totalorder %s17, 1
    %p47 = por %p45, %p46
    %p48 = scmp.ne.s32.totalorder %s37, %s38
    %p49 = scmp.eq.s32.totalorder %s17, 0
    %p50 = por %p48, %p49
    %p51 = scmp.ne.s32.totalorder %s37, %s38
    %p52 = scmp.eq.s32.totalorder %s18, 1
    %p53 = por %p51, %p52
    %p55 = scmp.ne.s32.totalorder %s38, %s54
    %p56 = scmp.eq.s32.totalorder %s18, 0
    %p57 = por %p55, %p56
    %s59 = sadd.s32 %s58, 1
    %p62 = scmp.eq.s32.totalorder %s12, 1
    %p63 = scmp.ne.s32.totalorder %s58, %s60
    %p64 = scmp.eq.s32.totalorder %s12, 0
    %p65 = por %p63, %p64
    %p66 = scmp.ne.s32.totalorder %s58, %s60
    %p67 = scmp.eq.s32.totalorder %s17, 1
    %p68 = por %p66, %p67
    %p69 = scmp.ne.s32.totalorder %s60, %s61
    %p70 = scmp.eq.s32.totalorder %s17, 0
    %p71 = por %p69, %p70
    %p72 = scmp.ne.s32.totalorder %s60, %s61
    %p73 = scmp.eq.s32.totalorder %s18, 1
    %p74 = por %p72, %p73
    %p76 = scmp.ne.s32.totalorder %s61, %s75
    %p77 = scmp.eq.s32.totalorder %s18, 0
    %p78 = por %p76, %p77
    %s80 = sadd.s32 %s79, 1
    %p83 = scmp.eq.s32.totalorder %s12, 1
    %p84 = scmp.ne.s32.totalorder %s79, %s81
    %p85 = scmp.eq.s32.totalorder %s12, 0
    %p86 = por %p84, %p85
    %p87 = scmp.ne.s32.totalorder %s79, %s81
    %p88 = scmp.eq.s32.totalorder %s17, 1
    %p89 = por %p87, %p88
    %p90 = scmp.ne.s32.totalorder %s81, %s82
    %p91 = scmp.eq.s32.totalorder %s17, 0
    %p92 = por %p90, %p91
    %p93 = scmp.ne.s32.totalorder %s81, %s82
    %p94 = scmp.eq.s32.totalorder %s18, 1
    %p95 = por %p93, %p94
    %p97 = scmp.ne.s32.totalorder %s82, %s96
    %p98 = scmp.eq.s32.totalorder %s18, 0
    %p99 = por %p97, %p98
    %s100 = ssub.s32 %s20, %s27
    %p101 = scmp.eq.s32.totalorder %s100, 0
    %s103 = sadd.s32 %s102, 1
    %s104 = scalar_select %p101, %s102, %s103
    %p107 = pneg %p101
    %p108 = scmp.eq.s32.totalorder %s12, 1
    %p109 = por %p107, %p108
    %p110 = scmp.ne.s32.totalorder %s102, %s105
    %p111 = scmp.eq.s32.totalorder %s12, 0
    %p112 = por %p110, %p111
    %p113 = scmp.ne.s32.totalorder %s102, %s105
    %p114 = scmp.eq.s32.totalorder %s17, 1
    %p115 = por %p113, %p114
    %p116 = scmp.ne.s32.totalorder %s105, %s106
    %p117 = scmp.eq.s32.totalorder %s17, 0
    %p118 = por %p116, %p117
    %p119 = scmp.ne.s32.totalorder %s105, %s106
    %p120 = scmp.eq.s32.totalorder %s18, 1
    %p121 = por %p119, %p120
    %p123 = scmp.ne.s32.totalorder %s106, %s122
    %p124 = scmp.eq.s32.totalorder %s18, 0
    %p125 = por %p123, %p124
    %s126 = ssub.s32 %s19, %s31
    %p127 = scmp.eq.s32.totalorder %s126, 0
    %s129 = sadd.s32 %s128, 1
    %s130 = scalar_select %p127, %s128, %s129
    %p133 = pneg %p127
    %p134 = scmp.eq.s32.totalorder %s12, 1
    %p135 = por %p133, %p134
    %p136 = scmp.ne.s32.totalorder %s128, %s131
    %p137 = scmp.eq.s32.totalorder %s12, 0
    %p138 = por %p136, %p137
    %p139 = scmp.ne.s32.totalorder %s128, %s131
    %p140 = scmp.eq.s32.totalorder %s17, 1
    %p141 = por %p139, %p140
    %p142 = scmp.ne.s32.totalorder %s131, %s132
    %p143 = scmp.eq.s32.totalorder %s17, 0
    %p144 = por %p142, %p143
    %p145 = scmp.ne.s32.totalorder %s131, %s132
    %p146 = scmp.eq.s32.totalorder %s18, 1
    %p147 = por %p145, %p146
    %p149 = scmp.ne.s32.totalorder %s132, %s148
    %p150 = scmp.eq.s32.totalorder %s18, 0
    %p151 = por %p149, %p150
    %s152 = ssub.s32 %s20, %s27
    %p153 = scmp.eq.s32.totalorder %s152, 0
    %s155 = sadd.s32 %s154, 1
    %s156 = scalar_select %p153, %s154, %s155
    %p159 = pneg %p153
    %p160 = scmp.eq.s32.totalorder %s12, 1
    %p161 = por %p159, %p160
    %p162 = scmp.ne.s32.totalorder %s154, %s157
    %p163 = scmp.eq.s32.totalorder %s12, 0
    %p164 = por %p162, %p163
    %p165 = scmp.ne.s32.totalorder %s154, %s157
    %p166 = scmp.eq.s32.totalorder %s17, 1
    %p167 = por %p165, %p166
    %p168 = scmp.ne.s32.totalorder %s157, %s158
    %p169 = scmp.eq.s32.totalorder %s17, 0
    %p170 = por %p168, %p169
    %p171 = scmp.ne.s32.totalorder %s157, %s158
    %p172 = scmp.eq.s32.totalorder %s18, 1
    %p173 = por %p171, %p172
    %p175 = scmp.ne.s32.totalorder %s158, %s174
    %p176 = scmp.eq.s32.totalorder %s18, 0
    %p177 = por %p175, %p176
    %s178 = ssub.s32 %s19, %s31
    %s179 = ssub.s32 %s20, %s27
    %s180 = sor.u32 %s178, %s179
    %p181 = scmp.eq.s32.totalorder %s180, 0
    %s183 = sadd.s32 %s182, 1
    %s184 = scalar_select %p181, %s182, %s183
    %p187 = pneg %p181
    %p188 = scmp.eq.s32.totalorder %s12, 1
    %p189 = por %p187, %p188
    %p190 = scmp.ne.s32.totalorder %s182, %s185
    %p191 = scmp.eq.s32.totalorder %s12, 0
    %p192 = por %p190, %p191
    %p193 = scmp.ne.s32.totalorder %s182, %s185
    %p194 = scmp.eq.s32.totalorder %s17, 1
    %p195 = por %p193, %p194
    %p196 = scmp.ne.s32.totalorder %s185, %s186
    %p197 = scmp.eq.s32.totalorder %s17, 0
    %p198 = por %p196, %p197
    %p199 = scmp.ne.s32.totalorder %s185, %s186
    %p200 = scmp.eq.s32.totalorder %s18, 1
    %p201 = por %p199, %p200
    %p203 = scmp.ne.s32.totalorder %s186, %s202
    %p204 = scmp.eq.s32.totalorder %s18, 0
    %p205 = por %p203, %p204
    %p206 = scmp.le.s32.totalorder 1, %s12
    %p207 = scmp.lt.s32.totalorder %s12, 3
    %p208 = pnand %p206, %p207
    %p209 = pneg %p208
    // Predicated region
    $region9: #{residual_block_forward.9} parent=5 // pred_check
      _
    $region10: #{residual_block_forward.9} parent=5 // pred_check_branch
      %211 = sbr.rel (%p208) target = $region12
    $region11: #{residual_block_forward.9} parent=5 // pred_region
      %s212 = ssub.s32 %s12, 1
      // Predicated region
      $region13: #{residual_block_forward.9} parent=11 // pred_check
        %p213 = pneg %p71
      $region14: #{residual_block_forward.9} parent=11 // pred_check_branch
        %215 = sbr.rel (%p213) target = $region16
      $region15: #{residual_block_forward.9} parent=11 // pred_region
        _
      $region16: #{residual_block_forward.9} parent=11 // pred_fallthru
        _
      // Predicated region
      $region17: #{residual_block_forward.9} parent=11 // pred_check
        %p216 = pneg %p92
      $region18: #{residual_block_forward.9} parent=11 // pred_check_branch
        %218 = sbr.rel (%p216) target = $region20
      $region19: #{residual_block_forward.9} parent=11 // pred_region
        _
      $region20: #{residual_block_forward.9} parent=11 // pred_fallthru
        _
      // Predicated region
      $region21: #{residual_block_forward.9} parent=11 // pred_check
        %p219 = pneg %p118
      $region22: #{residual_block_forward.9} parent=11 // pred_check_branch
        %221 = sbr.rel (%p219) target = $region24
      $region23: #{residual_block_forward.9} parent=11 // pred_region
        %p222 = scmp.lt.s32.totalorder %s22, 0
        %s223 = scalar_select %p222, %s22, 0
        %s224 = smul.addr %s223, 4
        %s225 = scalar_lea.vmem %s3, %s224
      $region24: #{residual_block_forward.9} parent=11 // pred_fallthru
        _
      // Predicated region
      $region25: #{residual_block_forward.9} parent=11 // pred_check
        %p226 = pneg %p170
      $region26: #{residual_block_forward.9} parent=11 // pred_check_branch
        %228 = sbr.rel (%p226) target = $region28
      $region27: #{residual_block_forward.9} parent=11 // pred_region
        %p229 = scmp.lt.s32.totalorder %s22, 0
        %s230 = scalar_select %p229, %s22, 0
        %s231 = smul.addr %s230, 4
        %s232 = scalar_lea.vmem %s5, %s231
      $region28: #{residual_block_forward.9} parent=11 // pred_fallthru
        _
    $region12: #{residual_block_forward.9} parent=5 // pred_fallthru
      _
    %p233 = scmp.lt.s32.totalorder %s12, 2
    // Predicated region
    $region29: #{residual_block_forward.9} parent=5 // pred_check
      %p234 = pneg %p233
    $region30: #{residual_block_forward.9} parent=5 // pred_check_branch
      %236 = sbr.rel (%p234) target = $region32
    $region31: #{residual_block_forward.9} parent=5 // pred_region
      // Predicated region
      $region33: #{residual_block_forward.9} parent=31 // pred_check
        %p237 = pneg %p44
      $region34: #{residual_block_forward.9} parent=31 // pred_check_branch
        %239 = sbr.rel (%p237) target = $region36
      $region35: #{residual_block_forward.9} parent=31 // pred_region
        %p240 = scmp.lt.s32.totalorder %s19, 1
        %s241 = scalar_select %p240, %s19, 1
        %s242 = smul.addr %s241, 8
        %s243 = smul.addr %s242, 8
        %s244 = scalar_lea.vmem %s0, %s243
      $region36: #{residual_block_forward.9} parent=31 // pred_fallthru
        _
      // Predicated region
      $region37: #{residual_block_forward.9} parent=31 // pred_check
        %p245 = pneg %p138
      $region38: #{residual_block_forward.9} parent=31 // pred_check_branch
        %247 = sbr.rel (%p245) target = $region40
      $region39: #{residual_block_forward.9} parent=31 // pred_region
        %p248 = scmp.lt.s32.totalorder %s19, 1
        %s249 = scalar_select %p248, %s19, 1
        %s250 = smul.addr %s249, 8
        %s251 = smul.addr %s250, 8
        %s252 = scalar_lea.vmem %s4, %s251
      $region40: #{residual_block_forward.9} parent=31 // pred_fallthru
        _
    $region32: #{residual_block_forward.9} parent=5 // pred_fallthru
      _
    %p253 = scmp.le.s32.totalorder 1, %s12
    %p254 = scmp.lt.s32.totalorder %s12, 3
    %p255 = pnand %p253, %p254
    %p256 = pneg %p255
    // Predicated region
    $region41: #{residual_block_forward.9} parent=5 // pred_check
      _
    $region42: #{residual_block_forward.9} parent=5 // pred_check_branch
      %258 = sbr.rel (%p255) target = $region44
    $region43: #{residual_block_forward.9} parent=5 // pred_region
      %s259 = ssub.s32 %s12, 1
      %p260 = scmp.lt.s32.totalorder %s21, 1
      %s261 = scalar_select %p260, %s21, 1
      %s262 = smul.addr %s261, 8
      %s263 = smul.addr %s262, 8
      %s264 = scalar_lea.vmem %s0, %s263
      %p265 = pneg %p50
      %p266 = pneg %p47
      %p267 = pneg %p71
      %p268 = pneg %p68
      %p269 = pneg %p92
      %p270 = pneg %p89
      %p271 = scmp.lt.s32.totalorder %s22, 0
      %s272 = scalar_select %p271, %s22, 0
      %s273 = smul.addr %s272, 4
      %s274 = scalar_lea.vmem %s3, %s273
      %p275 = pneg %p118
      %p276 = pneg %p115
      %p277 = scmp.lt.s32.totalorder %s21, 1
      %s278 = scalar_select %p277, %s21, 1
      %s279 = smul.addr %s278, 8
      %s280 = smul.addr %s279, 8
      %s281 = scalar_lea.vmem %s4, %s280
      %p282 = pneg %p144
      %p283 = pneg %p141
      %p284 = scmp.lt.s32.totalorder %s22, 0
      %s285 = scalar_select %p284, %s22, 0
      %s286 = smul.addr %s285, 4
      %s287 = scalar_lea.vmem %s5, %s286
      %p288 = pneg %p170
      %p289 = pneg %p167
      %p290 = pneg %p198
      %p291 = pneg %p195
      %p292 = scmp.lt.s32.totalorder %s21, 1
      %s293 = scalar_select %p292, %s21, 1
      %p294 = scmp.lt.s32.totalorder %s22, 0
      %s295 = scalar_select %p294, %s22, 0
      %s296 = smul.addr %s293, 8
      %s297 = sadd.s32 %s295, %s296
      %s298 = smul.addr %s297, 8
      %s299 = scalar_lea.vmem %s6, %s298
      %p300 = scmp.lt.s32.totalorder %s21, 1
      %s301 = scalar_select %p300, %s21, 1
      %s302 = smul.addr %s301, 8
      %s303 = smul.addr %s302, 8
      %s304 = scalar_lea.vmem %s0, %s303
      %p305 = scmp.lt.s32.totalorder %s22, 0
      %s306 = scalar_select %p305, %s22, 0
      %s307 = smul.addr %s306, 4
      %s308 = scalar_lea.vmem %s3, %s307
      %p309 = scmp.lt.s32.totalorder %s21, 1
      %s310 = scalar_select %p309, %s21, 1
      %s311 = smul.addr %s310, 8
      %s312 = smul.addr %s311, 8
      %s313 = scalar_lea.vmem %s4, %s312
      %p314 = scmp.lt.s32.totalorder %s22, 0
      %s315 = scalar_select %p314, %s22, 0
      %s316 = smul.addr %s315, 4
      %s317 = scalar_lea.vmem %s5, %s316
      %p318 = scmp.lt.s32.totalorder %s21, 1
      %s319 = scalar_select %p318, %s21, 1
      %p320 = scmp.lt.s32.totalorder %s22, 0
      %s321 = scalar_select %p320, %s22, 0
      %s322 = smul.addr %s319, 8
      %s323 = sadd.s32 %s321, %s322
      %s324 = smul.addr %s323, 8
      %s325 = scalar_lea.vmem %s6, %s324
      %326 = vst [vmem:[#allocation2] sm:$0xff] 0.0
      %327 = vst [vmem:[#allocation2 + $0x8] sm:$0x3] 0.0
      %328 = vst [vmem:[#allocation2 + $0x10] sm:$0xff] 0.0
      %329 = vst [vmem:[#allocation2 + $0x18] sm:$0x3] 0.0
      %330 = vst [vmem:[#allocation2 + $0x20] sm:$0xff] 0.0
      %331 = vst [vmem:[#allocation2 + $0x28] sm:$0x3] 0.0
      %332 = vst [vmem:[#allocation2 + $0x30] sm:$0xff] 0.0
      %333 = vst [vmem:[#allocation2 + $0x38] sm:$0x3] 0.0
      %334 = vst [vmem:[#allocation2 + $0x40] sm:$0xff] 0.0
      %335 = vst [vmem:[#allocation2 + $0x48] sm:$0x3] 0.0
      %336 = vst [vmem:[#allocation2 + $0x50] sm:$0xff] 0.0
      %337 = vst [vmem:[#allocation2 + $0x58] sm:$0x3] 0.0
      %338 = vst [vmem:[#allocation2 + $0x60] sm:$0xff] 0.0
      %339 = vst [vmem:[#allocation2 + $0x68] sm:$0x3] 0.0
      %340 = vst [vmem:[#allocation2 + $0x70] sm:$0xff] 0.0
      %341 = vst [vmem:[#allocation2 + $0x78] sm:$0x3] 0.0
      %342 = vst [vmem:[#allocation2 + $0x80] sm:$0xff] 0.0
      %343 = vst [vmem:[#allocation2 + $0x88] sm:$0x3] 0.0
      %344 = vst [vmem:[#allocation2 + $0x90] sm:$0xff] 0.0
      %345 = vst [vmem:[#allocation2 + $0x98] sm:$0x3] 0.0
      %v346 = vld [vmem:[%s1] sm:$0x1]
      %v347 = vld [vmem:[%s2] sm:$0x1]
      %v348 = vld [vmem:[%s304] sm:$0xff]
      %v349 = vld [vmem:[%s304 + $0x8] sm:$0xff]
      %v350 = vld [vmem:[%s304 + $0x10] sm:$0xff]
      %v351 = vld [vmem:[%s304 + $0x18] sm:$0xff]
      %v352 = vld [vmem:[%s304 + $0x20] sm:$0xff]
      %v353 = vld [vmem:[%s304 + $0x28] sm:$0xff]
      %v354 = vld [vmem:[%s304 + $0x30] sm:$0xff]
      %v355 = vld [vmem:[%s304 + $0x38] sm:$0xff]
      %v357 = vperm.slane %v346, 0
      %v359 = vmul.f32 %v348, %v357
      %v360 = vmul.f32 %v349, %v357
      %v361 = vmul.f32 %v350, %v357
      %v362 = vmul.f32 %v351, %v357
      %v363 = vmul.f32 %v352, %v357
      %v364 = vmul.f32 %v353, %v357
      %v365 = vmul.f32 %v354, %v357
      %v366 = vmul.f32 %v355, %v357
      %v368 = vperm.slane %v347, 0
      %v370 = vadd.f32 %v359, %v368
      %v371 = vadd.f32 %v360, %v368
      %v372 = vadd.f32 %v361, %v368
      %v373 = vadd.f32 %v362, %v368
      %v374 = vadd.f32 %v363, %v368
      %v375 = vadd.f32 %v364, %v368
      %v376 = vadd.f32 %v365, %v368
      %v377 = vadd.f32 %v366, %v368
      %v378 = vmax.f32 %v370, 0.0
      %v379 = vmax.f32 %v371, 0.0
      %v380 = vmax.f32 %v372, 0.0
      %v381 = vmax.f32 %v373, 0.0
      %v382 = vmax.f32 %v374, 0.0
      %v383 = vmax.f32 %v375, 0.0
      %v384 = vmax.f32 %v376, 0.0
      %v385 = vmax.f32 %v377, 0.0
      %s386 = scalar_lea.vmem [#allocation2], 16
      %387 = vst [vmem:[%s386 + $0x1] sm:$0xff] %v378
      %388 = vst [vmem:[%s386 + $0x11] sm:$0xff] %v379
      %389 = vst [vmem:[%s386 + $0x21] sm:$0xff] %v380
      %390 = vst [vmem:[%s386 + $0x31] sm:$0xff] %v381
      %391 = vst [vmem:[%s386 + $0x41] sm:$0xff] %v382
      %392 = vst [vmem:[%s386 + $0x51] sm:$0xff] %v383
      %393 = vst [vmem:[%s386 + $0x61] sm:$0xff] %v384
      %394 = vst [vmem:[%s386 + $0x71] sm:$0xff] %v385
      %v395 = vld [vmem:[%s313] sm:$0xff]
      %v396 = vld [vmem:[%s313 + $0x8] sm:$0xff]
      %v397 = vld [vmem:[%s313 + $0x10] sm:$0xff]
      %v398 = vld [vmem:[%s313 + $0x18] sm:$0xff]
      %v399 = vld [vmem:[%s313 + $0x20] sm:$0xff]
      %v400 = vld [vmem:[%s313 + $0x28] sm:$0xff]
      %v401 = vld [vmem:[%s313 + $0x30] sm:$0xff]
      %v402 = vld [vmem:[%s313 + $0x38] sm:$0xff]
      %v403 = vpack.c.bf16 %v396, %v395
      %v404 = vpack.c.bf16 %v398, %v397
      %v405 = vpack.c.bf16 %v400, %v399
      %v406 = vpack.c.bf16 %v402, %v401
      %v407 = vld [vmem:[%s317] sm:$0xf]
      %v408 = vld [vmem:[%s317 + $0x4] sm:$0xf]
      %v409 = vld [vmem:[%s317 + $0x8] sm:$0xf]
      %v410 = vld [vmem:[%s317 + $0xc] sm:$0xf]
      %v411 = vld [vmem:[%s317 + $0x10] sm:$0xf]
      %v412 = vld [vmem:[%s317 + $0x14] sm:$0xf]
      %v413 = vld [vmem:[%s317 + $0x18] sm:$0xf]
      %v414 = vld [vmem:[%s317 + $0x1c] sm:$0xf]
      %v415 = vld [vmem:[%s317 + $0x20] sm:$0xf]
      %v416 = vld [vmem:[%s317 + $0x24] sm:$0xf]
      %v417 = vld [vmem:[%s317 + $0x28] sm:$0xf]
      %v418 = vld [vmem:[%s317 + $0x2c] sm:$0xf]
      %v419 = vld [vmem:[%s317 + $0x30] sm:$0xf]
      %v420 = vld [vmem:[%s317 + $0x34] sm:$0xf]
      %v421 = vld [vmem:[%s317 + $0x38] sm:$0xf]
      %v422 = vld [vmem:[%s317 + $0x3c] sm:$0xf]
      %v439 = vunpack.c.l.b16 %v407
      %v440 = vunpack.c.l.b16 %v408
      %v441 = vunpack.c.l.b16 %v409
      %v442 = vunpack.c.l.b16 %v410
      %v443 = vunpack.c.l.b16 %v411
      %v444 = vunpack.c.l.b16 %v412
      %v445 = vunpack.c.l.b16 %v413
      %v446 = vunpack.c.l.b16 %v414
      %v447 = vunpack.c.l.b16 %v415
      %v448 = vunpack.c.l.b16 %v416
      %v449 = vunpack.c.l.b16 %v417
      %v450 = vunpack.c.l.b16 %v418
      %v451 = vunpack.c.l.b16 %v419
      %v452 = vunpack.c.l.b16 %v420
      %v453 = vunpack.c.l.b16 %v421
      %v454 = vunpack.c.l.b16 %v422
      %v455 = vpack.c.b16 %v440, %v439
      %v456 = vpack.c.b16 %v442, %v441
      %v457 = vpack.c.b16 %v444, %v443
      %v458 = vpack.c.b16 %v446, %v445
      %v459 = vpack.c.b16 %v448, %v447
      %v460 = vpack.c.b16 %v450, %v449
      %v461 = vpack.c.b16 %v452, %v451
      %v462 = vpack.c.b16 %v454, %v453
      %471 = vmatpush.bf16.msra.mxu0 %v462
      %472 = vmatpush.bf16.msra.mxu0 %v461
      %473 = vmatpush.bf16.msra.mxu0 %v460
      %474 = vmatpush.bf16.msra.mxu0 %v459
      %475 = vmatpush.bf16.msra.mxu0 %v458
      %476 = vmatpush.bf16.msra.mxu0 %v457
      %477 = vmatpush.bf16.msra.mxu0 %v456
      %478 = vmatpush.bf16.msra.mxu0 %v455
      %479 = vmatmul.bf16.gmra.mxu0 %v403
      %v480 = vpop.f32.mrf.mxu0
      %v481 = vadd.f32 0.0, %v480
      %v482 = vpop.f32.mrf.mxu0
      %v483 = vadd.f32 0.0, %v482
      %484 = vmatmul.bf16.gmra.mxu0 %v404
      %v485 = vpop.f32.mrf.mxu0
      %v486 = vadd.f32 0.0, %v485
      %v487 = vpop.f32.mrf.mxu0
      %v488 = vadd.f32 0.0, %v487
      %489 = vmatmul.bf16.gmra.mxu0 %v405
      %v490 = vpop.f32.mrf.mxu0
      %v491 = vadd.f32 0.0, %v490
      %v492 = vpop.f32.mrf.mxu0
      %v493 = vadd.f32 0.0, %v492
      %494 = vmatmul.bf16.gmra.mxu0 %v406
      %v495 = vpop.f32.mrf.mxu0
      %v496 = vadd.f32 0.0, %v495
      %v497 = vpop.f32.mrf.mxu0
      %v498 = vadd.f32 0.0, %v497
      %499 = vdwg.mxu0
      %500 = vst [vmem:[%s325] sm:$0xff] %v481
      %501 = vst [vmem:[%s325 + $0x8] sm:$0xff] %v483
      %502 = vst [vmem:[%s325 + $0x10] sm:$0xff] %v486
      %503 = vst [vmem:[%s325 + $0x18] sm:$0xff] %v488
      %504 = vst [vmem:[%s325 + $0x20] sm:$0xff] %v491
      %505 = vst [vmem:[%s325 + $0x28] sm:$0xff] %v493
      %506 = vst [vmem:[%s325 + $0x30] sm:$0xff] %v496
      %507 = vst [vmem:[%s325 + $0x38] sm:$0xff] %v498
      %v508 = vld [vmem:[#allocation2] sm:$0xff]
      %v509 = vld [vmem:[#allocation2 + $0x10] sm:$0xff]
      %v510 = vld [vmem:[#allocation2 + $0x20] sm:$0xff]
      %v511 = vld [vmem:[#allocation2 + $0x30] sm:$0xff]
      %v512 = vld [vmem:[#allocation2 + $0x40] sm:$0xff]
      %v513 = vld [vmem:[#allocation2 + $0x50] sm:$0xff]
      %v514 = vld [vmem:[#allocation2 + $0x60] sm:$0xff]
      %v515 = vld [vmem:[#allocation2 + $0x70] sm:$0xff]
      %v516 = vld [vmem:[%s325] sm:$0xff]
      %v517 = vld [vmem:[%s325 + $0x8] sm:$0xff]
      %v518 = vld [vmem:[%s325 + $0x10] sm:$0xff]
      %v519 = vld [vmem:[%s325 + $0x18] sm:$0xff]
      %v520 = vld [vmem:[%s325 + $0x20] sm:$0xff]
      %v521 = vld [vmem:[%s325 + $0x28] sm:$0xff]
      %v522 = vld [vmem:[%s325 + $0x30] sm:$0xff]
      %v523 = vld [vmem:[%s325 + $0x38] sm:$0xff]
      %v524 = vpack.c.bf16 %v509, %v508
      %v525 = vpack.c.bf16 %v511, %v510
      %v526 = vpack.c.bf16 %v513, %v512
      %v527 = vpack.c.bf16 %v515, %v514
      %v528 = vld [vmem:[%s308] sm:$0xf]
      %v529 = vld [vmem:[%s308 + $0x4] sm:$0xf]
      %v530 = vld [vmem:[%s308 + $0x8] sm:$0xf]
      %v531 = vld [vmem:[%s308 + $0xc] sm:$0xf]
      %v532 = vld [vmem:[%s308 + $0x10] sm:$0xf]
      %v533 = vld [vmem:[%s308 + $0x14] sm:$0xf]
      %v534 = vld [vmem:[%s308 + $0x18] sm:$0xf]
      %v535 = vld [vmem:[%s308 + $0x1c] sm:$0xf]
      %v536 = vld [vmem:[%s308 + $0x20] sm:$0xf]
      %v537 = vld [vmem:[%s308 + $0x24] sm:$0xf]
      %v538 = vld [vmem:[%s308 + $0x28] sm:$0xf]
      %v539 = vld [vmem:[%s308 + $0x2c] sm:$0xf]
      %v540 = vld [vmem:[%s308 + $0x30] sm:$0xf]
      %v541 = vld [vmem:[%s308 + $0x34] sm:$0xf]
      %v542 = vld [vmem:[%s308 + $0x38] sm:$0xf]
      %v543 = vld [vmem:[%s308 + $0x3c] sm:$0xf]
      %v560 = vunpack.c.l.b16 %v528
      %v561 = vunpack.c.l.b16 %v529
      %v562 = vunpack.c.l.b16 %v530
      %v563 = vunpack.c.l.b16 %v531
      %v564 = vunpack.c.l.b16 %v532
      %v565 = vunpack.c.l.b16 %v533
      %v566 = vunpack.c.l.b16 %v534
      %v567 = vunpack.c.l.b16 %v535
      %v568 = vunpack.c.l.b16 %v536
      %v569 = vunpack.c.l.b16 %v537
      %v570 = vunpack.c.l.b16 %v538
      %v571 = vunpack.c.l.b16 %v539
      %v572 = vunpack.c.l.b16 %v540
      %v573 = vunpack.c.l.b16 %v541
      %v574 = vunpack.c.l.b16 %v542
      %v575 = vunpack.c.l.b16 %v543
      %v576 = vpack.c.b16 %v561, %v560
      %v577 = vpack.c.b16 %v563, %v562
      %v578 = vpack.c.b16 %v565, %v564
      %v579 = vpack.c.b16 %v567, %v566
      %v580 = vpack.c.b16 %v569, %v568
      %v581 = vpack.c.b16 %v571, %v570
      %v582 = vpack.c.b16 %v573, %v572
      %v583 = vpack.c.b16 %v575, %v574
      %592 = vmatpush.bf16.msra.mxu0 %v583
      %593 = vmatpush.bf16.msra.mxu0 %v582
      %594 = vmatpush.bf16.msra.mxu0 %v581
      %595 = vmatpush.bf16.msra.mxu0 %v580
      %596 = vmatpush.bf16.msra.mxu0 %v579
      %597 = vmatpush.bf16.msra.mxu0 %v578
      %598 = vmatpush.bf16.msra.mxu0 %v577
      %599 = vmatpush.bf16.msra.mxu0 %v576
      %600 = vmatmul.bf16.gmra.mxu0 %v524
      %v601 = vpop.f32.mrf.mxu0
      %v602 = vadd.f32 0.0, %v601
      %v603 = vpop.f32.mrf.mxu0
      %v604 = vadd.f32 0.0, %v603
      %605 = vmatmul.bf16.gmra.mxu0 %v525
      %v606 = vpop.f32.mrf.mxu0
      %v607 = vadd.f32 0.0, %v606
      %v608 = vpop.f32.mrf.mxu0
      %v609 = vadd.f32 0.0, %v608
      %610 = vmatmul.bf16.gmra.mxu0 %v526
      %v611 = vpop.f32.mrf.mxu0
      %v612 = vadd.f32 0.0, %v611
      %v613 = vpop.f32.mrf.mxu0
      %v614 = vadd.f32 0.0, %v613
      %615 = vmatmul.bf16.gmra.mxu0 %v527
      %v616 = vpop.f32.mrf.mxu0
      %v617 = vadd.f32 0.0, %v616
      %v618 = vpop.f32.mrf.mxu0
      %v619 = vadd.f32 0.0, %v618
      %620 = vdwg.mxu0
      %v621 = vadd.f32 %v516, %v602
      %v622 = vadd.f32 %v517, %v604
      %v623 = vadd.f32 %v518, %v607
      %v624 = vadd.f32 %v519, %v609
      %v625 = vadd.f32 %v520, %v612
      %v626 = vadd.f32 %v521, %v614
      %v627 = vadd.f32 %v522, %v617
      %v628 = vadd.f32 %v523, %v619
      %629 = vst [vmem:[%s325] sm:$0xff] %v621
      %630 = vst [vmem:[%s325 + $0x8] sm:$0xff] %v622
      %631 = vst [vmem:[%s325 + $0x10] sm:$0xff] %v623
      %632 = vst [vmem:[%s325 + $0x18] sm:$0xff] %v624
      %633 = vst [vmem:[%s325 + $0x20] sm:$0xff] %v625
      %634 = vst [vmem:[%s325 + $0x28] sm:$0xff] %v626
      %635 = vst [vmem:[%s325 + $0x30] sm:$0xff] %v627
      %636 = vst [vmem:[%s325 + $0x38] sm:$0xff] %v628
      %v637 = vld [vmem:[#allocation2 + $0x1] sm:$0xff]
      %v638 = vld [vmem:[#allocation2 + $0x11] sm:$0xff]
      %v639 = vld [vmem:[#allocation2 + $0x21] sm:$0xff]
      %v640 = vld [vmem:[#allocation2 + $0x31] sm:$0xff]
      %v641 = vld [vmem:[#allocation2 + $0x41] sm:$0xff]
      %v642 = vld [vmem:[#allocation2 + $0x51] sm:$0xff]
      %v643 = vld [vmem:[#allocation2 + $0x61] sm:$0xff]
      %v644 = vld [vmem:[#allocation2 + $0x71] sm:$0xff]
      %v645 = vld [vmem:[%s325] sm:$0xff]
      %v646 = vld [vmem:[%s325 + $0x8] sm:$0xff]
      %v647 = vld [vmem:[%s325 + $0x10] sm:$0xff]
      %v648 = vld [vmem:[%s325 + $0x18] sm:$0xff]
      %v649 = vld [vmem:[%s325 + $0x20] sm:$0xff]
      %v650 = vld [vmem:[%s325 + $0x28] sm:$0xff]
      %v651 = vld [vmem:[%s325 + $0x30] sm:$0xff]
      %v652 = vld [vmem:[%s325 + $0x38] sm:$0xff]
      %v653 = vpack.c.bf16 %v638, %v637
      %v654 = vpack.c.bf16 %v640, %v639
      %v655 = vpack.c.bf16 %v642, %v641
      %v656 = vpack.c.bf16 %v644, %v643
      %s657 = scalar_lea.vmem %s308, 64
      %v658 = vld [vmem:[%s657] sm:$0xf]
      %v659 = vld [vmem:[%s657 + $0x4] sm:$0xf]
      %v660 = vld [vmem:[%s657 + $0x8] sm:$0xf]
      %v661 = vld [vmem:[%s657 + $0xc] sm:$0xf]
      %v662 = vld [vmem:[%s657 + $0x10] sm:$0xf]
      %v663 = vld [vmem:[%s657 + $0x14] sm:$0xf]
      %v664 = vld [vmem:[%s657 + $0x18] sm:$0xf]
      %v665 = vld [vmem:[%s657 + $0x1c] sm:$0xf]
      %v666 = vld [vmem:[%s657 + $0x20] sm:$0xf]
      %v667 = vld [vmem:[%s657 + $0x24] sm:$0xf]
      %v668 = vld [vmem:[%s657 + $0x28] sm:$0xf]
      %v669 = vld [vmem:[%s657 + $0x2c] sm:$0xf]
      %v670 = vld [vmem:[%s657 + $0x30] sm:$0xf]
      %v671 = vld [vmem:[%s657 + $0x34] sm:$0xf]
      %v672 = vld [vmem:[%s657 + $0x38] sm:$0xf]
      %v673 = vld [vmem:[%s657 + $0x3c] sm:$0xf]
      %v690 = vunpack.c.l.b16 %v658
      %v691 = vunpack.c.l.b16 %v659
      %v692 = vunpack.c.l.b16 %v660
      %v693 = vunpack.c.l.b16 %v661
      %v694 = vunpack.c.l.b16 %v662
      %v695 = vunpack.c.l.b16 %v663
      %v696 = vunpack.c.l.b16 %v664
      %v697 = vunpack.c.l.b16 %v665
      %v698 = vunpack.c.l.b16 %v666
      %v699 = vunpack.c.l.b16 %v667
      %v700 = vunpack.c.l.b16 %v668
      %v701 = vunpack.c.l.b16 %v669
      %v702 = vunpack.c.l.b16 %v670
      %v703 = vunpack.c.l.b16 %v671
      %v704 = vunpack.c.l.b16 %v672
      %v705 = vunpack.c.l.b16 %v673
      %v706 = vpack.c.b16 %v691, %v690
      %v707 = vpack.c.b16 %v693, %v692
      %v708 = vpack.c.b16 %v695, %v694
      %v709 = vpack.c.b16 %v697, %v696
      %v710 = vpack.c.b16 %v699, %v698
      %v711 = vpack.c.b16 %v701, %v700
      %v712 = vpack.c.b16 %v703, %v702
      %v713 = vpack.c.b16 %v705, %v704
      %722 = vmatpush.bf16.msra.mxu0 %v713
      %723 = vmatpush.bf16.msra.mxu0 %v712
      %724 = vmatpush.bf16.msra.mxu0 %v711
      %725 = vmatpush.bf16.msra.mxu0 %v710
      %726 = vmatpush.bf16.msra.mxu0 %v709
      %727 = vmatpush.bf16.msra.mxu0 %v708
      %728 = vmatpush.bf16.msra.mxu0 %v707
      %729 = vmatpush.bf16.msra.mxu0 %v706
      %730 = vmatmul.bf16.gmra.mxu0 %v653
      %v731 = vpop.f32.mrf.mxu0
      %v732 = vadd.f32 0.0, %v731
      %v733 = vpop.f32.mrf.mxu0
      %v734 = vadd.f32 0.0, %v733
      %735 = vmatmul.bf16.gmra.mxu0 %v654
      %v736 = vpop.f32.mrf.mxu0
      %v737 = vadd.f32 0.0, %v736
      %v738 = vpop.f32.mrf.mxu0
      %v739 = vadd.f32 0.0, %v738
      %740 = vmatmul.bf16.gmra.mxu0 %v655
      %v741 = vpop.f32.mrf.mxu0
      %v742 = vadd.f32 0.0, %v741
      %v743 = vpop.f32.mrf.mxu0
      %v744 = vadd.f32 0.0, %v743
      %745 = vmatmul.bf16.gmra.mxu0 %v656
      %v746 = vpop.f32.mrf.mxu0
      %v747 = vadd.f32 0.0, %v746
      %v748 = vpop.f32.mrf.mxu0
      %v749 = vadd.f32 0.0, %v748
      %750 = vdwg.mxu0
      %v751 = vadd.f32 %v645, %v732
      %v752 = vadd.f32 %v646, %v734
      %v753 = vadd.f32 %v647, %v737
      %v754 = vadd.f32 %v648, %v739
      %v755 = vadd.f32 %v649, %v742
      %v756 = vadd.f32 %v650, %v744
      %v757 = vadd.f32 %v651, %v747
      %v758 = vadd.f32 %v652, %v749
      %759 = vst [vmem:[%s325] sm:$0xff] %v751
      %760 = vst [vmem:[%s325 + $0x8] sm:$0xff] %v752
      %761 = vst [vmem:[%s325 + $0x10] sm:$0xff] %v753
      %762 = vst [vmem:[%s325 + $0x18] sm:$0xff] %v754
      %763 = vst [vmem:[%s325 + $0x20] sm:$0xff] %v755
      %764 = vst [vmem:[%s325 + $0x28] sm:$0xff] %v756
      %765 = vst [vmem:[%s325 + $0x30] sm:$0xff] %v757
      %766 = vst [vmem:[%s325 + $0x38] sm:$0xff] %v758
      %v767 = vld [vmem:[#allocation2 + $0x2] sm:$0xff]
      %v768 = vld [vmem:[#allocation2 + $0x12] sm:$0xff]
      %v769 = vld [vmem:[#allocation2 + $0x22] sm:$0xff]
      %v770 = vld [vmem:[#allocation2 + $0x32] sm:$0xff]
      %v771 = vld [vmem:[#allocation2 + $0x42] sm:$0xff]
      %v772 = vld [vmem:[#allocation2 + $0x52] sm:$0xff]
      %v773 = vld [vmem:[#allocation2 + $0x62] sm:$0xff]
      %v774 = vld [vmem:[#allocation2 + $0x72] sm:$0xff]
      %v775 = vld [vmem:[%s325] sm:$0xff]
      %v776 = vld [vmem:[%s325 + $0x8] sm:$0xff]
      %v777 = vld [vmem:[%s325 + $0x10] sm:$0xff]
      %v778 = vld [vmem:[%s325 + $0x18] sm:$0xff]
      %v779 = vld [vmem:[%s325 + $0x20] sm:$0xff]
      %v780 = vld [vmem:[%s325 + $0x28] sm:$0xff]
      %v781 = vld [vmem:[%s325 + $0x30] sm:$0xff]
      %v782 = vld [vmem:[%s325 + $0x38] sm:$0xff]
      %v783 = vpack.c.bf16 %v768, %v767
      %v784 = vpack.c.bf16 %v770, %v769
      %v785 = vpack.c.bf16 %v772, %v771
      %v786 = vpack.c.bf16 %v774, %v773
      %s787 = scalar_lea.vmem %s308, 128
      %v788 = vld [vmem:[%s787] sm:$0xf]
      %v789 = vld [vmem:[%s787 + $0x4] sm:$0xf]
      %v790 = vld [vmem:[%s787 + $0x8] sm:$0xf]
      %v791 = vld [vmem:[%s787 + $0xc] sm:$0xf]
      %v792 = vld [vmem:[%s787 + $0x10] sm:$0xf]
      %v793 = vld [vmem:[%s787 + $0x14] sm:$0xf]
      %v794 = vld [vmem:[%s787 + $0x18] sm:$0xf]
      %v795 = vld [vmem:[%s787 + $0x1c] sm:$0xf]
      %v796 = vld [vmem:[%s787 + $0x20] sm:$0xf]
      %v797 = vld [vmem:[%s787 + $0x24] sm:$0xf]
      %v798 = vld [vmem:[%s787 + $0x28] sm:$0xf]
      %v799 = vld [vmem:[%s787 + $0x2c] sm:$0xf]
      %v800 = vld [vmem:[%s787 + $0x30] sm:$0xf]
      %v801 = vld [vmem:[%s787 + $0x34] sm:$0xf]
      %v802 = vld [vmem:[%s787 + $0x38] sm:$0xf]
      %v803 = vld [vmem:[%s787 + $0x3c] sm:$0xf]
      %v820 = vunpack.c.l.b16 %v788
      %v821 = vunpack.c.l.b16 %v789
      %v822 = vunpack.c.l.b16 %v790
      %v823 = vunpack.c.l.b16 %v791
      %v824 = vunpack.c.l.b16 %v792
      %v825 = vunpack.c.l.b16 %v793
      %v826 = vunpack.c.l.b16 %v794
      %v827 = vunpack.c.l.b16 %v795
      %v828 = vunpack.c.l.b16 %v796
      %v829 = vunpack.c.l.b16 %v797
      %v830 = vunpack.c.l.b16 %v798
      %v831 = vunpack.c.l.b16 %v799
      %v832 = vunpack.c.l.b16 %v800
      %v833 = vunpack.c.l.b16 %v801
      %v834 = vunpack.c.l.b16 %v802
      %v835 = vunpack.c.l.b16 %v803
      %v836 = vpack.c.b16 %v821, %v820
      %v837 = vpack.c.b16 %v823, %v822
      %v838 = vpack.c.b16 %v825, %v824
      %v839 = vpack.c.b16 %v827, %v826
      %v840 = vpack.c.b16 %v829, %v828
      %v841 = vpack.c.b16 %v831, %v830
      %v842 = vpack.c.b16 %v833, %v832
      %v843 = vpack.c.b16 %v835, %v834
      %852 = vmatpush.bf16.msra.mxu0 %v843
      %853 = vmatpush.bf16.msra.mxu0 %v842
      %854 = vmatpush.bf16.msra.mxu0 %v841
      %855 = vmatpush.bf16.msra.mxu0 %v840
      %856 = vmatpush.bf16.msra.mxu0 %v839
      %857 = vmatpush.bf16.msra.mxu0 %v838
      %858 = vmatpush.bf16.msra.mxu0 %v837
      %859 = vmatpush.bf16.msra.mxu0 %v836
      %860 = vmatmul.bf16.gmra.mxu0 %v783
      %v861 = vpop.f32.mrf.mxu0
      %v862 = vadd.f32 0.0, %v861
      %v863 = vpop.f32.mrf.mxu0
      %v864 = vadd.f32 0.0, %v863
      %865 = vmatmul.bf16.gmra.mxu0 %v784
      %v866 = vpop.f32.mrf.mxu0
      %v867 = vadd.f32 0.0, %v866
      %v868 = vpop.f32.mrf.mxu0
      %v869 = vadd.f32 0.0, %v868
      %870 = vmatmul.bf16.gmra.mxu0 %v785
      %v871 = vpop.f32.mrf.mxu0
      %v872 = vadd.f32 0.0, %v871
      %v873 = vpop.f32.mrf.mxu0
      %v874 = vadd.f32 0.0, %v873
      %875 = vmatmul.bf16.gmra.mxu0 %v786
      %v876 = vpop.f32.mrf.mxu0
      %v877 = vadd.f32 0.0, %v876
      %v878 = vpop.f32.mrf.mxu0
      %v879 = vadd.f32 0.0, %v878
      %880 = vdwg.mxu0
      %v881 = vadd.f32 %v775, %v862
      %v882 = vadd.f32 %v776, %v864
      %v883 = vadd.f32 %v777, %v867
      %v884 = vadd.f32 %v778, %v869
      %v885 = vadd.f32 %v779, %v872
      %v886 = vadd.f32 %v780, %v874
      %v887 = vadd.f32 %v781, %v877
      %v888 = vadd.f32 %v782, %v879
      %889 = vst [vmem:[%s325] sm:$0xff] %v881
      %890 = vst [vmem:[%s325 + $0x8] sm:$0xff] %v882
      %891 = vst [vmem:[%s325 + $0x10] sm:$0xff] %v883
      %892 = vst [vmem:[%s325 + $0x18] sm:$0xff] %v884
      %893 = vst [vmem:[%s325 + $0x20] sm:$0xff] %v885
      %894 = vst [vmem:[%s325 + $0x28] sm:$0xff] %v886
      %895 = vst [vmem:[%s325 + $0x30] sm:$0xff] %v887
      %896 = vst [vmem:[%s325 + $0x38] sm:$0xff] %v888
      %v897 = vld [vmem:[%s386] sm:$0xff]
      %v898 = vld [vmem:[%s386 + $0x10] sm:$0xff]
      %v899 = vld [vmem:[%s386 + $0x20] sm:$0xff]
      %v900 = vld [vmem:[%s386 + $0x30] sm:$0xff]
      %v901 = vld [vmem:[%s386 + $0x40] sm:$0xff]
      %v902 = vld [vmem:[%s386 + $0x50] sm:$0xff]
      %v903 = vld [vmem:[%s386 + $0x60] sm:$0xff]
      %v904 = vld [vmem:[%s386 + $0x70] sm:$0xff]
      %v905 = vld [vmem:[%s325] sm:$0xff]
      %v906 = vld [vmem:[%s325 + $0x8] sm:$0xff]
      %v907 = vld [vmem:[%s325 + $0x10] sm:$0xff]
      %v908 = vld [vmem:[%s325 + $0x18] sm:$0xff]
      %v909 = vld [vmem:[%s325 + $0x20] sm:$0xff]
      %v910 = vld [vmem:[%s325 + $0x28] sm:$0xff]
      %v911 = vld [vmem:[%s325 + $0x30] sm:$0xff]
      %v912 = vld [vmem:[%s325 + $0x38] sm:$0xff]
      %v913 = vpack.c.bf16 %v898, %v897
      %v914 = vpack.c.bf16 %v900, %v899
      %v915 = vpack.c.bf16 %v902, %v901
      %v916 = vpack.c.bf16 %v904, %v903
      %s917 = scalar_lea.vmem %s308, 192
      %v918 = vld [vmem:[%s917] sm:$0xf]
      %v919 = vld [vmem:[%s917 + $0x4] sm:$0xf]
      %v920 = vld [vmem:[%s917 + $0x8] sm:$0xf]
      %v921 = vld [vmem:[%s917 + $0xc] sm:$0xf]
      %v922 = vld [vmem:[%s917 + $0x10] sm:$0xf]
      %v923 = vld [vmem:[%s917 + $0x14] sm:$0xf]
      %v924 = vld [vmem:[%s917 + $0x18] sm:$0xf]
      %v925 = vld [vmem:[%s917 + $0x1c] sm:$0xf]
      %v926 = vld [vmem:[%s917 + $0x20] sm:$0xf]
      %v927 = vld [vmem:[%s917 + $0x24] sm:$0xf]
      %v928 = vld [vmem:[%s917 + $0x28] sm:$0xf]
      %v929 = vld [vmem:[%s917 + $0x2c] sm:$0xf]
      %v930 = vld [vmem:[%s917 + $0x30] sm:$0xf]
      %v931 = vld [vmem:[%s917 + $0x34] sm:$0xf]
      %v932 = vld [vmem:[%s917 + $0x38] sm:$0xf]
      %v933 = vld [vmem:[%s917 + $0x3c] sm:$0xf]
      %v950 = vunpack.c.l.b16 %v918
      %v951 = vunpack.c.l.b16 %v919
      %v952 = vunpack.c.l.b16 %v920
      %v953 = vunpack.c.l.b16 %v921
      %v954 = vunpack.c.l.b16 %v922
      %v955 = vunpack.c.l.b16 %v923
      %v956 = vunpack.c.l.b16 %v924
      %v957 = vunpack.c.l.b16 %v925
      %v958 = vunpack.c.l.b16 %v926
      %v959 = vunpack.c.l.b16 %v927
      %v960 = vunpack.c.l.b16 %v928
      %v961 = vunpack.c.l.b16 %v929
      %v962 = vunpack.c.l.b16 %v930
      %v963 = vunpack.c.l.b16 %v931
      %v964 = vunpack.c.l.b16 %v932
      %v965 = vunpack.c.l.b16 %v933
      %v966 = vpack.c.b16 %v951, %v950
      %v967 = vpack.c.b16 %v953, %v952
      %v968 = vpack.c.b16 %v955, %v954
      %v969 = vpack.c.b16 %v957, %v956
      %v970 = vpack.c.b16 %v959, %v958
      %v971 = vpack.c.b16 %v961, %v960
      %v972 = vpack.c.b16 %v963, %v962
      %v973 = vpack.c.b16 %v965, %v964
      %982 = vmatpush.bf16.msra.mxu0 %v973
      %983 = vmatpush.bf16.msra.mxu0 %v972
      %984 = vmatpush.bf16.msra.mxu0 %v971
      %985 = vmatpush.bf16.msra.mxu0 %v970
      %986 = vmatpush.bf16.msra.mxu0 %v969
      %987 = vmatpush.bf16.msra.mxu0 %v968
      %988 = vmatpush.bf16.msra.mxu0 %v967
      %989 = vmatpush.bf16.msra.mxu0 %v966
      %990 = vmatmul.bf16.gmra.mxu0 %v913
      %v991 = vpop.f32.mrf.mxu0
      %v992 = vadd.f32 0.0, %v991
      %v993 = vpop.f32.mrf.mxu0
      %v994 = vadd.f32 0.0, %v993
      %995 = vmatmul.bf16.gmra.mxu0 %v914
      %v996 = vpop.f32.mrf.mxu0
      %v997 = vadd.f32 0.0, %v996
      %v998 = vpop.f32.mrf.mxu0
      %v999 = vadd.f32 0.0, %v998
      %1000 = vmatmul.bf16.gmra.mxu0 %v915
      %v1001 = vpop.f32.mrf.mxu0
      %v1002 = vadd.f32 0.0, %v1001
      %v1003 = vpop.f32.mrf.mxu0
      %v1004 = vadd.f32 0.0, %v1003
      %1005 = vmatmul.bf16.gmra.mxu0 %v916
      %v1006 = vpop.f32.mrf.mxu0
      %v1007 = vadd.f32 0.0, %v1006
      %v1008 = vpop.f32.mrf.mxu0
      %v1009 = vadd.f32 0.0, %v1008
      %1010 = vdwg.mxu0
      %v1011 = vadd.f32 %v905, %v992
      %v1012 = vadd.f32 %v906, %v994
      %v1013 = vadd.f32 %v907, %v997
      %v1014 = vadd.f32 %v908, %v999
      %v1015 = vadd.f32 %v909, %v1002
      %v1016 = vadd.f32 %v910, %v1004
      %v1017 = vadd.f32 %v911, %v1007
      %v1018 = vadd.f32 %v912, %v1009
      %1019 = vst [vmem:[%s325] sm:$0xff] %v1011
      %1020 = vst [vmem:[%s325 + $0x8] sm:$0xff] %v1012
      %1021 = vst [vmem:[%s325 + $0x10] sm:$0xff] %v1013
      %1022 = vst [vmem:[%s325 + $0x18] sm:$0xff] %v1014
      %1023 = vst [vmem:[%s325 + $0x20] sm:$0xff] %v1015
      %1024 = vst [vmem:[%s325 + $0x28] sm:$0xff] %v1016
      %1025 = vst [vmem:[%s325 + $0x30] sm:$0xff] %v1017
      %1026 = vst [vmem:[%s325 + $0x38] sm:$0xff] %v1018
      %v1027 = vld [vmem:[%s386 + $0x1] sm:$0xff]
      %v1028 = vld [vmem:[%s386 + $0x11] sm:$0xff]
      %v1029 = vld [vmem:[%s386 + $0x21] sm:$0xff]
      %v1030 = vld [vmem:[%s386 + $0x31] sm:$0xff]
      %v1031 = vld [vmem:[%s386 + $0x41] sm:$0xff]
      %v1032 = vld [vmem:[%s386 + $0x51] sm:$0xff]
      %v1033 = vld [vmem:[%s386 + $0x61] sm:$0xff]
      %v1034 = vld [vmem:[%s386 + $0x71] sm:$0xff]
      %v1035 = vld [vmem:[%s325] sm:$0xff]
      %v1036 = vld [vmem:[%s325 + $0x8] sm:$0xff]
      %v1037 = vld [vmem:[%s325 + $0x10] sm:$0xff]
      %v1038 = vld [vmem:[%s325 + $0x18] sm:$0xff]
      %v1039 = vld [vmem:[%s325 + $0x20] sm:$0xff]
      %v1040 = vld [vmem:[%s325 + $0x28] sm:$0xff]
      %v1041 = vld [vmem:[%s325 + $0x30] sm:$0xff]
      %v1042 = vld [vmem:[%s325 + $0x38] sm:$0xff]
      %v1043 = vpack.c.bf16 %v1028, %v1027
      %v1044 = vpack.c.bf16 %v1030, %v1029
      %v1045 = vpack.c.bf16 %v1032, %v1031
      %v1046 = vpack.c.bf16 %v1034, %v1033
      %s1047 = scalar_lea.vmem %s308, 256
      %v1048 = vld [vmem:[%s1047] sm:$0xf]
      %v1049 = vld [vmem:[%s1047 + $0x4] sm:$0xf]
      %v1050 = vld [vmem:[%s1047 + $0x8] sm:$0xf]
      %v1051 = vld [vmem:[%s1047 + $0xc] sm:$0xf]
      %v1052 = vld [vmem:[%s1047 + $0x10] sm:$0xf]
      %v1053 = vld [vmem:[%s1047 + $0x14] sm:$0xf]
      %v1054 = vld [vmem:[%s1047 + $0x18] sm:$0xf]
      %v1055 = vld [vmem:[%s1047 + $0x1c] sm:$0xf]
      %v1056 = vld [vmem:[%s1047 + $0x20] sm:$0xf]
      %v1057 = vld [vmem:[%s1047 + $0x24] sm:$0xf]
      %v1058 = vld [vmem:[%s1047 + $0x28] sm:$0xf]
      %v1059 = vld [vmem:[%s1047 + $0x2c] sm:$0xf]
      %v1060 = vld [vmem:[%s1047 + $0x30] sm:$0xf]
      %v1061 = vld [vmem:[%s1047 + $0x34] sm:$0xf]
      %v1062 = vld [vmem:[%s1047 + $0x38] sm:$0xf]
      %v1063 = vld [vmem:[%s1047 + $0x3c] sm:$0xf]
      %v1080 = vunpack.c.l.b16 %v1048
      %v1081 = vunpack.c.l.b16 %v1049
      %v1082 = vunpack.c.l.b16 %v1050
      %v1083 = vunpack.c.l.b16 %v1051
      %v1084 = vunpack.c.l.b16 %v1052
      %v1085 = vunpack.c.l.b16 %v1053
      %v1086 = vunpack.c.l.b16 %v1054
      %v1087 = vunpack.c.l.b16 %v1055
      %v1088 = vunpack.c.l.b16 %v1056
      %v1089 = vunpack.c.l.b16 %v1057
      %v1090 = vunpack.c.l.b16 %v1058
      %v1091 = vunpack.c.l.b16 %v1059
      %v1092 = vunpack.c.l.b16 %v1060
      %v1093 = vunpack.c.l.b16 %v1061
      %v1094 = vunpack.c.l.b16 %v1062
      %v1095 = vunpack.c.l.b16 %v1063
      %v1096 = vpack.c.b16 %v1081, %v1080
      %v1097 = vpack.c.b16 %v1083, %v1082
      %v1098 = vpack.c.b16 %v1085, %v1084
      %v1099 = vpack.c.b16 %v1087, %v1086
      %v1100 = vpack.c.b16 %v1089, %v1088
      %v1101 = vpack.c.b16 %v1091, %v1090
      %v1102 = vpack.c.b16 %v1093, %v1092
      %v1103 = vpack.c.b16 %v1095, %v1094
      %1112 = vmatpush.bf16.msra.mxu0 %v1103
      %1113 = vmatpush.bf16.msra.mxu0 %v1102
      %1114 = vmatpush.bf16.msra.mxu0 %v1101
      %1115 = vmatpush.bf16.msra.mxu0 %v1100
      %1116 = vmatpush.bf16.msra.mxu0 %v1099
      %1117 = vmatpush.bf16.msra.mxu0 %v1098
      %1118 = vmatpush.bf16.msra.mxu0 %v1097
      %1119 = vmatpush.bf16.msra.mxu0 %v1096
      %1120 = vmatmul.bf16.gmra.mxu0 %v1043
      %v1121 = vpop.f32.mrf.mxu0
      %v1122 = vadd.f32 0.0, %v1121
      %v1123 = vpop.f32.mrf.mxu0
      %v1124 = vadd.f32 0.0, %v1123
      %1125 = vmatmul.bf16.gmra.mxu0 %v1044
      %v1126 = vpop.f32.mrf.mxu0
      %v1127 = vadd.f32 0.0, %v1126
      %v1128 = vpop.f32.mrf.mxu0
      %v1129 = vadd.f32 0.0, %v1128
      %1130 = vmatmul.bf16.gmra.mxu0 %v1045
      %v1131 = vpop.f32.mrf.mxu0
      %v1132 = vadd.f32 0.0, %v1131
      %v1133 = vpop.f32.mrf.mxu0
      %v1134 = vadd.f32 0.0, %v1133
      %1135 = vmatmul.bf16.gmra.mxu0 %v1046
      %v1136 = vpop.f32.mrf.mxu0
      %v1137 = vadd.f32 0.0, %v1136
      %v1138 = vpop.f32.mrf.mxu0
      %v1139 = vadd.f32 0.0, %v1138
      %1140 = vdwg.mxu0
      %v1141 = vadd.f32 %v1035, %v1122
      %v1142 = vadd.f32 %v1036, %v1124
      %v1143 = vadd.f32 %v1037, %v1127
      %v1144 = vadd.f32 %v1038, %v1129
      %v1145 = vadd.f32 %v1039, %v1132
      %v1146 = vadd.f32 %v1040, %v1134
      %v1147 = vadd.f32 %v1041, %v1137
      %v1148 = vadd.f32 %v1042, %v1139
      %1149 = vst [vmem:[%s325] sm:$0xff] %v1141
      %1150 = vst [vmem:[%s325 + $0x8] sm:$0xff] %v1142
      %1151 = vst [vmem:[%s325 + $0x10] sm:$0xff] %v1143
      %1152 = vst [vmem:[%s325 + $0x18] sm:$0xff] %v1144
      %1153 = vst [vmem:[%s325 + $0x20] sm:$0xff] %v1145
      %1154 = vst [vmem:[%s325 + $0x28] sm:$0xff] %v1146
      %1155 = vst [vmem:[%s325 + $0x30] sm:$0xff] %v1147
      %1156 = vst [vmem:[%s325 + $0x38] sm:$0xff] %v1148
      %v1157 = vld [vmem:[%s386 + $0x2] sm:$0xff]
      %v1158 = vld [vmem:[%s386 + $0x12] sm:$0xff]
      %v1159 = vld [vmem:[%s386 + $0x22] sm:$0xff]
      %v1160 = vld [vmem:[%s386 + $0x32] sm:$0xff]
      %v1161 = vld [vmem:[%s386 + $0x42] sm:$0xff]
      %v1162 = vld [vmem:[%s386 + $0x52] sm:$0xff]
      %v1163 = vld [vmem:[%s386 + $0x62] sm:$0xff]
      %v1164 = vld [vmem:[%s386 + $0x72] sm:$0xff]
      %v1165 = vld [vmem:[%s325] sm:$0xff]
      %v1166 = vld [vmem:[%s325 + $0x8] sm:$0xff]
      %v1167 = vld [vmem:[%s325 + $0x10] sm:$0xff]
      %v1168 = vld [vmem:[%s325 + $0x18] sm:$0xff]
      %v1169 = vld [vmem:[%s325 + $0x20] sm:$0xff]
      %v1170 = vld [vmem:[%s325 + $0x28] sm:$0xff]
      %v1171 = vld [vmem:[%s325 + $0x30] sm:$0xff]
      %v1172 = vld [vmem:[%s325 + $0x38] sm:$0xff]
      %v1173 = vpack.c.bf16 %v1158, %v1157
      %v1174 = vpack.c.bf16 %v1160, %v1159
      %v1175 = vpack.c.bf16 %v1162, %v1161
      %v1176 = vpack.c.bf16 %v1164, %v1163
      %s1177 = scalar_lea.vmem %s308, 320
      %v1178 = vld [vmem:[%s1177] sm:$0xf]
      %v1179 = vld [vmem:[%s1177 + $0x4] sm:$0xf]
      %v1180 = vld [vmem:[%s1177 + $0x8] sm:$0xf]
      %v1181 = vld [vmem:[%s1177 + $0xc] sm:$0xf]
      %v1182 = vld [vmem:[%s1177 + $0x10] sm:$0xf]
      %v1183 = vld [vmem:[%s1177 + $0x14] sm:$0xf]
      %v1184 = vld [vmem:[%s1177 + $0x18] sm:$0xf]
      %v1185 = vld [vmem:[%s1177 + $0x1c] sm:$0xf]
      %v1186 = vld [vmem:[%s1177 + $0x20] sm:$0xf]
      %v1187 = vld [vmem:[%s1177 + $0x24] sm:$0xf]
      %v1188 = vld [vmem:[%s1177 + $0x28] sm:$0xf]
      %v1189 = vld [vmem:[%s1177 + $0x2c] sm:$0xf]
      %v1190 = vld [vmem:[%s1177 + $0x30] sm:$0xf]
      %v1191 = vld [vmem:[%s1177 + $0x34] sm:$0xf]
      %v1192 = vld [vmem:[%s1177 + $0x38] sm:$0xf]
      %v1193 = vld [vmem:[%s1177 + $0x3c] sm:$0xf]
      %v1210 = vunpack.c.l.b16 %v1178
      %v1211 = vunpack.c.l.b16 %v1179
      %v1212 = vunpack.c.l.b16 %v1180
      %v1213 = vunpack.c.l.b16 %v1181
      %v1214 = vunpack.c.l.b16 %v1182
      %v1215 = vunpack.c.l.b16 %v1183
      %v1216 = vunpack.c.l.b16 %v1184
      %v1217 = vunpack.c.l.b16 %v1185
      %v1218 = vunpack.c.l.b16 %v1186
      %v1219 = vunpack.c.l.b16 %v1187
      %v1220 = vunpack.c.l.b16 %v1188
      %v1221 = vunpack.c.l.b16 %v1189
      %v1222 = vunpack.c.l.b16 %v1190
      %v1223 = vunpack.c.l.b16 %v1191
      %v1224 = vunpack.c.l.b16 %v1192
      %v1225 = vunpack.c.l.b16 %v1193
      %v1226 = vpack.c.b16 %v1211, %v1210
      %v1227 = vpack.c.b16 %v1213, %v1212
      %v1228 = vpack.c.b16 %v1215, %v1214
      %v1229 = vpack.c.b16 %v1217, %v1216
      %v1230 = vpack.c.b16 %v1219, %v1218
      %v1231 = vpack.c.b16 %v1221, %v1220
      %v1232 = vpack.c.b16 %v1223, %v1222
      %v1233 = vpack.c.b16 %v1225, %v1224
      %1242 = vmatpush.bf16.msra.mxu0 %v1233
      %1243 = vmatpush.bf16.msra.mxu0 %v1232
      %1244 = vmatpush.bf16.msra.mxu0 %v1231
      %1245 = vmatpush.bf16.msra.mxu0 %v1230
      %1246 = vmatpush.bf16.msra.mxu0 %v1229
      %1247 = vmatpush.bf16.msra.mxu0 %v1228
      %1248 = vmatpush.bf16.msra.mxu0 %v1227
      %1249 = vmatpush.bf16.msra.mxu0 %v1226
      %1250 = vmatmul.bf16.gmra.mxu0 %v1173
      %v1251 = vpop.f32.mrf.mxu0
      %v1252 = vadd.f32 0.0, %v1251
      %v1253 = vpop.f32.mrf.mxu0
      %v1254 = vadd.f32 0.0, %v1253
      %1255 = vmatmul.bf16.gmra.mxu0 %v1174
      %v1256 = vpop.f32.mrf.mxu0
      %v1257 = vadd.f32 0.0, %v1256
      %v1258 = vpop.f32.mrf.mxu0
      %v1259 = vadd.f32 0.0, %v1258
      %1260 = vmatmul.bf16.gmra.mxu0 %v1175
      %v1261 = vpop.f32.mrf.mxu0
      %v1262 = vadd.f32 0.0, %v1261
      %v1263 = vpop.f32.mrf.mxu0
      %v1264 = vadd.f32 0.0, %v1263
      %1265 = vmatmul.bf16.gmra.mxu0 %v1176
      %v1266 = vpop.f32.mrf.mxu0
      %v1267 = vadd.f32 0.0, %v1266
      %v1268 = vpop.f32.mrf.mxu0
      %v1269 = vadd.f32 0.0, %v1268
      %1270 = vdwg.mxu0
      %v1271 = vadd.f32 %v1165, %v1252
      %v1272 = vadd.f32 %v1166, %v1254
      %v1273 = vadd.f32 %v1167, %v1257
      %v1274 = vadd.f32 %v1168, %v1259
      %v1275 = vadd.f32 %v1169, %v1262
      %v1276 = vadd.f32 %v1170, %v1264
      %v1277 = vadd.f32 %v1171, %v1267
      %v1278 = vadd.f32 %v1172, %v1269
      %1279 = vst [vmem:[%s325] sm:$0xff] %v1271
      %1280 = vst [vmem:[%s325 + $0x8] sm:$0xff] %v1272
      %1281 = vst [vmem:[%s325 + $0x10] sm:$0xff] %v1273
      %1282 = vst [vmem:[%s325 + $0x18] sm:$0xff] %v1274
      %1283 = vst [vmem:[%s325 + $0x20] sm:$0xff] %v1275
      %1284 = vst [vmem:[%s325 + $0x28] sm:$0xff] %v1276
      %1285 = vst [vmem:[%s325 + $0x30] sm:$0xff] %v1277
      %1286 = vst [vmem:[%s325 + $0x38] sm:$0xff] %v1278
      %s1287 = scalar_lea.vmem [#allocation2], 32
      %v1288 = vld [vmem:[%s1287] sm:$0xff]
      %v1289 = vld [vmem:[%s1287 + $0x10] sm:$0xff]
      %v1290 = vld [vmem:[%s1287 + $0x20] sm:$0xff]
      %v1291 = vld [vmem:[%s1287 + $0x30] sm:$0xff]
      %v1292 = vld [vmem:[%s1287 + $0x40] sm:$0xff]
      %v1293 = vld [vmem:[%s1287 + $0x50] sm:$0xff]
      %v1294 = vld [vmem:[%s1287 + $0x60] sm:$0xff]
      %v1295 = vld [vmem:[%s1287 + $0x70] sm:$0xff]
      %v1296 = vld [vmem:[%s325] sm:$0xff]
      %v1297 = vld [vmem:[%s325 + $0x8] sm:$0xff]
      %v1298 = vld [vmem:[%s325 + $0x10] sm:$0xff]
      %v1299 = vld [vmem:[%s325 + $0x18] sm:$0xff]
      %v1300 = vld [vmem:[%s325 + $0x20] sm:$0xff]
      %v1301 = vld [vmem:[%s325 + $0x28] sm:$0xff]
      %v1302 = vld [vmem:[%s325 + $0x30] sm:$0xff]
      %v1303 = vld [vmem:[%s325 + $0x38] sm:$0xff]
      %v1304 = vpack.c.bf16 %v1289, %v1288
      %v1305 = vpack.c.bf16 %v1291, %v1290
      %v1306 = vpack.c.bf16 %v1293, %v1292
      %v1307 = vpack.c.bf16 %v1295, %v1294
      %s1308 = scalar_lea.vmem %s308, 384
      %v1309 = vld [vmem:[%s1308] sm:$0xf]
      %v1310 = vld [vmem:[%s1308 + $0x4] sm:$0xf]
      %v1311 = vld [vmem:[%s1308 + $0x8] sm:$0xf]
      %v1312 = vld [vmem:[%s1308 + $0xc] sm:$0xf]
      %v1313 = vld [vmem:[%s1308 + $0x10] sm:$0xf]
      %v1314 = vld [vmem:[%s1308 + $0x14] sm:$0xf]
      %v1315 = vld [vmem:[%s1308 + $0x18] sm:$0xf]
      %v1316 = vld [vmem:[%s1308 + $0x1c] sm:$0xf]
      %v1317 = vld [vmem:[%s1308 + $0x20] sm:$0xf]
      %v1318 = vld [vmem:[%s1308 + $0x24] sm:$0xf]
      %v1319 = vld [vmem:[%s1308 + $0x28] sm:$0xf]
      %v1320 = vld [vmem:[%s1308 + $0x2c] sm:$0xf]
      %v1321 = vld [vmem:[%s1308 + $0x30] sm:$0xf]
      %v1322 = vld [vmem:[%s1308 + $0x34] sm:$0xf]
      %v1323 = vld [vmem:[%s1308 + $0x38] sm:$0xf]
      %v1324 = vld [vmem:[%s1308 + $0x3c] sm:$0xf]
      %v1341 = vunpack.c.l.b16 %v1309
      %v1342 = vunpack.c.l.b16 %v1310
      %v1343 = vunpack.c.l.b16 %v1311
      %v1344 = vunpack.c.l.b16 %v1312
      %v1345 = vunpack.c.l.b16 %v1313
      %v1346 = vunpack.c.l.b16 %v1314
      %v1347 = vunpack.c.l.b16 %v1315
      %v1348 = vunpack.c.l.b16 %v1316
      %v1349 = vunpack.c.l.b16 %v1317
      %v1350 = vunpack.c.l.b16 %v1318
      %v1351 = vunpack.c.l.b16 %v1319
      %v1352 = vunpack.c.l.b16 %v1320
      %v1353 = vunpack.c.l.b16 %v1321
      %v1354 = vunpack.c.l.b16 %v1322
      %v1355 = vunpack.c.l.b16 %v1323
      %v1356 = vunpack.c.l.b16 %v1324
      %v1357 = vpack.c.b16 %v1342, %v1341
      %v1358 = vpack.c.b16 %v1344, %v1343
      %v1359 = vpack.c.b16 %v1346, %v1345
      %v1360 = vpack.c.b16 %v1348, %v1347
      %v1361 = vpack.c.b16 %v1350, %v1349
      %v1362 = vpack.c.b16 %v1352, %v1351
      %v1363 = vpack.c.b16 %v1354, %v1353
      %v1364 = vpack.c.b16 %v1356, %v1355
      %1373 = vmatpush.bf16.msra.mxu0 %v1364
      %1374 = vmatpush.bf16.msra.mxu0 %v1363
      %1375 = vmatpush.bf16.msra.mxu0 %v1362
      %1376 = vmatpush.bf16.msra.mxu0 %v1361
      %1377 = vmatpush.bf16.msra.mxu0 %v1360
      %1378 = vmatpush.bf16.msra.mxu0 %v1359
      %1379 = vmatpush.bf16.msra.mxu0 %v1358
      %1380 = vmatpush.bf16.msra.mxu0 %v1357
      %1381 = vmatmul.bf16.gmra.mxu0 %v1304
      %v1382 = vpop.f32.mrf.mxu0
      %v1383 = vadd.f32 0.0, %v1382
      %v1384 = vpop.f32.mrf.mxu0
      %v1385 = vadd.f32 0.0, %v1384
      %1386 = vmatmul.bf16.gmra.mxu0 %v1305
      %v1387 = vpop.f32.mrf.mxu0
      %v1388 = vadd.f32 0.0, %v1387
      %v1389 = vpop.f32.mrf.mxu0
      %v1390 = vadd.f32 0.0, %v1389
      %1391 = vmatmul.bf16.gmra.mxu0 %v1306
      %v1392 = vpop.f32.mrf.mxu0
      %v1393 = vadd.f32 0.0, %v1392
      %v1394 = vpop.f32.mrf.mxu0
      %v1395 = vadd.f32 0.0, %v1394
      %1396 = vmatmul.bf16.gmra.mxu0 %v1307
      %v1397 = vpop.f32.mrf.mxu0
      %v1398 = vadd.f32 0.0, %v1397
      %v1399 = vpop.f32.mrf.mxu0
      %v1400 = vadd.f32 0.0, %v1399
      %1401 = vdwg.mxu0
      %v1402 = vadd.f32 %v1296, %v1383
      %v1403 = vadd.f32 %v1297, %v1385
      %v1404 = vadd.f32 %v1298, %v1388
      %v1405 = vadd.f32 %v1299, %v1390
      %v1406 = vadd.f32 %v1300, %v1393
      %v1407 = vadd.f32 %v1301, %v1395
      %v1408 = vadd.f32 %v1302, %v1398
      %v1409 = vadd.f32 %v1303, %v1400
      %1410 = vst [vmem:[%s325] sm:$0xff] %v1402
      %1411 = vst [vmem:[%s325 + $0x8] sm:$0xff] %v1403
      %1412 = vst [vmem:[%s325 + $0x10] sm:$0xff] %v1404
      %1413 = vst [vmem:[%s325 + $0x18] sm:$0xff] %v1405
      %1414 = vst [vmem:[%s325 + $0x20] sm:$0xff] %v1406
      %1415 = vst [vmem:[%s325 + $0x28] sm:$0xff] %v1407
      %1416 = vst [vmem:[%s325 + $0x30] sm:$0xff] %v1408
      %1417 = vst [vmem:[%s325 + $0x38] sm:$0xff] %v1409
      %v1418 = vld [vmem:[%s1287 + $0x1] sm:$0xff]
      %v1419 = vld [vmem:[%s1287 + $0x11] sm:$0xff]
      %v1420 = vld [vmem:[%s1287 + $0x21] sm:$0xff]
      %v1421 = vld [vmem:[%s1287 + $0x31] sm:$0xff]
      %v1422 = vld [vmem:[%s1287 + $0x41] sm:$0xff]
      %v1423 = vld [vmem:[%s1287 + $0x51] sm:$0xff]
      %v1424 = vld [vmem:[%s1287 + $0x61] sm:$0xff]
      %v1425 = vld [vmem:[%s1287 + $0x71] sm:$0xff]
      %v1426 = vld [vmem:[%s325] sm:$0xff]
      %v1427 = vld [vmem:[%s325 + $0x8] sm:$0xff]
      %v1428 = vld [vmem:[%s325 + $0x10] sm:$0xff]
      %v1429 = vld [vmem:[%s325 + $0x18] sm:$0xff]
      %v1430 = vld [vmem:[%s325 + $0x20] sm:$0xff]
      %v1431 = vld [vmem:[%s325 + $0x28] sm:$0xff]
      %v1432 = vld [vmem:[%s325 + $0x30] sm:$0xff]
      %v1433 = vld [vmem:[%s325 + $0x38] sm:$0xff]
      %v1434 = vpack.c.bf16 %v1419, %v1418
      %v1435 = vpack.c.bf16 %v1421, %v1420
      %v1436 = vpack.c.bf16 %v1423, %v1422
      %v1437 = vpack.c.bf16 %v1425, %v1424
      %s1438 = scalar_lea.vmem %s308, 448
      %v1439 = vld [vmem:[%s1438] sm:$0xf]
      %v1440 = vld [vmem:[%s1438 + $0x4] sm:$0xf]
      %v1441 = vld [vmem:[%s1438 + $0x8] sm:$0xf]
      %v1442 = vld [vmem:[%s1438 + $0xc] sm:$0xf]
      %v1443 = vld [vmem:[%s1438 + $0x10] sm:$0xf]
      %v1444 = vld [vmem:[%s1438 + $0x14] sm:$0xf]
      %v1445 = vld [vmem:[%s1438 + $0x18] sm:$0xf]
      %v1446 = vld [vmem:[%s1438 + $0x1c] sm:$0xf]
      %v1447 = vld [vmem:[%s1438 + $0x20] sm:$0xf]
      %v1448 = vld [vmem:[%s1438 + $0x24] sm:$0xf]
      %v1449 = vld [vmem:[%s1438 + $0x28] sm:$0xf]
      %v1450 = vld [vmem:[%s1438 + $0x2c] sm:$0xf]
      %v1451 = vld [vmem:[%s1438 + $0x30] sm:$0xf]
      %v1452 = vld [vmem:[%s1438 + $0x34] sm:$0xf]
      %v1453 = vld [vmem:[%s1438 + $0x38] sm:$0xf]
      %v1454 = vld [vmem:[%s1438 + $0x3c] sm:$0xf]
      %v1471 = vunpack.c.l.b16 %v1439
      %v1472 = vunpack.c.l.b16 %v1440
      %v1473 = vunpack.c.l.b16 %v1441
      %v1474 = vunpack.c.l.b16 %v1442
      %v1475 = vunpack.c.l.b16 %v1443
      %v1476 = vunpack.c.l.b16 %v1444
      %v1477 = vunpack.c.l.b16 %v1445
      %v1478 = vunpack.c.l.b16 %v1446
      %v1479 = vunpack.c.l.b16 %v1447
      %v1480 = vunpack.c.l.b16 %v1448
      %v1481 = vunpack.c.l.b16 %v1449
      %v1482 = vunpack.c.l.b16 %v1450
      %v1483 = vunpack.c.l.b16 %v1451
      %v1484 = vunpack.c.l.b16 %v1452
      %v1485 = vunpack.c.l.b16 %v1453
      %v1486 = vunpack.c.l.b16 %v1454
      %v1487 = vpack.c.b16 %v1472, %v1471
      %v1488 = vpack.c.b16 %v1474, %v1473
      %v1489 = vpack.c.b16 %v1476, %v1475
      %v1490 = vpack.c.b16 %v1478, %v1477
      %v1491 = vpack.c.b16 %v1480, %v1479
      %v1492 = vpack.c.b16 %v1482, %v1481
      %v1493 = vpack.c.b16 %v1484, %v1483
      %v1494 = vpack.c.b16 %v1486, %v1485
      %1503 = vmatpush.bf16.msra.mxu0 %v1494
      %1504 = vmatpush.bf16.msra.mxu0 %v1493
      %1505 = vmatpush.bf16.msra.mxu0 %v1492
      %1506 = vmatpush.bf16.msra.mxu0 %v1491
      %1507 = vmatpush.bf16.msra.mxu0 %v1490
      %1508 = vmatpush.bf16.msra.mxu0 %v1489
      %1509 = vmatpush.bf16.msra.mxu0 %v1488
      %1510 = vmatpush.bf16.msra.mxu0 %v1487
      %1511 = vmatmul.bf16.gmra.mxu0 %v1434
      %v1512 = vpop.f32.mrf.mxu0
      %v1513 = vadd.f32 0.0, %v1512
      %v1514 = vpop.f32.mrf.mxu0
      %v1515 = vadd.f32 0.0, %v1514
      %1516 = vmatmul.bf16.gmra.mxu0 %v1435
      %v1517 = vpop.f32.mrf.mxu0
      %v1518 = vadd.f32 0.0, %v1517
      %v1519 = vpop.f32.mrf.mxu0
      %v1520 = vadd.f32 0.0, %v1519
      %1521 = vmatmul.bf16.gmra.mxu0 %v1436
      %v1522 = vpop.f32.mrf.mxu0
      %v1523 = vadd.f32 0.0, %v1522
      %v1524 = vpop.f32.mrf.mxu0
      %v1525 = vadd.f32 0.0, %v1524
      %1526 = vmatmul.bf16.gmra.mxu0 %v1437
      %v1527 = vpop.f32.mrf.mxu0
      %v1528 = vadd.f32 0.0, %v1527
      %v1529 = vpop.f32.mrf.mxu0
      %v1530 = vadd.f32 0.0, %v1529
      %1531 = vdwg.mxu0
      %v1532 = vadd.f32 %v1426, %v1513
      %v1533 = vadd.f32 %v1427, %v1515
      %v1534 = vadd.f32 %v1428, %v1518
      %v1535 = vadd.f32 %v1429, %v1520
      %v1536 = vadd.f32 %v1430, %v1523
      %v1537 = vadd.f32 %v1431, %v1525
      %v1538 = vadd.f32 %v1432, %v1528
      %v1539 = vadd.f32 %v1433, %v1530
      %1540 = vst [vmem:[%s325] sm:$0xff] %v1532
      %1541 = vst [vmem:[%s325 + $0x8] sm:$0xff] %v1533
      %1542 = vst [vmem:[%s325 + $0x10] sm:$0xff] %v1534
      %1543 = vst [vmem:[%s325 + $0x18] sm:$0xff] %v1535
      %1544 = vst [vmem:[%s325 + $0x20] sm:$0xff] %v1536
      %1545 = vst [vmem:[%s325 + $0x28] sm:$0xff] %v1537
      %1546 = vst [vmem:[%s325 + $0x30] sm:$0xff] %v1538
      %1547 = vst [vmem:[%s325 + $0x38] sm:$0xff] %v1539
      %v1548 = vld [vmem:[%s1287 + $0x2] sm:$0xff]
      %v1549 = vld [vmem:[%s1287 + $0x12] sm:$0xff]
      %v1550 = vld [vmem:[%s1287 + $0x22] sm:$0xff]
      %v1551 = vld [vmem:[%s1287 + $0x32] sm:$0xff]
      %v1552 = vld [vmem:[%s1287 + $0x42] sm:$0xff]
      %v1553 = vld [vmem:[%s1287 + $0x52] sm:$0xff]
      %v1554 = vld [vmem:[%s1287 + $0x62] sm:$0xff]
      %v1555 = vld [vmem:[%s1287 + $0x72] sm:$0xff]
      %v1556 = vld [vmem:[%s325] sm:$0xff]
      %v1557 = vld [vmem:[%s325 + $0x8] sm:$0xff]
      %v1558 = vld [vmem:[%s325 + $0x10] sm:$0xff]
      %v1559 = vld [vmem:[%s325 + $0x18] sm:$0xff]
      %v1560 = vld [vmem:[%s325 + $0x20] sm:$0xff]
      %v1561 = vld [vmem:[%s325 + $0x28] sm:$0xff]
      %v1562 = vld [vmem:[%s325 + $0x30] sm:$0xff]
      %v1563 = vld [vmem:[%s325 + $0x38] sm:$0xff]
      %v1564 = vpack.c.bf16 %v1549, %v1548
      %v1565 = vpack.c.bf16 %v1551, %v1550
      %v1566 = vpack.c.bf16 %v1553, %v1552
      %v1567 = vpack.c.bf16 %v1555, %v1554
      %s1568 = scalar_lea.vmem %s308, 512
      %v1569 = vld [vmem:[%s1568] sm:$0xf]
      %v1570 = vld [vmem:[%s1568 + $0x4] sm:$0xf]
      %v1571 = vld [vmem:[%s1568 + $0x8] sm:$0xf]
      %v1572 = vld [vmem:[%s1568 + $0xc] sm:$0xf]
      %v1573 = vld [vmem:[%s1568 + $0x10] sm:$0xf]
      %v1574 = vld [vmem:[%s1568 + $0x14] sm:$0xf]
      %v1575 = vld [vmem:[%s1568 + $0x18] sm:$0xf]
      %v1576 = vld [vmem:[%s1568 + $0x1c] sm:$0xf]
      %v1577 = vld [vmem:[%s1568 + $0x20] sm:$0xf]
      %v1578 = vld [vmem:[%s1568 + $0x24] sm:$0xf]
      %v1579 = vld [vmem:[%s1568 + $0x28] sm:$0xf]
      %v1580 = vld [vmem:[%s1568 + $0x2c] sm:$0xf]
      %v1581 = vld [vmem:[%s1568 + $0x30] sm:$0xf]
      %v1582 = vld [vmem:[%s1568 + $0x34] sm:$0xf]
      %v1583 = vld [vmem:[%s1568 + $0x38] sm:$0xf]
      %v1584 = vld [vmem:[%s1568 + $0x3c] sm:$0xf]
      %v1601 = vunpack.c.l.b16 %v1569
      %v1602 = vunpack.c.l.b16 %v1570
      %v1603 = vunpack.c.l.b16 %v1571
      %v1604 = vunpack.c.l.b16 %v1572
      %v1605 = vunpack.c.l.b16 %v1573
      %v1606 = vunpack.c.l.b16 %v1574
      %v1607 = vunpack.c.l.b16 %v1575
      %v1608 = vunpack.c.l.b16 %v1576
      %v1609 = vunpack.c.l.b16 %v1577
      %v1610 = vunpack.c.l.b16 %v1578
      %v1611 = vunpack.c.l.b16 %v1579
      %v1612 = vunpack.c.l.b16 %v1580
      %v1613 = vunpack.c.l.b16 %v1581
      %v1614 = vunpack.c.l.b16 %v1582
      %v1615 = vunpack.c.l.b16 %v1583
      %v1616 = vunpack.c.l.b16 %v1584
      %v1617 = vpack.c.b16 %v1602, %v1601
      %v1618 = vpack.c.b16 %v1604, %v1603
      %v1619 = vpack.c.b16 %v1606, %v1605
      %v1620 = vpack.c.b16 %v1608, %v1607
      %v1621 = vpack.c.b16 %v1610, %v1609
      %v1622 = vpack.c.b16 %v1612, %v1611
      %v1623 = vpack.c.b16 %v1614, %v1613
      %v1624 = vpack.c.b16 %v1616, %v1615
      %1633 = vmatpush.bf16.msra.mxu0 %v1624
      %1634 = vmatpush.bf16.msra.mxu0 %v1623
      %1635 = vmatpush.bf16.msra.mxu0 %v1622
      %1636 = vmatpush.bf16.msra.mxu0 %v1621
      %1637 = vmatpush.bf16.msra.mxu0 %v1620
      %1638 = vmatpush.bf16.msra.mxu0 %v1619
      %1639 = vmatpush.bf16.msra.mxu0 %v1618
      %1640 = vmatpush.bf16.msra.mxu0 %v1617
      %1641 = vmatmul.bf16.gmra.mxu0 %v1564
      %v1642 = vpop.f32.mrf.mxu0
      %v1643 = vadd.f32 0.0, %v1642
      %v1644 = vpop.f32.mrf.mxu0
      %v1645 = vadd.f32 0.0, %v1644
      %1646 = vmatmul.bf16.gmra.mxu0 %v1565
      %v1647 = vpop.f32.mrf.mxu0
      %v1648 = vadd.f32 0.0, %v1647
      %v1649 = vpop.f32.mrf.mxu0
      %v1650 = vadd.f32 0.0, %v1649
      %1651 = vmatmul.bf16.gmra.mxu0 %v1566
      %v1652 = vpop.f32.mrf.mxu0
      %v1653 = vadd.f32 0.0, %v1652
      %v1654 = vpop.f32.mrf.mxu0
      %v1655 = vadd.f32 0.0, %v1654
      %1656 = vmatmul.bf16.gmra.mxu0 %v1567
      %v1657 = vpop.f32.mrf.mxu0
      %v1658 = vadd.f32 0.0, %v1657
      %v1659 = vpop.f32.mrf.mxu0
      %v1660 = vadd.f32 0.0, %v1659
      %1661 = vdwg.mxu0
      %v1662 = vadd.f32 %v1556, %v1643
      %v1663 = vadd.f32 %v1557, %v1645
      %v1664 = vadd.f32 %v1558, %v1648
      %v1665 = vadd.f32 %v1559, %v1650
      %v1666 = vadd.f32 %v1560, %v1653
      %v1667 = vadd.f32 %v1561, %v1655
      %v1668 = vadd.f32 %v1562, %v1658
      %v1669 = vadd.f32 %v1563, %v1660
      %1670 = vst [vmem:[%s325] sm:$0xff] %v1662
      %1671 = vst [vmem:[%s325 + $0x8] sm:$0xff] %v1663
      %1672 = vst [vmem:[%s325 + $0x10] sm:$0xff] %v1664
      %1673 = vst [vmem:[%s325 + $0x18] sm:$0xff] %v1665
      %1674 = vst [vmem:[%s325 + $0x20] sm:$0xff] %v1666
      %1675 = vst [vmem:[%s325 + $0x28] sm:$0xff] %v1667
      %1676 = vst [vmem:[%s325 + $0x30] sm:$0xff] %v1668
      %1677 = vst [vmem:[%s325 + $0x38] sm:$0xff] %v1669
      %p1678 = scmp.lt.s32.totalorder %s21, 1
      %s1679 = scalar_select %p1678, %s21, 1
      %p1680 = scmp.lt.s32.totalorder %s22, 0
      %s1681 = scalar_select %p1680, %s22, 0
      %s1682 = smul.addr %s1679, 8
      %s1683 = sadd.s32 %s1681, %s1682
      %s1684 = smul.addr %s1683, 8
      %s1685 = scalar_lea.vmem %s6, %s1684
      // Predicated region
      $region45: #{residual_block_forward.9} parent=43 // pred_check
        %p1686 = pneg %p195
      $region46: #{residual_block_forward.9} parent=43 // pred_check_branch
        %1688 = sbr.rel (%p1686) target = $region48
      $region47: #{residual_block_forward.9} parent=43 // pred_region
        _
      $region48: #{residual_block_forward.9} parent=43 // pred_fallthru
        _
    $region44: #{residual_block_forward.9} parent=5 // pred_fallthru
      _
    %p1689 = scmp.le.s32.totalorder 2, %s12
    // Predicated region
    $region49: #{residual_block_forward.9} parent=5 // pred_check
      %p1690 = pneg %p1689
    $region50: #{residual_block_forward.9} parent=5 // pred_check_branch
      %1692 = sbr.rel (%p1690) target = $region52
    $region51: #{residual_block_forward.9} parent=5 // pred_region
      %s1693 = ssub.s32 %s12, 2
      // Predicated region
      $region53: #{residual_block_forward.9} parent=51 // pred_check
        %p1694 = pneg %p201
      $region54: #{residual_block_forward.9} parent=51 // pred_check_branch
        %1696 = sbr.rel (%p1694) target = $region56
      $region55: #{residual_block_forward.9} parent=51 // pred_region
        %p1697 = scmp.lt.s32.totalorder %s23, 1
        %s1698 = scalar_select %p1697, %s23, 1
        %p1699 = scmp.lt.s32.totalorder %s24, 0
        %s1700 = scalar_select %p1699, %s24, 0
        %s1701 = smul.addr %s1698, 8
        %s1702 = sadd.s32 %s1700, %s1701
        %s1703 = smul.addr %s1702, 8
        %s1704 = scalar_lea.vmem %s6, %s1703
      $region56: #{residual_block_forward.9} parent=51 // pred_fallthru
        _
    $region52: #{residual_block_forward.9} parent=5 // pred_fallthru
      _
  $region6: #{residual_block_forward.9} parent=0 // loop_footer
    %s16 = sadd.s32 1, %s12
  $region7: #{residual_block_forward.9} parent=0 // loop_footer_branch
    %11 = sbr.rel target = $region3
  $region8: #{residual_block_forward.9} parent=0 // loop_exit
    _

</llo_original>
